<compile_context>
chip_gen: v7x
topology: tpu7x:2x2x1
jax: 0.10.0
libtpu: 0.0.40
codegen_flags: <defaults>
</compile_context>

<pallas_src>
import functools
import math

import jax
import jax.numpy as jnp
from jax import lax
from jax.experimental import pallas as pl
from jax.experimental.pallas import tpu as pltpu  # noqa: F401  (TPU backend assumed)

# ----------------------- config (small synthetic shapes) -----------------------
HIDDEN = 32          # hidden_size
NUM_HEADS = 4        # num_heads (HIDDEN % NUM_HEADS == 0)
NUM_QUERY = 8        # num_query_tokens
NUM_LAYERS = 2       # num_layers (layer 0: cross-attn, layer 1: no cross-attn)
CROSS_FREQ = 2       # cross_attention_freq
BATCH = 2
N_VL = 16            # number of VL tokens
MAX_LEN = 64         # positional-encoding table length


# ============================ fused Pallas kernel ==============================

def _fused_qformer_kernel(q0_ref, vl_ref, ca_bias_ref,
                          wqkv_ref, bqkv_ref, wo_ref, bo_ref,
                          lng_ref, lnb_ref,
                          fw1_ref, fb1_ref, fw2_ref, fb2_ref,
                          ow_ref, ob_ref, og_ref, obt_ref,
                          o_ref, *,
                          B, Lq, Lk, num_heads, num_layers, cross_freq):
    """Whole Q-Former forward in one kernel.

    Shapes:
      q0_ref   : (B*Lq, D)       f32   initial queries (query_tokens + PE, broadcast)
      vl_ref   : (B*Lk, D)       f32   flattened VL tokens (cross-attn K/V source)
      ca_bias  : (B*H*Lq, Lk)    f32   key-padding bias pre-broadcast to the
                                       stacked cross-attn score layout
      wqkv     : (L*2, D, 3D)    bf16  packed [Wq*scale | Wk | Wv] per (layer, type)
      bqkv     : (L*2, 1, 3D)    f32   packed [bq*scale | bk | bv]
      wo / bo  : (L*2, D, D) bf16 / (L*2, 1, D) f32
      lng/lnb  : (L*3, 1, D)     f32   ln1/ln2/ln3 gamma/beta per layer
      fw1/fb1  : (L, D, 4D) bf16 / (L, 1, 4D) f32
      fw2/fb2  : (L, 4D, D) bf16 / (L, 1, D) f32
      ow/ob    : (2, D, D) bf16 / (2, 1, D) f32   output-head linears
      og/obt   : (2, 1, D)       f32              output-head layernorms
      o_ref    : (B*Lq, D)       f32
    """
    f32 = jnp.float32
    bf16 = jnp.bfloat16
    D = q0_ref.shape[-1]
    H = num_heads
    Dh = D // H
    inv_sqrt2 = 1.0 / math.sqrt(2.0)

    def layer_norm(x, g, b):
        mu = jnp.mean(x, axis=-1, keepdims=True)
        var = jnp.mean((x - mu) ** 2, axis=-1, keepdims=True)
        return (x - mu) * lax.rsqrt(var + 1e-5) * g + b

    def gelu(x):  # exact (erf) GELU, matching torch.nn.GELU() default
        return 0.5 * x * (1.0 + lax.erf(x * inv_sqrt2))

    def mm(a, w):  # bf16-input MXU matmul, f32 accumulation
        return jnp.dot(a.astype(bf16), w.astype(bf16), preferred_element_type=f32)

    def mha(xq, xkv, Lkv, idx, masked):
        """xq: (B*Lq, D) normalized queries; xkv: (B*Lkv, D) K/V source.
        idx = layer*2 + (0 self-attn / 1 cross-attn)."""
        wqkv = wqkv_ref[idx]                                   # (D, 3D) bf16
        bqkv = bqkv_ref[idx]                                   # (1, 3D) f32
        if masked:
            # cross-attn: query and key/value come from different sources
            q_all = mm(xq, wqkv[:, :D]) + bqkv[:, :D]          # (B*Lq, D)  (pre-scaled)
            kv = mm(xkv, wqkv[:, D:]) + bqkv[:, D:]            # (B*Lkv, 2D)
            k_all, v_all = kv[:, :D], kv[:, D:]
        else:
            # self-attn: ONE packed QKV matmul over the whole slab
            qkv = mm(xq, wqkv) + bqkv                          # (B*Lq, 3D)
            q_all, k_all, v_all = qkv[:, :D], qkv[:, D:2 * D], qkv[:, 2 * D:]

        # --- scores: K transposed once per batch -> clean (Lq,Dh)@(Dh,Lkv) ---
        s_tiles = []
        for b in range(B):                                     # static unroll, B=2
            kT_b = k_all[b * Lkv:(b + 1) * Lkv, :].T           # (D, Lkv)
            q_b = q_all[b * Lq:(b + 1) * Lq, :]                # (Lq, D)
            for h in range(H):                                 # static unroll, H=4
                s_tiles.append(mm(q_b[:, h * Dh:(h + 1) * Dh],
                                  kT_b[h * Dh:(h + 1) * Dh, :]))   # (Lq, Lkv)

        # --- batched softmax over ALL (batch, head) tiles at once ---
        s = jnp.concatenate(s_tiles, axis=0)                   # (B*H*Lq, Lkv)
        if masked:
            s = s + ca_bias_ref[...]                           # additive -1e30 mask
        s = s - jnp.max(s, axis=-1, keepdims=True)
        p = jnp.exp(s)
        p = p * pl.reciprocal(jnp.sum(p, axis=-1, keepdims=True), approx=True)

        # --- context: heads lane-concatenated -> ONE output-projection matmul ---
        rows = []
        for b in range(B):
            v_b = v_all[b * Lkv:(b + 1) * Lkv, :]              # (Lkv, D)
            heads = []
            for h in range(H):
                r0 = (b * H + h) * Lq
                heads.append(mm(p[r0:r0 + Lq, :],
                                v_b[:, h * Dh:(h + 1) * Dh]))  # (Lq, Dh)
            rows.append(jnp.concatenate(heads, axis=1))        # (Lq, D)
        ctx = jnp.concatenate(rows, axis=0)                    # (B*Lq, D)
        return mm(ctx, wo_ref[idx]) + bo_ref[idx]              # (B*Lq, D)

    q = q0_ref[...].astype(f32)        # residual stream, kept live across layers
    vl = vl_ref[...].astype(f32)

    for li in range(num_layers):                               # static unroll, L=2
        # self-attention block (pre-norm, residual), no mask
        qn = layer_norm(q, lng_ref[3 * li + 0], lnb_ref[3 * li + 0])
        q = q + mha(qn, qn, Lq, 2 * li + 0, masked=False)
        # cross-attention block every cross_freq layers, key-padding mask
        if li % cross_freq == 0:
            qn = layer_norm(q, lng_ref[3 * li + 1], lnb_ref[3 * li + 1])
            q = q + mha(qn, vl, Lk, 2 * li + 1, masked=True)
        # feed-forward block
        qn = layer_norm(q, lng_ref[3 * li + 2], lnb_ref[3 * li + 2])
        h1 = gelu(mm(qn, fw1_ref[li]) + fb1_ref[li])           # (B*Lq, 4D)
        q = q + mm(h1, fw2_ref[li]) + fb2_ref[li]

    # output projection head: LN -> Linear -> GELU -> Linear -> LN
    q = layer_norm(q, og_ref[0], obt_ref[0])
    q = gelu(mm(q, ow_ref[0]) + ob_ref[0])
    q = mm(q, ow_ref[1]) + ob_ref[1]
    q = layer_norm(q, og_ref[1], obt_ref[1])

    o_ref[...] = q.astype(o_ref.dtype)


# ============================= parameter packing ===============================

def pack_params(params):
    """Repack per-layer params into a few stacked arrays (free wrapper-side
    layout plumbing): QKV packed into one (D, 3D) matrix per (layer, attn-type),
    the 1/sqrt(Dh) query scale folded into Wq/bq, and all matmul weights cast to
    bf16 (biases / LN params stay f32)."""
    D, H, L = HIDDEN, NUM_HEADS, NUM_LAYERS
    Dh = D // H
    scale = 1.0 / math.sqrt(Dh)
    bf16 = jnp.bfloat16

    wqkv, bqkv, wo, bo = [], [], [], []
    lng, lnb = [], []
    fw1, fb1, fw2, fb2 = [], [], [], []
    for lp in params["layers"]:
        for t in ("sa", "ca"):
            a = lp[t]
            wqkv.append(jnp.concatenate([a["wq"] * scale, a["wk"], a["wv"]], axis=1))
            bqkv.append(jnp.concatenate([a["bq"] * scale, a["bk"], a["bv"]]).reshape(1, 3 * D))
            wo.append(a["wo"])
            bo.append(a["bo"].reshape(1, D))
        for name in ("ln1", "ln2", "ln3"):
            g, b = lp[name]
            lng.append(g.reshape(1, D))
            lnb.append(b.reshape(1, D))
        fw1.append(lp["ff_w1"]); fb1.append(lp["ff_b1"].reshape(1, 4 * D))
        fw2.append(lp["ff_w2"]); fb2.append(lp["ff_b2"].reshape(1, D))

    return dict(
        wqkv=jnp.stack(wqkv).astype(bf16),     # (L*2, D, 3D)
        bqkv=jnp.stack(bqkv),                  # (L*2, 1, 3D)  f32
        wo=jnp.stack(wo).astype(bf16),         # (L*2, D, D)
        bo=jnp.stack(bo),                      # (L*2, 1, D)
        lng=jnp.stack(lng),                    # (L*3, 1, D)
        lnb=jnp.stack(lnb),
        fw1=jnp.stack(fw1).astype(bf16),       # (L, D, 4D)
        fb1=jnp.stack(fb1),                    # (L, 1, 4D)
        fw2=jnp.stack(fw2).astype(bf16),       # (L, 4D, D)
        fb2=jnp.stack(fb2),                    # (L, 1, D)
        ow=jnp.stack([params["out_w1"], params["out_w2"]]).astype(bf16),      # (2, D, D)
        ob=jnp.stack([params["out_b1"].reshape(1, D),
                      params["out_b2"].reshape(1, D)]),                       # (2, 1, D)
        og=jnp.stack([params["out_ln1"][0].reshape(1, D),
                      params["out_ln2"][0].reshape(1, D)]),                   # (2, 1, D)
        obt=jnp.stack([params["out_ln1"][1].reshape(1, D),
                       params["out_ln2"][1].reshape(1, D)]),                  # (2, 1, D)
    )


# =============================== model wrapper =================================

def sinusoidal_pe(max_len, d):
    position = jnp.arange(max_len, dtype=jnp.float32)[:, None]
    div_term = jnp.exp(jnp.arange(0, d, 2, dtype=jnp.float32) * (-math.log(10000.0) / d))
    pe = jnp.zeros((max_len, d), jnp.float32)
    pe = pe.at[:, 0::2].set(jnp.sin(position * div_term))
    pe = pe.at[:, 1::2].set(jnp.cos(position * div_term))
    return pe


def init_params(key):
    D = HIDDEN
    keys = iter(jax.random.split(key, 64))

    def tn(shape, std=0.02):
        return (std * jax.random.truncated_normal(next(keys), -2.0, 2.0, shape)).astype(jnp.float32)

    zeros = lambda n: jnp.zeros((n,), jnp.float32)
    ones = lambda n: jnp.ones((n,), jnp.float32)

    def attn_params():
        return dict(wq=tn((D, D)), wk=tn((D, D)), wv=tn((D, D)),
                    bq=zeros(D), bk=zeros(D), bv=zeros(D),
                    wo=tn((D, D)), bo=zeros(D))

    params = dict(
        query_tokens=tn((1, NUM_QUERY, D)),
        pe=sinusoidal_pe(MAX_LEN, D),
        layers=[],
        out_ln1=(ones(D), zeros(D)),
        out_w1=tn((D, D)), out_b1=zeros(D),
        out_w2=tn((D, D)), out_b2=zeros(D),
        out_ln2=(ones(D), zeros(D)),
    )
    for _ in range(NUM_LAYERS):
        params["layers"].append(dict(
            sa=attn_params(), ca=attn_params(),
            ln1=(ones(D), zeros(D)), ln2=(ones(D), zeros(D)), ln3=(ones(D), zeros(D)),
            ff_w1=tn((D, 4 * D)), ff_b1=zeros(4 * D),
            ff_w2=tn((4 * D, D)), ff_b2=zeros(D),
        ))
    return params


def qformer_forward(params, vl_tokens, vl_mask):
    """vl_tokens: (B, N_vl, D) float32; vl_mask: (B, N_vl) bool (True = valid)."""
    B, Lk, D = vl_tokens.shape
    Lq, H = NUM_QUERY, NUM_HEADS

    packed = pack_params(params)

    q0 = (params["query_tokens"][0] + params["pe"][:Lq]).astype(jnp.float32)   # (Lq, D)
    q0 = jnp.broadcast_to(q0[None], (B, Lq, D)).reshape(B * Lq, D)
    vl2 = vl_tokens.reshape(B * Lk, D).astype(jnp.float32)

    # additive key-padding bias (0 = keep, -1e30 = masked), pre-broadcast to the
    # stacked (batch-major, head-minor) cross-attn score layout (B*H*Lq, Lk)
    bias = jnp.where(vl_mask, 0.0, -1e30).astype(jnp.float32)                   # (B, Lk)
    ca_bias = jnp.broadcast_to(bias[:, None, :], (B, H * Lq, Lk)).reshape(B * H * Lq, Lk)

    kernel = functools.partial(
        _fused_qformer_kernel,
        B=B, Lq=Lq, Lk=Lk, num_heads=H,
        num_layers=NUM_LAYERS, cross_freq=CROSS_FREQ)

    # Single un-gridded pallas_call: every operand is mapped whole into VMEM
    # (< 1 MiB total), the entire forward runs in one kernel invocation.
    out = pl.pallas_call(
        kernel,
        out_shape=jax.ShapeDtypeStruct((B * Lq, D), jnp.float32),
        cost_estimate=pl.CostEstimate(
            flops=1_200_000, transcendentals=10_000, bytes_accessed=120_000),
    )(q0, vl2, ca_bias,
      packed["wqkv"], packed["bqkv"], packed["wo"], packed["bo"],
      packed["lng"], packed["lnb"],
      packed["fw1"], packed["fb1"], packed["fw2"], packed["fb2"],
      packed["ow"], packed["ob"], packed["og"], packed["obt"])

    return out.reshape(B, Lq, D)


# ============================ pure-JAX reference check ==========================

def _ref_ln(x, g, b):
    mu = x.mean(-1, keepdims=True)
    var = ((x - mu) ** 2).mean(-1, keepdims=True)
    return (x - mu) / jnp.sqrt(var + 1e-5) * g + b


def _ref_gelu(x):
    return 0.5 * x * (1.0 + lax.erf(x / math.sqrt(2.0)))


def _ref_mha(q, kv, mask3, p, H):
    hp = lax.Precision.HIGHEST
    B, Lq, D = q.shape
    Lk = kv.shape[1]
    Dh = D // H
    qp = jnp.einsum("bld,de->ble", q, p["wq"], precision=hp) + p["bq"]
    kp = jnp.einsum("bld,de->ble", kv, p["wk"], precision=hp) + p["bk"]
    vp = jnp.einsum("bld,de->ble", kv, p["wv"], precision=hp) + p["bv"]
    split = lambda x, L: x.reshape(B, L, H, Dh).transpose(0, 2, 1, 3)
    qh, kh, vh = split(qp, Lq) / math.sqrt(Dh), split(kp, Lk), split(vp, Lk)
    s = jnp.einsum("bhqd,bhkd->bhqk", qh, kh, precision=hp)
    s = s + jnp.where(mask3[:, :, None, :] > 0.5, 0.0, -1e30)
    a = jax.nn.softmax(s, axis=-1)
    o = jnp.einsum("bhqk,bhkd->bhqd", a, vh, precision=hp)
    o = o.transpose(0, 2, 1, 3).reshape(B, Lq, D)
    return jnp.einsum("bld,de->ble", o, p["wo"], precision=hp) + p["bo"]


def _full_ref(params, vl_tokens, vl_mask):
    hp = lax.Precision.HIGHEST
    B = vl_tokens.shape[0]
    q = jnp.broadcast_to(params["query_tokens"], (B, NUM_QUERY, HIDDEN))
    q = q + params["pe"][:NUM_QUERY][None, :, :]
    self_mask = jnp.ones((B, 1, NUM_QUERY), jnp.float32)
    cross_mask = vl_mask.astype(jnp.float32)[:, None, :]
    for li, lp in enumerate(params["layers"]):
        qn = _ref_ln(q, *lp["ln1"])
        q = q + _ref_mha(qn, qn, self_mask, lp["sa"], NUM_HEADS)
        if li % CROSS_FREQ == 0:
            qn = _ref_ln(q, *lp["ln2"])
            q = q + _ref_mha(qn, vl_tokens, cross_mask, lp["ca"], NUM_HEADS)
        qn = _ref_ln(q, *lp["ln3"])
        h = _ref_gelu(jnp.einsum("bld,de->ble", qn, lp["ff_w1"], precision=hp) + lp["ff_b1"])
        h = jnp.einsum("bld,de->ble", h, lp["ff_w2"], precision=hp) + lp["ff_b2"]
        q = q + h
    q = _ref_ln(q, *params["out_ln1"])
    q = _ref_gelu(jnp.einsum("bld,de->ble", q, params["out_w1"], precision=hp) + params["out_b1"])
    q = jnp.einsum("bld,de->ble", q, params["out_w2"], precision=hp) + params["out_b2"]
    q = _ref_ln(q, *params["out_ln2"])
    return q


# ==================================== main ======================================

if __name__ == "__main__":
    key = jax.random.PRNGKey(0)
    k_param, k_vl = jax.random.split(key)

    params = init_params(k_param)
    vl_tokens = jax.random.normal(k_vl, (BATCH, N_VL, HIDDEN), jnp.float32)
    # first batch: all tokens valid; second batch: last 4 tokens padded
    vl_mask = jnp.ones((BATCH, N_VL), jnp.bool_).at[1, -4:].set(False)

    fwd = jax.jit(qformer_forward)
    out = jax.block_until_ready(fwd(params, vl_tokens, vl_mask))
    assert out.shape == (BATCH, NUM_QUERY, HIDDEN), out.shape
    assert bool(jnp.all(jnp.isfinite(out)))

    ref = jax.block_until_ready(_full_ref(params, vl_tokens, vl_mask))
    max_err = float(jnp.max(jnp.abs(out - ref)))
    # 5e-2 tolerance absorbs the documented bf16-matmul-input + approx-reciprocal
    # precision trade vs. the f32 HIGHEST-precision reference.
    assert bool(jnp.allclose(out, ref, atol=5e-2, rtol=5e-2)), max_err

    print("KERNEL_OK")
</pallas_src>

<mosaic_0001>
module attributes {stable_mosaic.version = 11 : i64} {
  func.func @_fused_qformer_kernel(%arg0: memref<16x32xf32, #tpu.memory_space<vmem>>, %arg1: memref<32x32xf32, #tpu.memory_space<vmem>>, %arg2: memref<64x16xf32, #tpu.memory_space<vmem>>, %arg3: memref<4x32x96xbf16, #tpu.memory_space<vmem>>, %arg4: memref<4x1x96xf32, #tpu.memory_space<vmem>>, %arg5: memref<4x32x32xbf16, #tpu.memory_space<vmem>>, %arg6: memref<4x1x32xf32, #tpu.memory_space<vmem>>, %arg7: memref<6x1x32xf32, #tpu.memory_space<vmem>>, %arg8: memref<6x1x32xf32, #tpu.memory_space<vmem>>, %arg9: memref<2x32x128xbf16, #tpu.memory_space<vmem>>, %arg10: memref<2x1x128xf32, #tpu.memory_space<vmem>>, %arg11: memref<2x128x32xbf16, #tpu.memory_space<vmem>>, %arg12: memref<2x1x32xf32, #tpu.memory_space<vmem>>, %arg13: memref<2x32x32xbf16, #tpu.memory_space<vmem>>, %arg14: memref<2x1x32xf32, #tpu.memory_space<vmem>>, %arg15: memref<2x1x32xf32, #tpu.memory_space<vmem>>, %arg16: memref<2x1x32xf32, #tpu.memory_space<vmem>>, %arg17: memref<16x32xf32, #tpu.memory_space<vmem>>) attributes {dimension_semantics = [], scalar_prefetch = 0 : i64, scratch_operands = 0 : i64, tpu.core_type = #tpu.core_type<tc>} {
    %c0 = arith.constant 0 : index
    %c0_0 = arith.constant 0 : index
    %0 = vector.load %arg0[%c0, %c0_0] : memref<16x32xf32, #tpu.memory_space<vmem>>, vector<16x32xf32>
    %c0_1 = arith.constant 0 : index
    %c0_2 = arith.constant 0 : index
    %1 = vector.load %arg1[%c0_1, %c0_2] : memref<32x32xf32, #tpu.memory_space<vmem>>, vector<32x32xf32>
    %c0_3 = arith.constant 0 : index
    %c0_4 = arith.constant 0 : index
    %c0_5 = arith.constant 0 : index
    %2 = vector.load %arg7[%c0_3, %c0_4, %c0_5] : memref<6x1x32xf32, #tpu.memory_space<vmem>>, vector<1x1x32xf32>
    %3 = vector.shape_cast %2 : vector<1x1x32xf32> to vector<1x32xf32>
    %c0_6 = arith.constant 0 : index
    %c0_7 = arith.constant 0 : index
    %c0_8 = arith.constant 0 : index
    %4 = vector.load %arg8[%c0_6, %c0_7, %c0_8] : memref<6x1x32xf32, #tpu.memory_space<vmem>>, vector<1x1x32xf32>
    %5 = vector.shape_cast %4 : vector<1x1x32xf32> to vector<1x32xf32>
    %cst = arith.constant dense<0.000000e+00> : vector<16xf32>
    %6 = vector.multi_reduction <add>, %0, %cst [1] : vector<16x32xf32> to vector<16xf32>
    %7 = vector.shape_cast %6 : vector<16xf32> to vector<16x1xf32>
    %cst_9 = arith.constant 3.200000e+01 : f32
    %8 = vector.broadcast %cst_9 : f32 to vector<16x1xf32>
    %9 = arith.divf %7, %8 : vector<16x1xf32>
    %10 = vector.broadcast %9 : vector<16x1xf32> to vector<16x32xf32>
    %11 = arith.subf %0, %10 : vector<16x32xf32>
    %12 = arith.mulf %11, %11 : vector<16x32xf32>
    %cst_10 = arith.constant dense<0.000000e+00> : vector<16xf32>
    %13 = vector.multi_reduction <add>, %12, %cst_10 [1] : vector<16x32xf32> to vector<16xf32>
    %14 = vector.shape_cast %13 : vector<16xf32> to vector<16x1xf32>
    %cst_11 = arith.constant 3.200000e+01 : f32
    %15 = vector.broadcast %cst_11 : f32 to vector<16x1xf32>
    %16 = arith.divf %14, %15 : vector<16x1xf32>
    %17 = vector.broadcast %9 : vector<16x1xf32> to vector<16x32xf32>
    %18 = arith.subf %0, %17 : vector<16x32xf32>
    %cst_12 = arith.constant 9.99999974E-6 : f32
    %19 = vector.broadcast %cst_12 : f32 to vector<16x1xf32>
    %20 = arith.addf %16, %19 : vector<16x1xf32>
    %21 = math.rsqrt %20 : vector<16x1xf32>
    %22 = vector.broadcast %21 : vector<16x1xf32> to vector<16x32xf32>
    %23 = arith.mulf %18, %22 : vector<16x32xf32>
    %24 = vector.broadcast %3 : vector<1x32xf32> to vector<16x32xf32>
    %25 = arith.mulf %23, %24 : vector<16x32xf32>
    %26 = vector.broadcast %5 : vector<1x32xf32> to vector<16x32xf32>
    %27 = arith.addf %25, %26 : vector<16x32xf32>
    %c0_13 = arith.constant 0 : index
    %c0_14 = arith.constant 0 : index
    %c0_15 = arith.constant 0 : index
    %28 = vector.load %arg3[%c0_13, %c0_14, %c0_15] : memref<4x32x96xbf16, #tpu.memory_space<vmem>>, vector<1x32x96xbf16>
    %29 = vector.shape_cast %28 : vector<1x32x96xbf16> to vector<32x96xbf16>
    %c0_16 = arith.constant 0 : index
    %c0_17 = arith.constant 0 : index
    %c0_18 = arith.constant 0 : index
    %30 = vector.load %arg4[%c0_16, %c0_17, %c0_18] : memref<4x1x96xf32, #tpu.memory_space<vmem>>, vector<1x1x96xf32>
    %31 = vector.shape_cast %30 : vector<1x1x96xf32> to vector<1x96xf32>
    %32 = arith.truncf %27 : vector<16x32xf32> to vector<16x32xbf16>
    %cst_19 = arith.constant dense<0.000000e+00> : vector<16x96xf32>
    %33 = tpu.matmul %32, %29, %cst_19 {dimension_numbers = #tpu.dot_dimension_numbers<[1], [0], [0], [1], [0, 0, 1, 1], [], []>} : vector<16x32xbf16>, vector<32x96xbf16>, vector<16x96xf32> -> vector<16x96xf32>
    %34 = vector.broadcast %31 : vector<1x96xf32> to vector<16x96xf32>
    %35 = arith.addf %33, %34 : vector<16x96xf32>
    %36 = vector.extract_strided_slice %35 {offsets = [0, 0], sizes = [16, 32], strides = [1, 1]} : vector<16x96xf32> to vector<16x32xf32>
    %37 = vector.extract_strided_slice %35 {offsets = [0, 32], sizes = [16, 32], strides = [1, 1]} : vector<16x96xf32> to vector<16x32xf32>
    %38 = vector.extract_strided_slice %35 {offsets = [0, 64], sizes = [16, 32], strides = [1, 1]} : vector<16x96xf32> to vector<16x32xf32>
    %39 = vector.extract_strided_slice %37 {offsets = [0, 0], sizes = [8, 32], strides = [1, 1]} : vector<16x32xf32> to vector<8x32xf32>
    %40 = tpu.transpose %39, [1, 0] : vector<8x32xf32> -> vector<32x8xf32>
    %41 = vector.extract_strided_slice %36 {offsets = [0, 0], sizes = [8, 32], strides = [1, 1]} : vector<16x32xf32> to vector<8x32xf32>
    %42 = vector.extract_strided_slice %41 {offsets = [0, 0], sizes = [8, 8], strides = [1, 1]} : vector<8x32xf32> to vector<8x8xf32>
    %43 = vector.extract_strided_slice %40 {offsets = [0, 0], sizes = [8, 8], strides = [1, 1]} : vector<32x8xf32> to vector<8x8xf32>
    %44 = arith.truncf %42 : vector<8x8xf32> to vector<8x8xbf16>
    %45 = arith.truncf %43 : vector<8x8xf32> to vector<8x8xbf16>
    %cst_20 = arith.constant dense<0.000000e+00> : vector<8x8xf32>
    %46 = tpu.matmul %44, %45, %cst_20 {dimension_numbers = #tpu.dot_dimension_numbers<[1], [0], [0], [1], [0, 0, 1, 1], [], []>} : vector<8x8xbf16>, vector<8x8xbf16>, vector<8x8xf32> -> vector<8x8xf32>
    %47 = vector.extract_strided_slice %41 {offsets = [0, 8], sizes = [8, 8], strides = [1, 1]} : vector<8x32xf32> to vector<8x8xf32>
    %48 = vector.extract_strided_slice %40 {offsets = [8, 0], sizes = [8, 8], strides = [1, 1]} : vector<32x8xf32> to vector<8x8xf32>
    %49 = arith.truncf %47 : vector<8x8xf32> to vector<8x8xbf16>
    %50 = arith.truncf %48 : vector<8x8xf32> to vector<8x8xbf16>
    %cst_21 = arith.constant dense<0.000000e+00> : vector<8x8xf32>
    %51 = tpu.matmul %49, %50, %cst_21 {dimension_numbers = #tpu.dot_dimension_numbers<[1], [0], [0], [1], [0, 0, 1, 1], [], []>} : vector<8x8xbf16>, vector<8x8xbf16>, vector<8x8xf32> -> vector<8x8xf32>
    %52 = vector.extract_strided_slice %41 {offsets = [0, 16], sizes = [8, 8], strides = [1, 1]} : vector<8x32xf32> to vector<8x8xf32>
    %53 = vector.extract_strided_slice %40 {offsets = [16, 0], sizes = [8, 8], strides = [1, 1]} : vector<32x8xf32> to vector<8x8xf32>
    %54 = arith.truncf %52 : vector<8x8xf32> to vector<8x8xbf16>
    %55 = arith.truncf %53 : vector<8x8xf32> to vector<8x8xbf16>
    %cst_22 = arith.constant dense<0.000000e+00> : vector<8x8xf32>
    %56 = tpu.matmul %54, %55, %cst_22 {dimension_numbers = #tpu.dot_dimension_numbers<[1], [0], [0], [1], [0, 0, 1, 1], [], []>} : vector<8x8xbf16>, vector<8x8xbf16>, vector<8x8xf32> -> vector<8x8xf32>
    %57 = vector.extract_strided_slice %41 {offsets = [0, 24], sizes = [8, 8], strides = [1, 1]} : vector<8x32xf32> to vector<8x8xf32>
    %58 = vector.extract_strided_slice %40 {offsets = [24, 0], sizes = [8, 8], strides = [1, 1]} : vector<32x8xf32> to vector<8x8xf32>
    %59 = arith.truncf %57 : vector<8x8xf32> to vector<8x8xbf16>
    %60 = arith.truncf %58 : vector<8x8xf32> to vector<8x8xbf16>
    %cst_23 = arith.constant dense<0.000000e+00> : vector<8x8xf32>
    %61 = tpu.matmul %59, %60, %cst_23 {dimension_numbers = #tpu.dot_dimension_numbers<[1], [0], [0], [1], [0, 0, 1, 1], [], []>} : vector<8x8xbf16>, vector<8x8xbf16>, vector<8x8xf32> -> vector<8x8xf32>
    %62 = vector.extract_strided_slice %37 {offsets = [8, 0], sizes = [8, 32], strides = [1, 1]} : vector<16x32xf32> to vector<8x32xf32>
    %63 = tpu.transpose %62, [1, 0] : vector<8x32xf32> -> vector<32x8xf32>
    %64 = vector.extract_strided_slice %36 {offsets = [8, 0], sizes = [8, 32], strides = [1, 1]} : vector<16x32xf32> to vector<8x32xf32>
    %65 = vector.extract_strided_slice %64 {offsets = [0, 0], sizes = [8, 8], strides = [1, 1]} : vector<8x32xf32> to vector<8x8xf32>
    %66 = vector.extract_strided_slice %63 {offsets = [0, 0], sizes = [8, 8], strides = [1, 1]} : vector<32x8xf32> to vector<8x8xf32>
    %67 = arith.truncf %65 : vector<8x8xf32> to vector<8x8xbf16>
    %68 = arith.truncf %66 : vector<8x8xf32> to vector<8x8xbf16>
    %cst_24 = arith.constant dense<0.000000e+00> : vector<8x8xf32>
    %69 = tpu.matmul %67, %68, %cst_24 {dimension_numbers = #tpu.dot_dimension_numbers<[1], [0], [0], [1], [0, 0, 1, 1], [], []>} : vector<8x8xbf16>, vector<8x8xbf16>, vector<8x8xf32> -> vector<8x8xf32>
    %70 = vector.extract_strided_slice %64 {offsets = [0, 8], sizes = [8, 8], strides = [1, 1]} : vector<8x32xf32> to vector<8x8xf32>
    %71 = vector.extract_strided_slice %63 {offsets = [8, 0], sizes = [8, 8], strides = [1, 1]} : vector<32x8xf32> to vector<8x8xf32>
    %72 = arith.truncf %70 : vector<8x8xf32> to vector<8x8xbf16>
    %73 = arith.truncf %71 : vector<8x8xf32> to vector<8x8xbf16>
    %cst_25 = arith.constant dense<0.000000e+00> : vector<8x8xf32>
    %74 = tpu.matmul %72, %73, %cst_25 {dimension_numbers = #tpu.dot_dimension_numbers<[1], [0], [0], [1], [0, 0, 1, 1], [], []>} : vector<8x8xbf16>, vector<8x8xbf16>, vector<8x8xf32> -> vector<8x8xf32>
    %75 = vector.extract_strided_slice %64 {offsets = [0, 16], sizes = [8, 8], strides = [1, 1]} : vector<8x32xf32> to vector<8x8xf32>
    %76 = vector.extract_strided_slice %63 {offsets = [16, 0], sizes = [8, 8], strides = [1, 1]} : vector<32x8xf32> to vector<8x8xf32>
    %77 = arith.truncf %75 : vector<8x8xf32> to vector<8x8xbf16>
    %78 = arith.truncf %76 : vector<8x8xf32> to vector<8x8xbf16>
    %cst_26 = arith.constant dense<0.000000e+00> : vector<8x8xf32>
    %79 = tpu.matmul %77, %78, %cst_26 {dimension_numbers = #tpu.dot_dimension_numbers<[1], [0], [0], [1], [0, 0, 1, 1], [], []>} : vector<8x8xbf16>, vector<8x8xbf16>, vector<8x8xf32> -> vector<8x8xf32>
    %80 = vector.extract_strided_slice %64 {offsets = [0, 24], sizes = [8, 8], strides = [1, 1]} : vector<8x32xf32> to vector<8x8xf32>
    %81 = vector.extract_strided_slice %63 {offsets = [24, 0], sizes = [8, 8], strides = [1, 1]} : vector<32x8xf32> to vector<8x8xf32>
    %82 = arith.truncf %80 : vector<8x8xf32> to vector<8x8xbf16>
    %83 = arith.truncf %81 : vector<8x8xf32> to vector<8x8xbf16>
    %cst_27 = arith.constant dense<0.000000e+00> : vector<8x8xf32>
    %84 = tpu.matmul %82, %83, %cst_27 {dimension_numbers = #tpu.dot_dimension_numbers<[1], [0], [0], [1], [0, 0, 1, 1], [], []>} : vector<8x8xbf16>, vector<8x8xbf16>, vector<8x8xf32> -> vector<8x8xf32>
    %85 = tpu.concatenate %46, %51, %56, %61, %69, %74, %79, %84 in 0 : vector<8x8xf32>, vector<8x8xf32>, vector<8x8xf32>, vector<8x8xf32>, vector<8x8xf32>, vector<8x8xf32>, vector<8x8xf32>, vector<8x8xf32> -> vector<64x8xf32>
    %cst_28 = arith.constant dense<0xFF800000> : vector<64xf32>
    %86 = vector.multi_reduction <maximumf>, %85, %cst_28 [1] : vector<64x8xf32> to vector<64xf32>
    %87 = vector.shape_cast %86 : vector<64xf32> to vector<64x1xf32>
    %88 = vector.broadcast %87 : vector<64x1xf32> to vector<64x8xf32>
    %89 = arith.subf %85, %88 : vector<64x8xf32>
    %90 = math.exp %89 : vector<64x8xf32>
    %cst_29 = arith.constant dense<0.000000e+00> : vector<64xf32>
    %91 = vector.multi_reduction <add>, %90, %cst_29 [1] : vector<64x8xf32> to vector<64xf32>
    %92 = vector.shape_cast %91 : vector<64xf32> to vector<64x1xf32>
    %93 = tpu.reciprocal %92 {approx = true} : vector<64x1xf32> -> vector<64x1xf32>
    %94 = vector.broadcast %93 : vector<64x1xf32> to vector<64x8xf32>
    %95 = arith.mulf %90, %94 : vector<64x8xf32>
    %96 = vector.extract_strided_slice %38 {offsets = [0, 0], sizes = [8, 32], strides = [1, 1]} : vector<16x32xf32> to vector<8x32xf32>
    %97 = vector.extract_strided_slice %95 {offsets = [0, 0], sizes = [8, 8], strides = [1, 1]} : vector<64x8xf32> to vector<8x8xf32>
    %98 = vector.extract_strided_slice %96 {offsets = [0, 0], sizes = [8, 8], strides = [1, 1]} : vector<8x32xf32> to vector<8x8xf32>
    %99 = arith.truncf %97 : vector<8x8xf32> to vector<8x8xbf16>
    %100 = arith.truncf %98 : vector<8x8xf32> to vector<8x8xbf16>
    %cst_30 = arith.constant dense<0.000000e+00> : vector<8x8xf32>
    %101 = tpu.matmul %99, %100, %cst_30 {dimension_numbers = #tpu.dot_dimension_numbers<[1], [0], [0], [1], [0, 0, 1, 1], [], []>} : vector<8x8xbf16>, vector<8x8xbf16>, vector<8x8xf32> -> vector<8x8xf32>
    %102 = vector.extract_strided_slice %95 {offsets = [8, 0], sizes = [8, 8], strides = [1, 1]} : vector<64x8xf32> to vector<8x8xf32>
    %103 = vector.extract_strided_slice %96 {offsets = [0, 8], sizes = [8, 8], strides = [1, 1]} : vector<8x32xf32> to vector<8x8xf32>
    %104 = arith.truncf %102 : vector<8x8xf32> to vector<8x8xbf16>
    %105 = arith.truncf %103 : vector<8x8xf32> to vector<8x8xbf16>
    %cst_31 = arith.constant dense<0.000000e+00> : vector<8x8xf32>
    %106 = tpu.matmul %104, %105, %cst_31 {dimension_numbers = #tpu.dot_dimension_numbers<[1], [0], [0], [1], [0, 0, 1, 1], [], []>} : vector<8x8xbf16>, vector<8x8xbf16>, vector<8x8xf32> -> vector<8x8xf32>
    %107 = vector.extract_strided_slice %95 {offsets = [16, 0], sizes = [8, 8], strides = [1, 1]} : vector<64x8xf32> to vector<8x8xf32>
    %108 = vector.extract_strided_slice %96 {offsets = [0, 16], sizes = [8, 8], strides = [1, 1]} : vector<8x32xf32> to vector<8x8xf32>
    %109 = arith.truncf %107 : vector<8x8xf32> to vector<8x8xbf16>
    %110 = arith.truncf %108 : vector<8x8xf32> to vector<8x8xbf16>
    %cst_32 = arith.constant dense<0.000000e+00> : vector<8x8xf32>
    %111 = tpu.matmul %109, %110, %cst_32 {dimension_numbers = #tpu.dot_dimension_numbers<[1], [0], [0], [1], [0, 0, 1, 1], [], []>} : vector<8x8xbf16>, vector<8x8xbf16>, vector<8x8xf32> -> vector<8x8xf32>
    %112 = vector.extract_strided_slice %95 {offsets = [24, 0], sizes = [8, 8], strides = [1, 1]} : vector<64x8xf32> to vector<8x8xf32>
    %113 = vector.extract_strided_slice %96 {offsets = [0, 24], sizes = [8, 8], strides = [1, 1]} : vector<8x32xf32> to vector<8x8xf32>
    %114 = arith.truncf %112 : vector<8x8xf32> to vector<8x8xbf16>
    %115 = arith.truncf %113 : vector<8x8xf32> to vector<8x8xbf16>
    %cst_33 = arith.constant dense<0.000000e+00> : vector<8x8xf32>
    %116 = tpu.matmul %114, %115, %cst_33 {dimension_numbers = #tpu.dot_dimension_numbers<[1], [0], [0], [1], [0, 0, 1, 1], [], []>} : vector<8x8xbf16>, vector<8x8xbf16>, vector<8x8xf32> -> vector<8x8xf32>
    %117 = tpu.concatenate %101, %106, %111, %116 in 1 : vector<8x8xf32>, vector<8x8xf32>, vector<8x8xf32>, vector<8x8xf32> -> vector<8x32xf32>
    %118 = vector.extract_strided_slice %38 {offsets = [8, 0], sizes = [8, 32], strides = [1, 1]} : vector<16x32xf32> to vector<8x32xf32>
    %119 = vector.extract_strided_slice %95 {offsets = [32, 0], sizes = [8, 8], strides = [1, 1]} : vector<64x8xf32> to vector<8x8xf32>
    %120 = vector.extract_strided_slice %118 {offsets = [0, 0], sizes = [8, 8], strides = [1, 1]} : vector<8x32xf32> to vector<8x8xf32>
    %121 = arith.truncf %119 : vector<8x8xf32> to vector<8x8xbf16>
    %122 = arith.truncf %120 : vector<8x8xf32> to vector<8x8xbf16>
    %cst_34 = arith.constant dense<0.000000e+00> : vector<8x8xf32>
    %123 = tpu.matmul %121, %122, %cst_34 {dimension_numbers = #tpu.dot_dimension_numbers<[1], [0], [0], [1], [0, 0, 1, 1], [], []>} : vector<8x8xbf16>, vector<8x8xbf16>, vector<8x8xf32> -> vector<8x8xf32>
    %124 = vector.extract_strided_slice %95 {offsets = [40, 0], sizes = [8, 8], strides = [1, 1]} : vector<64x8xf32> to vector<8x8xf32>
    %125 = vector.extract_strided_slice %118 {offsets = [0, 8], sizes = [8, 8], strides = [1, 1]} : vector<8x32xf32> to vector<8x8xf32>
    %126 = arith.truncf %124 : vector<8x8xf32> to vector<8x8xbf16>
    %127 = arith.truncf %125 : vector<8x8xf32> to vector<8x8xbf16>
    %cst_35 = arith.constant dense<0.000000e+00> : vector<8x8xf32>
    %128 = tpu.matmul %126, %127, %cst_35 {dimension_numbers = #tpu.dot_dimension_numbers<[1], [0], [0], [1], [0, 0, 1, 1], [], []>} : vector<8x8xbf16>, vector<8x8xbf16>, vector<8x8xf32> -> vector<8x8xf32>
    %129 = vector.extract_strided_slice %95 {offsets = [48, 0], sizes = [8, 8], strides = [1, 1]} : vector<64x8xf32> to vector<8x8xf32>
    %130 = vector.extract_strided_slice %118 {offsets = [0, 16], sizes = [8, 8], strides = [1, 1]} : vector<8x32xf32> to vector<8x8xf32>
    %131 = arith.truncf %129 : vector<8x8xf32> to vector<8x8xbf16>
    %132 = arith.truncf %130 : vector<8x8xf32> to vector<8x8xbf16>
    %cst_36 = arith.constant dense<0.000000e+00> : vector<8x8xf32>
    %133 = tpu.matmul %131, %132, %cst_36 {dimension_numbers = #tpu.dot_dimension_numbers<[1], [0], [0], [1], [0, 0, 1, 1], [], []>} : vector<8x8xbf16>, vector<8x8xbf16>, vector<8x8xf32> -> vector<8x8xf32>
    %134 = vector.extract_strided_slice %95 {offsets = [56, 0], sizes = [8, 8], strides = [1, 1]} : vector<64x8xf32> to vector<8x8xf32>
    %135 = vector.extract_strided_slice %118 {offsets = [0, 24], sizes = [8, 8], strides = [1, 1]} : vector<8x32xf32> to vector<8x8xf32>
    %136 = arith.truncf %134 : vector<8x8xf32> to vector<8x8xbf16>
    %137 = arith.truncf %135 : vector<8x8xf32> to vector<8x8xbf16>
    %cst_37 = arith.constant dense<0.000000e+00> : vector<8x8xf32>
    %138 = tpu.matmul %136, %137, %cst_37 {dimension_numbers = #tpu.dot_dimension_numbers<[1], [0], [0], [1], [0, 0, 1, 1], [], []>} : vector<8x8xbf16>, vector<8x8xbf16>, vector<8x8xf32> -> vector<8x8xf32>
    %139 = tpu.concatenate %123, %128, %133, %138 in 1 : vector<8x8xf32>, vector<8x8xf32>, vector<8x8xf32>, vector<8x8xf32> -> vector<8x32xf32>
    %140 = tpu.concatenate %117, %139 in 0 : vector<8x32xf32>, vector<8x32xf32> -> vector<16x32xf32>
    %c0_38 = arith.constant 0 : index
    %c0_39 = arith.constant 0 : index
    %c0_40 = arith.constant 0 : index
    %141 = vector.load %arg5[%c0_38, %c0_39, %c0_40] : memref<4x32x32xbf16, #tpu.memory_space<vmem>>, vector<1x32x32xbf16>
    %142 = vector.shape_cast %141 : vector<1x32x32xbf16> to vector<32x32xbf16>
    %143 = arith.truncf %140 : vector<16x32xf32> to vector<16x32xbf16>
    %cst_41 = arith.constant dense<0.000000e+00> : vector<16x32xf32>
    %144 = tpu.matmul %143, %142, %cst_41 {dimension_numbers = #tpu.dot_dimension_numbers<[1], [0], [0], [1], [0, 0, 1, 1], [], []>} : vector<16x32xbf16>, vector<32x32xbf16>, vector<16x32xf32> -> vector<16x32xf32>
    %c0_42 = arith.constant 0 : index
    %c0_43 = arith.constant 0 : index
    %c0_44 = arith.constant 0 : index
    %145 = vector.load %arg6[%c0_42, %c0_43, %c0_44] : memref<4x1x32xf32, #tpu.memory_space<vmem>>, vector<1x1x32xf32>
    %146 = vector.shape_cast %145 : vector<1x1x32xf32> to vector<1x32xf32>
    %147 = vector.broadcast %146 : vector<1x32xf32> to vector<16x32xf32>
    %148 = arith.addf %144, %147 : vector<16x32xf32>
    %149 = arith.addf %0, %148 : vector<16x32xf32>
    %c1 = arith.constant 1 : index
    %c0_45 = arith.constant 0 : index
    %c0_46 = arith.constant 0 : index
    %150 = vector.load %arg7[%c1, %c0_45, %c0_46] : memref<6x1x32xf32, #tpu.memory_space<vmem>>, vector<1x1x32xf32>
    %151 = vector.shape_cast %150 : vector<1x1x32xf32> to vector<1x32xf32>
    %c1_47 = arith.constant 1 : index
    %c0_48 = arith.constant 0 : index
    %c0_49 = arith.constant 0 : index
    %152 = vector.load %arg8[%c1_47, %c0_48, %c0_49] : memref<6x1x32xf32, #tpu.memory_space<vmem>>, vector<1x1x32xf32>
    %153 = vector.shape_cast %152 : vector<1x1x32xf32> to vector<1x32xf32>
    %cst_50 = arith.constant dense<0.000000e+00> : vector<16xf32>
    %154 = vector.multi_reduction <add>, %149, %cst_50 [1] : vector<16x32xf32> to vector<16xf32>
    %155 = vector.shape_cast %154 : vector<16xf32> to vector<16x1xf32>
    %cst_51 = arith.constant 3.200000e+01 : f32
    %156 = vector.broadcast %cst_51 : f32 to vector<16x1xf32>
    %157 = arith.divf %155, %156 : vector<16x1xf32>
    %158 = vector.broadcast %157 : vector<16x1xf32> to vector<16x32xf32>
    %159 = arith.subf %149, %158 : vector<16x32xf32>
    %160 = arith.mulf %159, %159 : vector<16x32xf32>
    %cst_52 = arith.constant dense<0.000000e+00> : vector<16xf32>
    %161 = vector.multi_reduction <add>, %160, %cst_52 [1] : vector<16x32xf32> to vector<16xf32>
    %162 = vector.shape_cast %161 : vector<16xf32> to vector<16x1xf32>
    %cst_53 = arith.constant 3.200000e+01 : f32
    %163 = vector.broadcast %cst_53 : f32 to vector<16x1xf32>
    %164 = arith.divf %162, %163 : vector<16x1xf32>
    %165 = vector.broadcast %157 : vector<16x1xf32> to vector<16x32xf32>
    %166 = arith.subf %149, %165 : vector<16x32xf32>
    %cst_54 = arith.constant 9.99999974E-6 : f32
    %167 = vector.broadcast %cst_54 : f32 to vector<16x1xf32>
    %168 = arith.addf %164, %167 : vector<16x1xf32>
    %169 = math.rsqrt %168 : vector<16x1xf32>
    %170 = vector.broadcast %169 : vector<16x1xf32> to vector<16x32xf32>
    %171 = arith.mulf %166, %170 : vector<16x32xf32>
    %172 = vector.broadcast %151 : vector<1x32xf32> to vector<16x32xf32>
    %173 = arith.mulf %171, %172 : vector<16x32xf32>
    %174 = vector.broadcast %153 : vector<1x32xf32> to vector<16x32xf32>
    %175 = arith.addf %173, %174 : vector<16x32xf32>
    %c1_55 = arith.constant 1 : index
    %c0_56 = arith.constant 0 : index
    %c0_57 = arith.constant 0 : index
    %176 = vector.load %arg3[%c1_55, %c0_56, %c0_57] : memref<4x32x96xbf16, #tpu.memory_space<vmem>>, vector<1x32x96xbf16>
    %177 = vector.shape_cast %176 : vector<1x32x96xbf16> to vector<32x96xbf16>
    %c1_58 = arith.constant 1 : index
    %c0_59 = arith.constant 0 : index
    %c0_60 = arith.constant 0 : index
    %178 = vector.load %arg4[%c1_58, %c0_59, %c0_60] : memref<4x1x96xf32, #tpu.memory_space<vmem>>, vector<1x1x96xf32>
    %179 = vector.shape_cast %178 : vector<1x1x96xf32> to vector<1x96xf32>
    %180 = vector.extract_strided_slice %177 {offsets = [0, 0], sizes = [32, 32], strides = [1, 1]} : vector<32x96xbf16> to vector<32x32xbf16>
    %181 = arith.truncf %175 : vector<16x32xf32> to vector<16x32xbf16>
    %cst_61 = arith.constant dense<0.000000e+00> : vector<16x32xf32>
    %182 = tpu.matmul %181, %180, %cst_61 {dimension_numbers = #tpu.dot_dimension_numbers<[1], [0], [0], [1], [0, 0, 1, 1], [], []>} : vector<16x32xbf16>, vector<32x32xbf16>, vector<16x32xf32> -> vector<16x32xf32>
    %183 = vector.extract_strided_slice %179 {offsets = [0, 0], sizes = [1, 32], strides = [1, 1]} : vector<1x96xf32> to vector<1x32xf32>
    %184 = vector.broadcast %183 : vector<1x32xf32> to vector<16x32xf32>
    %185 = arith.addf %182, %184 : vector<16x32xf32>
    %186 = vector.extract_strided_slice %177 {offsets = [0, 32], sizes = [32, 64], strides = [1, 1]} : vector<32x96xbf16> to vector<32x64xbf16>
    %187 = arith.truncf %1 : vector<32x32xf32> to vector<32x32xbf16>
    %cst_62 = arith.constant dense<0.000000e+00> : vector<32x64xf32>
    %188 = tpu.matmul %187, %186, %cst_62 {dimension_numbers = #tpu.dot_dimension_numbers<[1], [0], [0], [1], [0, 0, 1, 1], [], []>} : vector<32x32xbf16>, vector<32x64xbf16>, vector<32x64xf32> -> vector<32x64xf32>
    %189 = vector.extract_strided_slice %179 {offsets = [0, 32], sizes = [1, 64], strides = [1, 1]} : vector<1x96xf32> to vector<1x64xf32>
    %190 = vector.broadcast %189 : vector<1x64xf32> to vector<32x64xf32>
    %191 = arith.addf %188, %190 : vector<32x64xf32>
    %192 = vector.extract_strided_slice %191 {offsets = [0, 0], sizes = [32, 32], strides = [1, 1]} : vector<32x64xf32> to vector<32x32xf32>
    %193 = vector.extract_strided_slice %191 {offsets = [0, 32], sizes = [32, 32], strides = [1, 1]} : vector<32x64xf32> to vector<32x32xf32>
    %194 = vector.extract_strided_slice %192 {offsets = [0, 0], sizes = [16, 32], strides = [1, 1]} : vector<32x32xf32> to vector<16x32xf32>
    %195 = tpu.transpose %194, [1, 0] : vector<16x32xf32> -> vector<32x16xf32>
    %196 = vector.extract_strided_slice %185 {offsets = [0, 0], sizes = [8, 32], strides = [1, 1]} : vector<16x32xf32> to vector<8x32xf32>
    %197 = vector.extract_strided_slice %196 {offsets = [0, 0], sizes = [8, 8], strides = [1, 1]} : vector<8x32xf32> to vector<8x8xf32>
    %198 = vector.extract_strided_slice %195 {offsets = [0, 0], sizes = [8, 16], strides = [1, 1]} : vector<32x16xf32> to vector<8x16xf32>
    %199 = arith.truncf %197 : vector<8x8xf32> to vector<8x8xbf16>
    %200 = arith.truncf %198 : vector<8x16xf32> to vector<8x16xbf16>
    %cst_63 = arith.constant dense<0.000000e+00> : vector<8x16xf32>
    %201 = tpu.matmul %199, %200, %cst_63 {dimension_numbers = #tpu.dot_dimension_numbers<[1], [0], [0], [1], [0, 0, 1, 1], [], []>} : vector<8x8xbf16>, vector<8x16xbf16>, vector<8x16xf32> -> vector<8x16xf32>
    %202 = vector.extract_strided_slice %196 {offsets = [0, 8], sizes = [8, 8], strides = [1, 1]} : vector<8x32xf32> to vector<8x8xf32>
    %203 = vector.extract_strided_slice %195 {offsets = [8, 0], sizes = [8, 16], strides = [1, 1]} : vector<32x16xf32> to vector<8x16xf32>
    %204 = arith.truncf %202 : vector<8x8xf32> to vector<8x8xbf16>
    %205 = arith.truncf %203 : vector<8x16xf32> to vector<8x16xbf16>
    %cst_64 = arith.constant dense<0.000000e+00> : vector<8x16xf32>
    %206 = tpu.matmul %204, %205, %cst_64 {dimension_numbers = #tpu.dot_dimension_numbers<[1], [0], [0], [1], [0, 0, 1, 1], [], []>} : vector<8x8xbf16>, vector<8x16xbf16>, vector<8x16xf32> -> vector<8x16xf32>
    %207 = vector.extract_strided_slice %196 {offsets = [0, 16], sizes = [8, 8], strides = [1, 1]} : vector<8x32xf32> to vector<8x8xf32>
    %208 = vector.extract_strided_slice %195 {offsets = [16, 0], sizes = [8, 16], strides = [1, 1]} : vector<32x16xf32> to vector<8x16xf32>
    %209 = arith.truncf %207 : vector<8x8xf32> to vector<8x8xbf16>
    %210 = arith.truncf %208 : vector<8x16xf32> to vector<8x16xbf16>
    %cst_65 = arith.constant dense<0.000000e+00> : vector<8x16xf32>
    %211 = tpu.matmul %209, %210, %cst_65 {dimension_numbers = #tpu.dot_dimension_numbers<[1], [0], [0], [1], [0, 0, 1, 1], [], []>} : vector<8x8xbf16>, vector<8x16xbf16>, vector<8x16xf32> -> vector<8x16xf32>
    %212 = vector.extract_strided_slice %196 {offsets = [0, 24], sizes = [8, 8], strides = [1, 1]} : vector<8x32xf32> to vector<8x8xf32>
    %213 = vector.extract_strided_slice %195 {offsets = [24, 0], sizes = [8, 16], strides = [1, 1]} : vector<32x16xf32> to vector<8x16xf32>
    %214 = arith.truncf %212 : vector<8x8xf32> to vector<8x8xbf16>
    %215 = arith.truncf %213 : vector<8x16xf32> to vector<8x16xbf16>
    %cst_66 = arith.constant dense<0.000000e+00> : vector<8x16xf32>
    %216 = tpu.matmul %214, %215, %cst_66 {dimension_numbers = #tpu.dot_dimension_numbers<[1], [0], [0], [1], [0, 0, 1, 1], [], []>} : vector<8x8xbf16>, vector<8x16xbf16>, vector<8x16xf32> -> vector<8x16xf32>
    %217 = vector.extract_strided_slice %192 {offsets = [16, 0], sizes = [16, 32], strides = [1, 1]} : vector<32x32xf32> to vector<16x32xf32>
    %218 = tpu.transpose %217, [1, 0] : vector<16x32xf32> -> vector<32x16xf32>
    %219 = vector.extract_strided_slice %185 {offsets = [8, 0], sizes = [8, 32], strides = [1, 1]} : vector<16x32xf32> to vector<8x32xf32>
    %220 = vector.extract_strided_slice %219 {offsets = [0, 0], sizes = [8, 8], strides = [1, 1]} : vector<8x32xf32> to vector<8x8xf32>
    %221 = vector.extract_strided_slice %218 {offsets = [0, 0], sizes = [8, 16], strides = [1, 1]} : vector<32x16xf32> to vector<8x16xf32>
    %222 = arith.truncf %220 : vector<8x8xf32> to vector<8x8xbf16>
    %223 = arith.truncf %221 : vector<8x16xf32> to vector<8x16xbf16>
    %cst_67 = arith.constant dense<0.000000e+00> : vector<8x16xf32>
    %224 = tpu.matmul %222, %223, %cst_67 {dimension_numbers = #tpu.dot_dimension_numbers<[1], [0], [0], [1], [0, 0, 1, 1], [], []>} : vector<8x8xbf16>, vector<8x16xbf16>, vector<8x16xf32> -> vector<8x16xf32>
    %225 = vector.extract_strided_slice %219 {offsets = [0, 8], sizes = [8, 8], strides = [1, 1]} : vector<8x32xf32> to vector<8x8xf32>
    %226 = vector.extract_strided_slice %218 {offsets = [8, 0], sizes = [8, 16], strides = [1, 1]} : vector<32x16xf32> to vector<8x16xf32>
    %227 = arith.truncf %225 : vector<8x8xf32> to vector<8x8xbf16>
    %228 = arith.truncf %226 : vector<8x16xf32> to vector<8x16xbf16>
    %cst_68 = arith.constant dense<0.000000e+00> : vector<8x16xf32>
    %229 = tpu.matmul %227, %228, %cst_68 {dimension_numbers = #tpu.dot_dimension_numbers<[1], [0], [0], [1], [0, 0, 1, 1], [], []>} : vector<8x8xbf16>, vector<8x16xbf16>, vector<8x16xf32> -> vector<8x16xf32>
    %230 = vector.extract_strided_slice %219 {offsets = [0, 16], sizes = [8, 8], strides = [1, 1]} : vector<8x32xf32> to vector<8x8xf32>
    %231 = vector.extract_strided_slice %218 {offsets = [16, 0], sizes = [8, 16], strides = [1, 1]} : vector<32x16xf32> to vector<8x16xf32>
    %232 = arith.truncf %230 : vector<8x8xf32> to vector<8x8xbf16>
    %233 = arith.truncf %231 : vector<8x16xf32> to vector<8x16xbf16>
    %cst_69 = arith.constant dense<0.000000e+00> : vector<8x16xf32>
    %234 = tpu.matmul %232, %233, %cst_69 {dimension_numbers = #tpu.dot_dimension_numbers<[1], [0], [0], [1], [0, 0, 1, 1], [], []>} : vector<8x8xbf16>, vector<8x16xbf16>, vector<8x16xf32> -> vector<8x16xf32>
    %235 = vector.extract_strided_slice %219 {offsets = [0, 24], sizes = [8, 8], strides = [1, 1]} : vector<8x32xf32> to vector<8x8xf32>
    %236 = vector.extract_strided_slice %218 {offsets = [24, 0], sizes = [8, 16], strides = [1, 1]} : vector<32x16xf32> to vector<8x16xf32>
    %237 = arith.truncf %235 : vector<8x8xf32> to vector<8x8xbf16>
    %238 = arith.truncf %236 : vector<8x16xf32> to vector<8x16xbf16>
    %cst_70 = arith.constant dense<0.000000e+00> : vector<8x16xf32>
    %239 = tpu.matmul %237, %238, %cst_70 {dimension_numbers = #tpu.dot_dimension_numbers<[1], [0], [0], [1], [0, 0, 1, 1], [], []>} : vector<8x8xbf16>, vector<8x16xbf16>, vector<8x16xf32> -> vector<8x16xf32>
    %240 = tpu.concatenate %201, %206, %211, %216, %224, %229, %234, %239 in 0 : vector<8x16xf32>, vector<8x16xf32>, vector<8x16xf32>, vector<8x16xf32>, vector<8x16xf32>, vector<8x16xf32>, vector<8x16xf32>, vector<8x16xf32> -> vector<64x16xf32>
    %c0_71 = arith.constant 0 : index
    %c0_72 = arith.constant 0 : index
    %241 = vector.load %arg2[%c0_71, %c0_72] : memref<64x16xf32, #tpu.memory_space<vmem>>, vector<64x16xf32>
    %242 = arith.addf %240, %241 : vector<64x16xf32>
    %cst_73 = arith.constant dense<0xFF800000> : vector<64xf32>
    %243 = vector.multi_reduction <maximumf>, %242, %cst_73 [1] : vector<64x16xf32> to vector<64xf32>
    %244 = vector.shape_cast %243 : vector<64xf32> to vector<64x1xf32>
    %245 = vector.broadcast %244 : vector<64x1xf32> to vector<64x16xf32>
    %246 = arith.subf %242, %245 : vector<64x16xf32>
    %247 = math.exp %246 : vector<64x16xf32>
    %cst_74 = arith.constant dense<0.000000e+00> : vector<64xf32>
    %248 = vector.multi_reduction <add>, %247, %cst_74 [1] : vector<64x16xf32> to vector<64xf32>
    %249 = vector.shape_cast %248 : vector<64xf32> to vector<64x1xf32>
    %250 = tpu.reciprocal %249 {approx = true} : vector<64x1xf32> -> vector<64x1xf32>
    %251 = vector.broadcast %250 : vector<64x1xf32> to vector<64x16xf32>
    %252 = arith.mulf %247, %251 : vector<64x16xf32>
    %253 = vector.extract_strided_slice %193 {offsets = [0, 0], sizes = [16, 32], strides = [1, 1]} : vector<32x32xf32> to vector<16x32xf32>
    %254 = vector.extract_strided_slice %252 {offsets = [0, 0], sizes = [8, 16], strides = [1, 1]} : vector<64x16xf32> to vector<8x16xf32>
    %255 = vector.extract_strided_slice %253 {offsets = [0, 0], sizes = [16, 8], strides = [1, 1]} : vector<16x32xf32> to vector<16x8xf32>
    %256 = arith.truncf %254 : vector<8x16xf32> to vector<8x16xbf16>
    %257 = arith.truncf %255 : vector<16x8xf32> to vector<16x8xbf16>
    %cst_75 = arith.constant dense<0.000000e+00> : vector<8x8xf32>
    %258 = tpu.matmul %256, %257, %cst_75 {dimension_numbers = #tpu.dot_dimension_numbers<[1], [0], [0], [1], [0, 0, 1, 1], [], []>} : vector<8x16xbf16>, vector<16x8xbf16>, vector<8x8xf32> -> vector<8x8xf32>
    %259 = vector.extract_strided_slice %252 {offsets = [8, 0], sizes = [8, 16], strides = [1, 1]} : vector<64x16xf32> to vector<8x16xf32>
    %260 = vector.extract_strided_slice %253 {offsets = [0, 8], sizes = [16, 8], strides = [1, 1]} : vector<16x32xf32> to vector<16x8xf32>
    %261 = arith.truncf %259 : vector<8x16xf32> to vector<8x16xbf16>
    %262 = arith.truncf %260 : vector<16x8xf32> to vector<16x8xbf16>
    %cst_76 = arith.constant dense<0.000000e+00> : vector<8x8xf32>
    %263 = tpu.matmul %261, %262, %cst_76 {dimension_numbers = #tpu.dot_dimension_numbers<[1], [0], [0], [1], [0, 0, 1, 1], [], []>} : vector<8x16xbf16>, vector<16x8xbf16>, vector<8x8xf32> -> vector<8x8xf32>
    %264 = vector.extract_strided_slice %252 {offsets = [16, 0], sizes = [8, 16], strides = [1, 1]} : vector<64x16xf32> to vector<8x16xf32>
    %265 = vector.extract_strided_slice %253 {offsets = [0, 16], sizes = [16, 8], strides = [1, 1]} : vector<16x32xf32> to vector<16x8xf32>
    %266 = arith.truncf %264 : vector<8x16xf32> to vector<8x16xbf16>
    %267 = arith.truncf %265 : vector<16x8xf32> to vector<16x8xbf16>
    %cst_77 = arith.constant dense<0.000000e+00> : vector<8x8xf32>
    %268 = tpu.matmul %266, %267, %cst_77 {dimension_numbers = #tpu.dot_dimension_numbers<[1], [0], [0], [1], [0, 0, 1, 1], [], []>} : vector<8x16xbf16>, vector<16x8xbf16>, vector<8x8xf32> -> vector<8x8xf32>
    %269 = vector.extract_strided_slice %252 {offsets = [24, 0], sizes = [8, 16], strides = [1, 1]} : vector<64x16xf32> to vector<8x16xf32>
    %270 = vector.extract_strided_slice %253 {offsets = [0, 24], sizes = [16, 8], strides = [1, 1]} : vector<16x32xf32> to vector<16x8xf32>
    %271 = arith.truncf %269 : vector<8x16xf32> to vector<8x16xbf16>
    %272 = arith.truncf %270 : vector<16x8xf32> to vector<16x8xbf16>
    %cst_78 = arith.constant dense<0.000000e+00> : vector<8x8xf32>
    %273 = tpu.matmul %271, %272, %cst_78 {dimension_numbers = #tpu.dot_dimension_numbers<[1], [0], [0], [1], [0, 0, 1, 1], [], []>} : vector<8x16xbf16>, vector<16x8xbf16>, vector<8x8xf32> -> vector<8x8xf32>
    %274 = tpu.concatenate %258, %263, %268, %273 in 1 : vector<8x8xf32>, vector<8x8xf32>, vector<8x8xf32>, vector<8x8xf32> -> vector<8x32xf32>
    %275 = vector.extract_strided_slice %193 {offsets = [16, 0], sizes = [16, 32], strides = [1, 1]} : vector<32x32xf32> to vector<16x32xf32>
    %276 = vector.extract_strided_slice %252 {offsets = [32, 0], sizes = [8, 16], strides = [1, 1]} : vector<64x16xf32> to vector<8x16xf32>
    %277 = vector.extract_strided_slice %275 {offsets = [0, 0], sizes = [16, 8], strides = [1, 1]} : vector<16x32xf32> to vector<16x8xf32>
    %278 = arith.truncf %276 : vector<8x16xf32> to vector<8x16xbf16>
    %279 = arith.truncf %277 : vector<16x8xf32> to vector<16x8xbf16>
    %cst_79 = arith.constant dense<0.000000e+00> : vector<8x8xf32>
    %280 = tpu.matmul %278, %279, %cst_79 {dimension_numbers = #tpu.dot_dimension_numbers<[1], [0], [0], [1], [0, 0, 1, 1], [], []>} : vector<8x16xbf16>, vector<16x8xbf16>, vector<8x8xf32> -> vector<8x8xf32>
    %281 = vector.extract_strided_slice %252 {offsets = [40, 0], sizes = [8, 16], strides = [1, 1]} : vector<64x16xf32> to vector<8x16xf32>
    %282 = vector.extract_strided_slice %275 {offsets = [0, 8], sizes = [16, 8], strides = [1, 1]} : vector<16x32xf32> to vector<16x8xf32>
    %283 = arith.truncf %281 : vector<8x16xf32> to vector<8x16xbf16>
    %284 = arith.truncf %282 : vector<16x8xf32> to vector<16x8xbf16>
    %cst_80 = arith.constant dense<0.000000e+00> : vector<8x8xf32>
    %285 = tpu.matmul %283, %284, %cst_80 {dimension_numbers = #tpu.dot_dimension_numbers<[1], [0], [0], [1], [0, 0, 1, 1], [], []>} : vector<8x16xbf16>, vector<16x8xbf16>, vector<8x8xf32> -> vector<8x8xf32>
    %286 = vector.extract_strided_slice %252 {offsets = [48, 0], sizes = [8, 16], strides = [1, 1]} : vector<64x16xf32> to vector<8x16xf32>
    %287 = vector.extract_strided_slice %275 {offsets = [0, 16], sizes = [16, 8], strides = [1, 1]} : vector<16x32xf32> to vector<16x8xf32>
    %288 = arith.truncf %286 : vector<8x16xf32> to vector<8x16xbf16>
    %289 = arith.truncf %287 : vector<16x8xf32> to vector<16x8xbf16>
    %cst_81 = arith.constant dense<0.000000e+00> : vector<8x8xf32>
    %290 = tpu.matmul %288, %289, %cst_81 {dimension_numbers = #tpu.dot_dimension_numbers<[1], [0], [0], [1], [0, 0, 1, 1], [], []>} : vector<8x16xbf16>, vector<16x8xbf16>, vector<8x8xf32> -> vector<8x8xf32>
    %291 = vector.extract_strided_slice %252 {offsets = [56, 0], sizes = [8, 16], strides = [1, 1]} : vector<64x16xf32> to vector<8x16xf32>
    %292 = vector.extract_strided_slice %275 {offsets = [0, 24], sizes = [16, 8], strides = [1, 1]} : vector<16x32xf32> to vector<16x8xf32>
    %293 = arith.truncf %291 : vector<8x16xf32> to vector<8x16xbf16>
    %294 = arith.truncf %292 : vector<16x8xf32> to vector<16x8xbf16>
    %cst_82 = arith.constant dense<0.000000e+00> : vector<8x8xf32>
    %295 = tpu.matmul %293, %294, %cst_82 {dimension_numbers = #tpu.dot_dimension_numbers<[1], [0], [0], [1], [0, 0, 1, 1], [], []>} : vector<8x16xbf16>, vector<16x8xbf16>, vector<8x8xf32> -> vector<8x8xf32>
    %296 = tpu.concatenate %280, %285, %290, %295 in 1 : vector<8x8xf32>, vector<8x8xf32>, vector<8x8xf32>, vector<8x8xf32> -> vector<8x32xf32>
    %297 = tpu.concatenate %274, %296 in 0 : vector<8x32xf32>, vector<8x32xf32> -> vector<16x32xf32>
    %c1_83 = arith.constant 1 : index
    %c0_84 = arith.constant 0 : index
    %c0_85 = arith.constant 0 : index
    %298 = vector.load %arg5[%c1_83, %c0_84, %c0_85] : memref<4x32x32xbf16, #tpu.memory_space<vmem>>, vector<1x32x32xbf16>
    %299 = vector.shape_cast %298 : vector<1x32x32xbf16> to vector<32x32xbf16>
    %300 = arith.truncf %297 : vector<16x32xf32> to vector<16x32xbf16>
    %cst_86 = arith.constant dense<0.000000e+00> : vector<16x32xf32>
    %301 = tpu.matmul %300, %299, %cst_86 {dimension_numbers = #tpu.dot_dimension_numbers<[1], [0], [0], [1], [0, 0, 1, 1], [], []>} : vector<16x32xbf16>, vector<32x32xbf16>, vector<16x32xf32> -> vector<16x32xf32>
    %c1_87 = arith.constant 1 : index
    %c0_88 = arith.constant 0 : index
    %c0_89 = arith.constant 0 : index
    %302 = vector.load %arg6[%c1_87, %c0_88, %c0_89] : memref<4x1x32xf32, #tpu.memory_space<vmem>>, vector<1x1x32xf32>
    %303 = vector.shape_cast %302 : vector<1x1x32xf32> to vector<1x32xf32>
    %304 = vector.broadcast %303 : vector<1x32xf32> to vector<16x32xf32>
    %305 = arith.addf %301, %304 : vector<16x32xf32>
    %306 = arith.addf %149, %305 : vector<16x32xf32>
    %c2 = arith.constant 2 : index
    %c0_90 = arith.constant 0 : index
    %c0_91 = arith.constant 0 : index
    %307 = vector.load %arg7[%c2, %c0_90, %c0_91] : memref<6x1x32xf32, #tpu.memory_space<vmem>>, vector<1x1x32xf32>
    %308 = vector.shape_cast %307 : vector<1x1x32xf32> to vector<1x32xf32>
    %c2_92 = arith.constant 2 : index
    %c0_93 = arith.constant 0 : index
    %c0_94 = arith.constant 0 : index
    %309 = vector.load %arg8[%c2_92, %c0_93, %c0_94] : memref<6x1x32xf32, #tpu.memory_space<vmem>>, vector<1x1x32xf32>
    %310 = vector.shape_cast %309 : vector<1x1x32xf32> to vector<1x32xf32>
    %cst_95 = arith.constant dense<0.000000e+00> : vector<16xf32>
    %311 = vector.multi_reduction <add>, %306, %cst_95 [1] : vector<16x32xf32> to vector<16xf32>
    %312 = vector.shape_cast %311 : vector<16xf32> to vector<16x1xf32>
    %cst_96 = arith.constant 3.200000e+01 : f32
    %313 = vector.broadcast %cst_96 : f32 to vector<16x1xf32>
    %314 = arith.divf %312, %313 : vector<16x1xf32>
    %315 = vector.broadcast %314 : vector<16x1xf32> to vector<16x32xf32>
    %316 = arith.subf %306, %315 : vector<16x32xf32>
    %317 = arith.mulf %316, %316 : vector<16x32xf32>
    %cst_97 = arith.constant dense<0.000000e+00> : vector<16xf32>
    %318 = vector.multi_reduction <add>, %317, %cst_97 [1] : vector<16x32xf32> to vector<16xf32>
    %319 = vector.shape_cast %318 : vector<16xf32> to vector<16x1xf32>
    %cst_98 = arith.constant 3.200000e+01 : f32
    %320 = vector.broadcast %cst_98 : f32 to vector<16x1xf32>
    %321 = arith.divf %319, %320 : vector<16x1xf32>
    %322 = vector.broadcast %314 : vector<16x1xf32> to vector<16x32xf32>
    %323 = arith.subf %306, %322 : vector<16x32xf32>
    %cst_99 = arith.constant 9.99999974E-6 : f32
    %324 = vector.broadcast %cst_99 : f32 to vector<16x1xf32>
    %325 = arith.addf %321, %324 : vector<16x1xf32>
    %326 = math.rsqrt %325 : vector<16x1xf32>
    %327 = vector.broadcast %326 : vector<16x1xf32> to vector<16x32xf32>
    %328 = arith.mulf %323, %327 : vector<16x32xf32>
    %329 = vector.broadcast %308 : vector<1x32xf32> to vector<16x32xf32>
    %330 = arith.mulf %328, %329 : vector<16x32xf32>
    %331 = vector.broadcast %310 : vector<1x32xf32> to vector<16x32xf32>
    %332 = arith.addf %330, %331 : vector<16x32xf32>
    %c0_100 = arith.constant 0 : index
    %c0_101 = arith.constant 0 : index
    %c0_102 = arith.constant 0 : index
    %333 = vector.load %arg9[%c0_100, %c0_101, %c0_102] : memref<2x32x128xbf16, #tpu.memory_space<vmem>>, vector<1x32x128xbf16>
    %334 = vector.shape_cast %333 : vector<1x32x128xbf16> to vector<32x128xbf16>
    %335 = arith.truncf %332 : vector<16x32xf32> to vector<16x32xbf16>
    %cst_103 = arith.constant dense<0.000000e+00> : vector<16x128xf32>
    %336 = tpu.matmul %335, %334, %cst_103 {dimension_numbers = #tpu.dot_dimension_numbers<[1], [0], [0], [1], [0, 0, 1, 1], [], []>} : vector<16x32xbf16>, vector<32x128xbf16>, vector<16x128xf32> -> vector<16x128xf32>
    %c0_104 = arith.constant 0 : index
    %c0_105 = arith.constant 0 : index
    %c0_106 = arith.constant 0 : index
    %337 = vector.load %arg10[%c0_104, %c0_105, %c0_106] : memref<2x1x128xf32, #tpu.memory_space<vmem>>, vector<1x1x128xf32>
    %338 = vector.shape_cast %337 : vector<1x1x128xf32> to vector<1x128xf32>
    %339 = vector.broadcast %338 : vector<1x128xf32> to vector<16x128xf32>
    %340 = arith.addf %336, %339 : vector<16x128xf32>
    %cst_107 = arith.constant 5.000000e-01 : f32
    %341 = vector.broadcast %cst_107 : f32 to vector<16x128xf32>
    %342 = arith.mulf %341, %340 : vector<16x128xf32>
    %cst_108 = arith.constant 0.707106769 : f32
    %343 = vector.broadcast %cst_108 : f32 to vector<16x128xf32>
    %344 = arith.mulf %340, %343 : vector<16x128xf32>
    %345 = math.erf %344 : vector<16x128xf32>
    %cst_109 = arith.constant 1.000000e+00 : f32
    %346 = vector.broadcast %cst_109 : f32 to vector<16x128xf32>
    %347 = arith.addf %346, %345 : vector<16x128xf32>
    %348 = arith.mulf %342, %347 : vector<16x128xf32>
    %c0_110 = arith.constant 0 : index
    %c0_111 = arith.constant 0 : index
    %c0_112 = arith.constant 0 : index
    %349 = vector.load %arg11[%c0_110, %c0_111, %c0_112] : memref<2x128x32xbf16, #tpu.memory_space<vmem>>, vector<1x128x32xbf16>
    %350 = vector.shape_cast %349 : vector<1x128x32xbf16> to vector<128x32xbf16>
    %351 = arith.truncf %348 : vector<16x128xf32> to vector<16x128xbf16>
    %cst_113 = arith.constant dense<0.000000e+00> : vector<16x32xf32>
    %352 = tpu.matmul %351, %350, %cst_113 {dimension_numbers = #tpu.dot_dimension_numbers<[1], [0], [0], [1], [0, 0, 1, 1], [], []>} : vector<16x128xbf16>, vector<128x32xbf16>, vector<16x32xf32> -> vector<16x32xf32>
    %353 = arith.addf %306, %352 : vector<16x32xf32>
    %c0_114 = arith.constant 0 : index
    %c0_115 = arith.constant 0 : index
    %c0_116 = arith.constant 0 : index
    %354 = vector.load %arg12[%c0_114, %c0_115, %c0_116] : memref<2x1x32xf32, #tpu.memory_space<vmem>>, vector<1x1x32xf32>
    %355 = vector.shape_cast %354 : vector<1x1x32xf32> to vector<1x32xf32>
    %356 = vector.broadcast %355 : vector<1x32xf32> to vector<16x32xf32>
    %357 = arith.addf %353, %356 : vector<16x32xf32>
    %c3 = arith.constant 3 : index
    %c0_117 = arith.constant 0 : index
    %c0_118 = arith.constant 0 : index
    %358 = vector.load %arg7[%c3, %c0_117, %c0_118] : memref<6x1x32xf32, #tpu.memory_space<vmem>>, vector<1x1x32xf32>
    %359 = vector.shape_cast %358 : vector<1x1x32xf32> to vector<1x32xf32>
    %c3_119 = arith.constant 3 : index
    %c0_120 = arith.constant 0 : index
    %c0_121 = arith.constant 0 : index
    %360 = vector.load %arg8[%c3_119, %c0_120, %c0_121] : memref<6x1x32xf32, #tpu.memory_space<vmem>>, vector<1x1x32xf32>
    %361 = vector.shape_cast %360 : vector<1x1x32xf32> to vector<1x32xf32>
    %cst_122 = arith.constant dense<0.000000e+00> : vector<16xf32>
    %362 = vector.multi_reduction <add>, %357, %cst_122 [1] : vector<16x32xf32> to vector<16xf32>
    %363 = vector.shape_cast %362 : vector<16xf32> to vector<16x1xf32>
    %cst_123 = arith.constant 3.200000e+01 : f32
    %364 = vector.broadcast %cst_123 : f32 to vector<16x1xf32>
    %365 = arith.divf %363, %364 : vector<16x1xf32>
    %366 = vector.broadcast %365 : vector<16x1xf32> to vector<16x32xf32>
    %367 = arith.subf %357, %366 : vector<16x32xf32>
    %368 = arith.mulf %367, %367 : vector<16x32xf32>
    %cst_124 = arith.constant dense<0.000000e+00> : vector<16xf32>
    %369 = vector.multi_reduction <add>, %368, %cst_124 [1] : vector<16x32xf32> to vector<16xf32>
    %370 = vector.shape_cast %369 : vector<16xf32> to vector<16x1xf32>
    %cst_125 = arith.constant 3.200000e+01 : f32
    %371 = vector.broadcast %cst_125 : f32 to vector<16x1xf32>
    %372 = arith.divf %370, %371 : vector<16x1xf32>
    %373 = vector.broadcast %365 : vector<16x1xf32> to vector<16x32xf32>
    %374 = arith.subf %357, %373 : vector<16x32xf32>
    %cst_126 = arith.constant 9.99999974E-6 : f32
    %375 = vector.broadcast %cst_126 : f32 to vector<16x1xf32>
    %376 = arith.addf %372, %375 : vector<16x1xf32>
    %377 = math.rsqrt %376 : vector<16x1xf32>
    %378 = vector.broadcast %377 : vector<16x1xf32> to vector<16x32xf32>
    %379 = arith.mulf %374, %378 : vector<16x32xf32>
    %380 = vector.broadcast %359 : vector<1x32xf32> to vector<16x32xf32>
    %381 = arith.mulf %379, %380 : vector<16x32xf32>
    %382 = vector.broadcast %361 : vector<1x32xf32> to vector<16x32xf32>
    %383 = arith.addf %381, %382 : vector<16x32xf32>
    %c2_127 = arith.constant 2 : index
    %c0_128 = arith.constant 0 : index
    %c0_129 = arith.constant 0 : index
    %384 = vector.load %arg3[%c2_127, %c0_128, %c0_129] : memref<4x32x96xbf16, #tpu.memory_space<vmem>>, vector<1x32x96xbf16>
    %385 = vector.shape_cast %384 : vector<1x32x96xbf16> to vector<32x96xbf16>
    %c2_130 = arith.constant 2 : index
    %c0_131 = arith.constant 0 : index
    %c0_132 = arith.constant 0 : index
    %386 = vector.load %arg4[%c2_130, %c0_131, %c0_132] : memref<4x1x96xf32, #tpu.memory_space<vmem>>, vector<1x1x96xf32>
    %387 = vector.shape_cast %386 : vector<1x1x96xf32> to vector<1x96xf32>
    %388 = arith.truncf %383 : vector<16x32xf32> to vector<16x32xbf16>
    %cst_133 = arith.constant dense<0.000000e+00> : vector<16x96xf32>
    %389 = tpu.matmul %388, %385, %cst_133 {dimension_numbers = #tpu.dot_dimension_numbers<[1], [0], [0], [1], [0, 0, 1, 1], [], []>} : vector<16x32xbf16>, vector<32x96xbf16>, vector<16x96xf32> -> vector<16x96xf32>
    %390 = vector.broadcast %387 : vector<1x96xf32> to vector<16x96xf32>
    %391 = arith.addf %389, %390 : vector<16x96xf32>
    %392 = vector.extract_strided_slice %391 {offsets = [0, 0], sizes = [16, 32], strides = [1, 1]} : vector<16x96xf32> to vector<16x32xf32>
    %393 = vector.extract_strided_slice %391 {offsets = [0, 32], sizes = [16, 32], strides = [1, 1]} : vector<16x96xf32> to vector<16x32xf32>
    %394 = vector.extract_strided_slice %391 {offsets = [0, 64], sizes = [16, 32], strides = [1, 1]} : vector<16x96xf32> to vector<16x32xf32>
    %395 = vector.extract_strided_slice %393 {offsets = [0, 0], sizes = [8, 32], strides = [1, 1]} : vector<16x32xf32> to vector<8x32xf32>
    %396 = tpu.transpose %395, [1, 0] : vector<8x32xf32> -> vector<32x8xf32>
    %397 = vector.extract_strided_slice %392 {offsets = [0, 0], sizes = [8, 32], strides = [1, 1]} : vector<16x32xf32> to vector<8x32xf32>
    %398 = vector.extract_strided_slice %397 {offsets = [0, 0], sizes = [8, 8], strides = [1, 1]} : vector<8x32xf32> to vector<8x8xf32>
    %399 = vector.extract_strided_slice %396 {offsets = [0, 0], sizes = [8, 8], strides = [1, 1]} : vector<32x8xf32> to vector<8x8xf32>
    %400 = arith.truncf %398 : vector<8x8xf32> to vector<8x8xbf16>
    %401 = arith.truncf %399 : vector<8x8xf32> to vector<8x8xbf16>
    %cst_134 = arith.constant dense<0.000000e+00> : vector<8x8xf32>
    %402 = tpu.matmul %400, %401, %cst_134 {dimension_numbers = #tpu.dot_dimension_numbers<[1], [0], [0], [1], [0, 0, 1, 1], [], []>} : vector<8x8xbf16>, vector<8x8xbf16>, vector<8x8xf32> -> vector<8x8xf32>
    %403 = vector.extract_strided_slice %397 {offsets = [0, 8], sizes = [8, 8], strides = [1, 1]} : vector<8x32xf32> to vector<8x8xf32>
    %404 = vector.extract_strided_slice %396 {offsets = [8, 0], sizes = [8, 8], strides = [1, 1]} : vector<32x8xf32> to vector<8x8xf32>
    %405 = arith.truncf %403 : vector<8x8xf32> to vector<8x8xbf16>
    %406 = arith.truncf %404 : vector<8x8xf32> to vector<8x8xbf16>
    %cst_135 = arith.constant dense<0.000000e+00> : vector<8x8xf32>
    %407 = tpu.matmul %405, %406, %cst_135 {dimension_numbers = #tpu.dot_dimension_numbers<[1], [0], [0], [1], [0, 0, 1, 1], [], []>} : vector<8x8xbf16>, vector<8x8xbf16>, vector<8x8xf32> -> vector<8x8xf32>
    %408 = vector.extract_strided_slice %397 {offsets = [0, 16], sizes = [8, 8], strides = [1, 1]} : vector<8x32xf32> to vector<8x8xf32>
    %409 = vector.extract_strided_slice %396 {offsets = [16, 0], sizes = [8, 8], strides = [1, 1]} : vector<32x8xf32> to vector<8x8xf32>
    %410 = arith.truncf %408 : vector<8x8xf32> to vector<8x8xbf16>
    %411 = arith.truncf %409 : vector<8x8xf32> to vector<8x8xbf16>
    %cst_136 = arith.constant dense<0.000000e+00> : vector<8x8xf32>
    %412 = tpu.matmul %410, %411, %cst_136 {dimension_numbers = #tpu.dot_dimension_numbers<[1], [0], [0], [1], [0, 0, 1, 1], [], []>} : vector<8x8xbf16>, vector<8x8xbf16>, vector<8x8xf32> -> vector<8x8xf32>
    %413 = vector.extract_strided_slice %397 {offsets = [0, 24], sizes = [8, 8], strides = [1, 1]} : vector<8x32xf32> to vector<8x8xf32>
    %414 = vector.extract_strided_slice %396 {offsets = [24, 0], sizes = [8, 8], strides = [1, 1]} : vector<32x8xf32> to vector<8x8xf32>
    %415 = arith.truncf %413 : vector<8x8xf32> to vector<8x8xbf16>
    %416 = arith.truncf %414 : vector<8x8xf32> to vector<8x8xbf16>
    %cst_137 = arith.constant dense<0.000000e+00> : vector<8x8xf32>
    %417 = tpu.matmul %415, %416, %cst_137 {dimension_numbers = #tpu.dot_dimension_numbers<[1], [0], [0], [1], [0, 0, 1, 1], [], []>} : vector<8x8xbf16>, vector<8x8xbf16>, vector<8x8xf32> -> vector<8x8xf32>
    %418 = vector.extract_strided_slice %393 {offsets = [8, 0], sizes = [8, 32], strides = [1, 1]} : vector<16x32xf32> to vector<8x32xf32>
    %419 = tpu.transpose %418, [1, 0] : vector<8x32xf32> -> vector<32x8xf32>
    %420 = vector.extract_strided_slice %392 {offsets = [8, 0], sizes = [8, 32], strides = [1, 1]} : vector<16x32xf32> to vector<8x32xf32>
    %421 = vector.extract_strided_slice %420 {offsets = [0, 0], sizes = [8, 8], strides = [1, 1]} : vector<8x32xf32> to vector<8x8xf32>
    %422 = vector.extract_strided_slice %419 {offsets = [0, 0], sizes = [8, 8], strides = [1, 1]} : vector<32x8xf32> to vector<8x8xf32>
    %423 = arith.truncf %421 : vector<8x8xf32> to vector<8x8xbf16>
    %424 = arith.truncf %422 : vector<8x8xf32> to vector<8x8xbf16>
    %cst_138 = arith.constant dense<0.000000e+00> : vector<8x8xf32>
    %425 = tpu.matmul %423, %424, %cst_138 {dimension_numbers = #tpu.dot_dimension_numbers<[1], [0], [0], [1], [0, 0, 1, 1], [], []>} : vector<8x8xbf16>, vector<8x8xbf16>, vector<8x8xf32> -> vector<8x8xf32>
    %426 = vector.extract_strided_slice %420 {offsets = [0, 8], sizes = [8, 8], strides = [1, 1]} : vector<8x32xf32> to vector<8x8xf32>
    %427 = vector.extract_strided_slice %419 {offsets = [8, 0], sizes = [8, 8], strides = [1, 1]} : vector<32x8xf32> to vector<8x8xf32>
    %428 = arith.truncf %426 : vector<8x8xf32> to vector<8x8xbf16>
    %429 = arith.truncf %427 : vector<8x8xf32> to vector<8x8xbf16>
    %cst_139 = arith.constant dense<0.000000e+00> : vector<8x8xf32>
    %430 = tpu.matmul %428, %429, %cst_139 {dimension_numbers = #tpu.dot_dimension_numbers<[1], [0], [0], [1], [0, 0, 1, 1], [], []>} : vector<8x8xbf16>, vector<8x8xbf16>, vector<8x8xf32> -> vector<8x8xf32>
    %431 = vector.extract_strided_slice %420 {offsets = [0, 16], sizes = [8, 8], strides = [1, 1]} : vector<8x32xf32> to vector<8x8xf32>
    %432 = vector.extract_strided_slice %419 {offsets = [16, 0], sizes = [8, 8], strides = [1, 1]} : vector<32x8xf32> to vector<8x8xf32>
    %433 = arith.truncf %431 : vector<8x8xf32> to vector<8x8xbf16>
    %434 = arith.truncf %432 : vector<8x8xf32> to vector<8x8xbf16>
    %cst_140 = arith.constant dense<0.000000e+00> : vector<8x8xf32>
    %435 = tpu.matmul %433, %434, %cst_140 {dimension_numbers = #tpu.dot_dimension_numbers<[1], [0], [0], [1], [0, 0, 1, 1], [], []>} : vector<8x8xbf16>, vector<8x8xbf16>, vector<8x8xf32> -> vector<8x8xf32>
    %436 = vector.extract_strided_slice %420 {offsets = [0, 24], sizes = [8, 8], strides = [1, 1]} : vector<8x32xf32> to vector<8x8xf32>
    %437 = vector.extract_strided_slice %419 {offsets = [24, 0], sizes = [8, 8], strides = [1, 1]} : vector<32x8xf32> to vector<8x8xf32>
    %438 = arith.truncf %436 : vector<8x8xf32> to vector<8x8xbf16>
    %439 = arith.truncf %437 : vector<8x8xf32> to vector<8x8xbf16>
    %cst_141 = arith.constant dense<0.000000e+00> : vector<8x8xf32>
    %440 = tpu.matmul %438, %439, %cst_141 {dimension_numbers = #tpu.dot_dimension_numbers<[1], [0], [0], [1], [0, 0, 1, 1], [], []>} : vector<8x8xbf16>, vector<8x8xbf16>, vector<8x8xf32> -> vector<8x8xf32>
    %441 = tpu.concatenate %402, %407, %412, %417, %425, %430, %435, %440 in 0 : vector<8x8xf32>, vector<8x8xf32>, vector<8x8xf32>, vector<8x8xf32>, vector<8x8xf32>, vector<8x8xf32>, vector<8x8xf32>, vector<8x8xf32> -> vector<64x8xf32>
    %cst_142 = arith.constant dense<0xFF800000> : vector<64xf32>
    %442 = vector.multi_reduction <maximumf>, %441, %cst_142 [1] : vector<64x8xf32> to vector<64xf32>
    %443 = vector.shape_cast %442 : vector<64xf32> to vector<64x1xf32>
    %444 = vector.broadcast %443 : vector<64x1xf32> to vector<64x8xf32>
    %445 = arith.subf %441, %444 : vector<64x8xf32>
    %446 = math.exp %445 : vector<64x8xf32>
    %cst_143 = arith.constant dense<0.000000e+00> : vector<64xf32>
    %447 = vector.multi_reduction <add>, %446, %cst_143 [1] : vector<64x8xf32> to vector<64xf32>
    %448 = vector.shape_cast %447 : vector<64xf32> to vector<64x1xf32>
    %449 = tpu.reciprocal %448 {approx = true} : vector<64x1xf32> -> vector<64x1xf32>
    %450 = vector.broadcast %449 : vector<64x1xf32> to vector<64x8xf32>
    %451 = arith.mulf %446, %450 : vector<64x8xf32>
    %452 = vector.extract_strided_slice %394 {offsets = [0, 0], sizes = [8, 32], strides = [1, 1]} : vector<16x32xf32> to vector<8x32xf32>
    %453 = vector.extract_strided_slice %451 {offsets = [0, 0], sizes = [8, 8], strides = [1, 1]} : vector<64x8xf32> to vector<8x8xf32>
    %454 = vector.extract_strided_slice %452 {offsets = [0, 0], sizes = [8, 8], strides = [1, 1]} : vector<8x32xf32> to vector<8x8xf32>
    %455 = arith.truncf %453 : vector<8x8xf32> to vector<8x8xbf16>
    %456 = arith.truncf %454 : vector<8x8xf32> to vector<8x8xbf16>
    %cst_144 = arith.constant dense<0.000000e+00> : vector<8x8xf32>
    %457 = tpu.matmul %455, %456, %cst_144 {dimension_numbers = #tpu.dot_dimension_numbers<[1], [0], [0], [1], [0, 0, 1, 1], [], []>} : vector<8x8xbf16>, vector<8x8xbf16>, vector<8x8xf32> -> vector<8x8xf32>
    %458 = vector.extract_strided_slice %451 {offsets = [8, 0], sizes = [8, 8], strides = [1, 1]} : vector<64x8xf32> to vector<8x8xf32>
    %459 = vector.extract_strided_slice %452 {offsets = [0, 8], sizes = [8, 8], strides = [1, 1]} : vector<8x32xf32> to vector<8x8xf32>
    %460 = arith.truncf %458 : vector<8x8xf32> to vector<8x8xbf16>
    %461 = arith.truncf %459 : vector<8x8xf32> to vector<8x8xbf16>
    %cst_145 = arith.constant dense<0.000000e+00> : vector<8x8xf32>
    %462 = tpu.matmul %460, %461, %cst_145 {dimension_numbers = #tpu.dot_dimension_numbers<[1], [0], [0], [1], [0, 0, 1, 1], [], []>} : vector<8x8xbf16>, vector<8x8xbf16>, vector<8x8xf32> -> vector<8x8xf32>
    %463 = vector.extract_strided_slice %451 {offsets = [16, 0], sizes = [8, 8], strides = [1, 1]} : vector<64x8xf32> to vector<8x8xf32>
    %464 = vector.extract_strided_slice %452 {offsets = [0, 16], sizes = [8, 8], strides = [1, 1]} : vector<8x32xf32> to vector<8x8xf32>
    %465 = arith.truncf %463 : vector<8x8xf32> to vector<8x8xbf16>
    %466 = arith.truncf %464 : vector<8x8xf32> to vector<8x8xbf16>
    %cst_146 = arith.constant dense<0.000000e+00> : vector<8x8xf32>
    %467 = tpu.matmul %465, %466, %cst_146 {dimension_numbers = #tpu.dot_dimension_numbers<[1], [0], [0], [1], [0, 0, 1, 1], [], []>} : vector<8x8xbf16>, vector<8x8xbf16>, vector<8x8xf32> -> vector<8x8xf32>
    %468 = vector.extract_strided_slice %451 {offsets = [24, 0], sizes = [8, 8], strides = [1, 1]} : vector<64x8xf32> to vector<8x8xf32>
    %469 = vector.extract_strided_slice %452 {offsets = [0, 24], sizes = [8, 8], strides = [1, 1]} : vector<8x32xf32> to vector<8x8xf32>
    %470 = arith.truncf %468 : vector<8x8xf32> to vector<8x8xbf16>
    %471 = arith.truncf %469 : vector<8x8xf32> to vector<8x8xbf16>
    %cst_147 = arith.constant dense<0.000000e+00> : vector<8x8xf32>
    %472 = tpu.matmul %470, %471, %cst_147 {dimension_numbers = #tpu.dot_dimension_numbers<[1], [0], [0], [1], [0, 0, 1, 1], [], []>} : vector<8x8xbf16>, vector<8x8xbf16>, vector<8x8xf32> -> vector<8x8xf32>
    %473 = tpu.concatenate %457, %462, %467, %472 in 1 : vector<8x8xf32>, vector<8x8xf32>, vector<8x8xf32>, vector<8x8xf32> -> vector<8x32xf32>
    %474 = vector.extract_strided_slice %394 {offsets = [8, 0], sizes = [8, 32], strides = [1, 1]} : vector<16x32xf32> to vector<8x32xf32>
    %475 = vector.extract_strided_slice %451 {offsets = [32, 0], sizes = [8, 8], strides = [1, 1]} : vector<64x8xf32> to vector<8x8xf32>
    %476 = vector.extract_strided_slice %474 {offsets = [0, 0], sizes = [8, 8], strides = [1, 1]} : vector<8x32xf32> to vector<8x8xf32>
    %477 = arith.truncf %475 : vector<8x8xf32> to vector<8x8xbf16>
    %478 = arith.truncf %476 : vector<8x8xf32> to vector<8x8xbf16>
    %cst_148 = arith.constant dense<0.000000e+00> : vector<8x8xf32>
    %479 = tpu.matmul %477, %478, %cst_148 {dimension_numbers = #tpu.dot_dimension_numbers<[1], [0], [0], [1], [0, 0, 1, 1], [], []>} : vector<8x8xbf16>, vector<8x8xbf16>, vector<8x8xf32> -> vector<8x8xf32>
    %480 = vector.extract_strided_slice %451 {offsets = [40, 0], sizes = [8, 8], strides = [1, 1]} : vector<64x8xf32> to vector<8x8xf32>
    %481 = vector.extract_strided_slice %474 {offsets = [0, 8], sizes = [8, 8], strides = [1, 1]} : vector<8x32xf32> to vector<8x8xf32>
    %482 = arith.truncf %480 : vector<8x8xf32> to vector<8x8xbf16>
    %483 = arith.truncf %481 : vector<8x8xf32> to vector<8x8xbf16>
    %cst_149 = arith.constant dense<0.000000e+00> : vector<8x8xf32>
    %484 = tpu.matmul %482, %483, %cst_149 {dimension_numbers = #tpu.dot_dimension_numbers<[1], [0], [0], [1], [0, 0, 1, 1], [], []>} : vector<8x8xbf16>, vector<8x8xbf16>, vector<8x8xf32> -> vector<8x8xf32>
    %485 = vector.extract_strided_slice %451 {offsets = [48, 0], sizes = [8, 8], strides = [1, 1]} : vector<64x8xf32> to vector<8x8xf32>
    %486 = vector.extract_strided_slice %474 {offsets = [0, 16], sizes = [8, 8], strides = [1, 1]} : vector<8x32xf32> to vector<8x8xf32>
    %487 = arith.truncf %485 : vector<8x8xf32> to vector<8x8xbf16>
    %488 = arith.truncf %486 : vector<8x8xf32> to vector<8x8xbf16>
    %cst_150 = arith.constant dense<0.000000e+00> : vector<8x8xf32>
    %489 = tpu.matmul %487, %488, %cst_150 {dimension_numbers = #tpu.dot_dimension_numbers<[1], [0], [0], [1], [0, 0, 1, 1], [], []>} : vector<8x8xbf16>, vector<8x8xbf16>, vector<8x8xf32> -> vector<8x8xf32>
    %490 = vector.extract_strided_slice %451 {offsets = [56, 0], sizes = [8, 8], strides = [1, 1]} : vector<64x8xf32> to vector<8x8xf32>
    %491 = vector.extract_strided_slice %474 {offsets = [0, 24], sizes = [8, 8], strides = [1, 1]} : vector<8x32xf32> to vector<8x8xf32>
    %492 = arith.truncf %490 : vector<8x8xf32> to vector<8x8xbf16>
    %493 = arith.truncf %491 : vector<8x8xf32> to vector<8x8xbf16>
    %cst_151 = arith.constant dense<0.000000e+00> : vector<8x8xf32>
    %494 = tpu.matmul %492, %493, %cst_151 {dimension_numbers = #tpu.dot_dimension_numbers<[1], [0], [0], [1], [0, 0, 1, 1], [], []>} : vector<8x8xbf16>, vector<8x8xbf16>, vector<8x8xf32> -> vector<8x8xf32>
    %495 = tpu.concatenate %479, %484, %489, %494 in 1 : vector<8x8xf32>, vector<8x8xf32>, vector<8x8xf32>, vector<8x8xf32> -> vector<8x32xf32>
    %496 = tpu.concatenate %473, %495 in 0 : vector<8x32xf32>, vector<8x32xf32> -> vector<16x32xf32>
    %c2_152 = arith.constant 2 : index
    %c0_153 = arith.constant 0 : index
    %c0_154 = arith.constant 0 : index
    %497 = vector.load %arg5[%c2_152, %c0_153, %c0_154] : memref<4x32x32xbf16, #tpu.memory_space<vmem>>, vector<1x32x32xbf16>
    %498 = vector.shape_cast %497 : vector<1x32x32xbf16> to vector<32x32xbf16>
    %499 = arith.truncf %496 : vector<16x32xf32> to vector<16x32xbf16>
    %cst_155 = arith.constant dense<0.000000e+00> : vector<16x32xf32>
    %500 = tpu.matmul %499, %498, %cst_155 {dimension_numbers = #tpu.dot_dimension_numbers<[1], [0], [0], [1], [0, 0, 1, 1], [], []>} : vector<16x32xbf16>, vector<32x32xbf16>, vector<16x32xf32> -> vector<16x32xf32>
    %c2_156 = arith.constant 2 : index
    %c0_157 = arith.constant 0 : index
    %c0_158 = arith.constant 0 : index
    %501 = vector.load %arg6[%c2_156, %c0_157, %c0_158] : memref<4x1x32xf32, #tpu.memory_space<vmem>>, vector<1x1x32xf32>
    %502 = vector.shape_cast %501 : vector<1x1x32xf32> to vector<1x32xf32>
    %503 = vector.broadcast %502 : vector<1x32xf32> to vector<16x32xf32>
    %504 = arith.addf %500, %503 : vector<16x32xf32>
    %505 = arith.addf %357, %504 : vector<16x32xf32>
    %c5 = arith.constant 5 : index
    %c0_159 = arith.constant 0 : index
    %c0_160 = arith.constant 0 : index
    %506 = vector.load %arg7[%c5, %c0_159, %c0_160] : memref<6x1x32xf32, #tpu.memory_space<vmem>>, vector<1x1x32xf32>
    %507 = vector.shape_cast %506 : vector<1x1x32xf32> to vector<1x32xf32>
    %c5_161 = arith.constant 5 : index
    %c0_162 = arith.constant 0 : index
    %c0_163 = arith.constant 0 : index
    %508 = vector.load %arg8[%c5_161, %c0_162, %c0_163] : memref<6x1x32xf32, #tpu.memory_space<vmem>>, vector<1x1x32xf32>
    %509 = vector.shape_cast %508 : vector<1x1x32xf32> to vector<1x32xf32>
    %cst_164 = arith.constant dense<0.000000e+00> : vector<16xf32>
    %510 = vector.multi_reduction <add>, %505, %cst_164 [1] : vector<16x32xf32> to vector<16xf32>
    %511 = vector.shape_cast %510 : vector<16xf32> to vector<16x1xf32>
    %cst_165 = arith.constant 3.200000e+01 : f32
    %512 = vector.broadcast %cst_165 : f32 to vector<16x1xf32>
    %513 = arith.divf %511, %512 : vector<16x1xf32>
    %514 = vector.broadcast %513 : vector<16x1xf32> to vector<16x32xf32>
    %515 = arith.subf %505, %514 : vector<16x32xf32>
    %516 = arith.mulf %515, %515 : vector<16x32xf32>
    %cst_166 = arith.constant dense<0.000000e+00> : vector<16xf32>
    %517 = vector.multi_reduction <add>, %516, %cst_166 [1] : vector<16x32xf32> to vector<16xf32>
    %518 = vector.shape_cast %517 : vector<16xf32> to vector<16x1xf32>
    %cst_167 = arith.constant 3.200000e+01 : f32
    %519 = vector.broadcast %cst_167 : f32 to vector<16x1xf32>
    %520 = arith.divf %518, %519 : vector<16x1xf32>
    %521 = vector.broadcast %513 : vector<16x1xf32> to vector<16x32xf32>
    %522 = arith.subf %505, %521 : vector<16x32xf32>
    %cst_168 = arith.constant 9.99999974E-6 : f32
    %523 = vector.broadcast %cst_168 : f32 to vector<16x1xf32>
    %524 = arith.addf %520, %523 : vector<16x1xf32>
    %525 = math.rsqrt %524 : vector<16x1xf32>
    %526 = vector.broadcast %525 : vector<16x1xf32> to vector<16x32xf32>
    %527 = arith.mulf %522, %526 : vector<16x32xf32>
    %528 = vector.broadcast %507 : vector<1x32xf32> to vector<16x32xf32>
    %529 = arith.mulf %527, %528 : vector<16x32xf32>
    %530 = vector.broadcast %509 : vector<1x32xf32> to vector<16x32xf32>
    %531 = arith.addf %529, %530 : vector<16x32xf32>
    %c1_169 = arith.constant 1 : index
    %c0_170 = arith.constant 0 : index
    %c0_171 = arith.constant 0 : index
    %532 = vector.load %arg9[%c1_169, %c0_170, %c0_171] : memref<2x32x128xbf16, #tpu.memory_space<vmem>>, vector<1x32x128xbf16>
    %533 = vector.shape_cast %532 : vector<1x32x128xbf16> to vector<32x128xbf16>
    %534 = arith.truncf %531 : vector<16x32xf32> to vector<16x32xbf16>
    %cst_172 = arith.constant dense<0.000000e+00> : vector<16x128xf32>
    %535 = tpu.matmul %534, %533, %cst_172 {dimension_numbers = #tpu.dot_dimension_numbers<[1], [0], [0], [1], [0, 0, 1, 1], [], []>} : vector<16x32xbf16>, vector<32x128xbf16>, vector<16x128xf32> -> vector<16x128xf32>
    %c1_173 = arith.constant 1 : index
    %c0_174 = arith.constant 0 : index
    %c0_175 = arith.constant 0 : index
    %536 = vector.load %arg10[%c1_173, %c0_174, %c0_175] : memref<2x1x128xf32, #tpu.memory_space<vmem>>, vector<1x1x128xf32>
    %537 = vector.shape_cast %536 : vector<1x1x128xf32> to vector<1x128xf32>
    %538 = vector.broadcast %537 : vector<1x128xf32> to vector<16x128xf32>
    %539 = arith.addf %535, %538 : vector<16x128xf32>
    %cst_176 = arith.constant 5.000000e-01 : f32
    %540 = vector.broadcast %cst_176 : f32 to vector<16x128xf32>
    %541 = arith.mulf %540, %539 : vector<16x128xf32>
    %cst_177 = arith.constant 0.707106769 : f32
    %542 = vector.broadcast %cst_177 : f32 to vector<16x128xf32>
    %543 = arith.mulf %539, %542 : vector<16x128xf32>
    %544 = math.erf %543 : vector<16x128xf32>
    %cst_178 = arith.constant 1.000000e+00 : f32
    %545 = vector.broadcast %cst_178 : f32 to vector<16x128xf32>
    %546 = arith.addf %545, %544 : vector<16x128xf32>
    %547 = arith.mulf %541, %546 : vector<16x128xf32>
    %c1_179 = arith.constant 1 : index
    %c0_180 = arith.constant 0 : index
    %c0_181 = arith.constant 0 : index
    %548 = vector.load %arg11[%c1_179, %c0_180, %c0_181] : memref<2x128x32xbf16, #tpu.memory_space<vmem>>, vector<1x128x32xbf16>
    %549 = vector.shape_cast %548 : vector<1x128x32xbf16> to vector<128x32xbf16>
    %550 = arith.truncf %547 : vector<16x128xf32> to vector<16x128xbf16>
    %cst_182 = arith.constant dense<0.000000e+00> : vector<16x32xf32>
    %551 = tpu.matmul %550, %549, %cst_182 {dimension_numbers = #tpu.dot_dimension_numbers<[1], [0], [0], [1], [0, 0, 1, 1], [], []>} : vector<16x128xbf16>, vector<128x32xbf16>, vector<16x32xf32> -> vector<16x32xf32>
    %552 = arith.addf %505, %551 : vector<16x32xf32>
    %c1_183 = arith.constant 1 : index
    %c0_184 = arith.constant 0 : index
    %c0_185 = arith.constant 0 : index
    %553 = vector.load %arg12[%c1_183, %c0_184, %c0_185] : memref<2x1x32xf32, #tpu.memory_space<vmem>>, vector<1x1x32xf32>
    %554 = vector.shape_cast %553 : vector<1x1x32xf32> to vector<1x32xf32>
    %555 = vector.broadcast %554 : vector<1x32xf32> to vector<16x32xf32>
    %556 = arith.addf %552, %555 : vector<16x32xf32>
    %c0_186 = arith.constant 0 : index
    %c0_187 = arith.constant 0 : index
    %c0_188 = arith.constant 0 : index
    %557 = vector.load %arg15[%c0_186, %c0_187, %c0_188] : memref<2x1x32xf32, #tpu.memory_space<vmem>>, vector<1x1x32xf32>
    %558 = vector.shape_cast %557 : vector<1x1x32xf32> to vector<1x32xf32>
    %c0_189 = arith.constant 0 : index
    %c0_190 = arith.constant 0 : index
    %c0_191 = arith.constant 0 : index
    %559 = vector.load %arg16[%c0_189, %c0_190, %c0_191] : memref<2x1x32xf32, #tpu.memory_space<vmem>>, vector<1x1x32xf32>
    %560 = vector.shape_cast %559 : vector<1x1x32xf32> to vector<1x32xf32>
    %cst_192 = arith.constant dense<0.000000e+00> : vector<16xf32>
    %561 = vector.multi_reduction <add>, %556, %cst_192 [1] : vector<16x32xf32> to vector<16xf32>
    %562 = vector.shape_cast %561 : vector<16xf32> to vector<16x1xf32>
    %cst_193 = arith.constant 3.200000e+01 : f32
    %563 = vector.broadcast %cst_193 : f32 to vector<16x1xf32>
    %564 = arith.divf %562, %563 : vector<16x1xf32>
    %565 = vector.broadcast %564 : vector<16x1xf32> to vector<16x32xf32>
    %566 = arith.subf %556, %565 : vector<16x32xf32>
    %567 = arith.mulf %566, %566 : vector<16x32xf32>
    %cst_194 = arith.constant dense<0.000000e+00> : vector<16xf32>
    %568 = vector.multi_reduction <add>, %567, %cst_194 [1] : vector<16x32xf32> to vector<16xf32>
    %569 = vector.shape_cast %568 : vector<16xf32> to vector<16x1xf32>
    %cst_195 = arith.constant 3.200000e+01 : f32
    %570 = vector.broadcast %cst_195 : f32 to vector<16x1xf32>
    %571 = arith.divf %569, %570 : vector<16x1xf32>
    %572 = vector.broadcast %564 : vector<16x1xf32> to vector<16x32xf32>
    %573 = arith.subf %556, %572 : vector<16x32xf32>
    %cst_196 = arith.constant 9.99999974E-6 : f32
    %574 = vector.broadcast %cst_196 : f32 to vector<16x1xf32>
    %575 = arith.addf %571, %574 : vector<16x1xf32>
    %576 = math.rsqrt %575 : vector<16x1xf32>
    %577 = vector.broadcast %576 : vector<16x1xf32> to vector<16x32xf32>
    %578 = arith.mulf %573, %577 : vector<16x32xf32>
    %579 = vector.broadcast %558 : vector<1x32xf32> to vector<16x32xf32>
    %580 = arith.mulf %578, %579 : vector<16x32xf32>
    %581 = vector.broadcast %560 : vector<1x32xf32> to vector<16x32xf32>
    %582 = arith.addf %580, %581 : vector<16x32xf32>
    %c0_197 = arith.constant 0 : index
    %c0_198 = arith.constant 0 : index
    %c0_199 = arith.constant 0 : index
    %583 = vector.load %arg13[%c0_197, %c0_198, %c0_199] : memref<2x32x32xbf16, #tpu.memory_space<vmem>>, vector<1x32x32xbf16>
    %584 = vector.shape_cast %583 : vector<1x32x32xbf16> to vector<32x32xbf16>
    %585 = arith.truncf %582 : vector<16x32xf32> to vector<16x32xbf16>
    %cst_200 = arith.constant dense<0.000000e+00> : vector<16x32xf32>
    %586 = tpu.matmul %585, %584, %cst_200 {dimension_numbers = #tpu.dot_dimension_numbers<[1], [0], [0], [1], [0, 0, 1, 1], [], []>} : vector<16x32xbf16>, vector<32x32xbf16>, vector<16x32xf32> -> vector<16x32xf32>
    %c0_201 = arith.constant 0 : index
    %c0_202 = arith.constant 0 : index
    %c0_203 = arith.constant 0 : index
    %587 = vector.load %arg14[%c0_201, %c0_202, %c0_203] : memref<2x1x32xf32, #tpu.memory_space<vmem>>, vector<1x1x32xf32>
    %588 = vector.shape_cast %587 : vector<1x1x32xf32> to vector<1x32xf32>
    %589 = vector.broadcast %588 : vector<1x32xf32> to vector<16x32xf32>
    %590 = arith.addf %586, %589 : vector<16x32xf32>
    %cst_204 = arith.constant 5.000000e-01 : f32
    %591 = vector.broadcast %cst_204 : f32 to vector<16x32xf32>
    %592 = arith.mulf %591, %590 : vector<16x32xf32>
    %cst_205 = arith.constant 0.707106769 : f32
    %593 = vector.broadcast %cst_205 : f32 to vector<16x32xf32>
    %594 = arith.mulf %590, %593 : vector<16x32xf32>
    %595 = math.erf %594 : vector<16x32xf32>
    %cst_206 = arith.constant 1.000000e+00 : f32
    %596 = vector.broadcast %cst_206 : f32 to vector<16x32xf32>
    %597 = arith.addf %596, %595 : vector<16x32xf32>
    %598 = arith.mulf %592, %597 : vector<16x32xf32>
    %c1_207 = arith.constant 1 : index
    %c0_208 = arith.constant 0 : index
    %c0_209 = arith.constant 0 : index
    %599 = vector.load %arg13[%c1_207, %c0_208, %c0_209] : memref<2x32x32xbf16, #tpu.memory_space<vmem>>, vector<1x32x32xbf16>
    %600 = vector.shape_cast %599 : vector<1x32x32xbf16> to vector<32x32xbf16>
    %601 = arith.truncf %598 : vector<16x32xf32> to vector<16x32xbf16>
    %cst_210 = arith.constant dense<0.000000e+00> : vector<16x32xf32>
    %602 = tpu.matmul %601, %600, %cst_210 {dimension_numbers = #tpu.dot_dimension_numbers<[1], [0], [0], [1], [0, 0, 1, 1], [], []>} : vector<16x32xbf16>, vector<32x32xbf16>, vector<16x32xf32> -> vector<16x32xf32>
    %c1_211 = arith.constant 1 : index
    %c0_212 = arith.constant 0 : index
    %c0_213 = arith.constant 0 : index
    %603 = vector.load %arg14[%c1_211, %c0_212, %c0_213] : memref<2x1x32xf32, #tpu.memory_space<vmem>>, vector<1x1x32xf32>
    %604 = vector.shape_cast %603 : vector<1x1x32xf32> to vector<1x32xf32>
    %605 = vector.broadcast %604 : vector<1x32xf32> to vector<16x32xf32>
    %606 = arith.addf %602, %605 : vector<16x32xf32>
    %c1_214 = arith.constant 1 : index
    %c0_215 = arith.constant 0 : index
    %c0_216 = arith.constant 0 : index
    %607 = vector.load %arg15[%c1_214, %c0_215, %c0_216] : memref<2x1x32xf32, #tpu.memory_space<vmem>>, vector<1x1x32xf32>
    %608 = vector.shape_cast %607 : vector<1x1x32xf32> to vector<1x32xf32>
    %c1_217 = arith.constant 1 : index
    %c0_218 = arith.constant 0 : index
    %c0_219 = arith.constant 0 : index
    %609 = vector.load %arg16[%c1_217, %c0_218, %c0_219] : memref<2x1x32xf32, #tpu.memory_space<vmem>>, vector<1x1x32xf32>
    %610 = vector.shape_cast %609 : vector<1x1x32xf32> to vector<1x32xf32>
    %cst_220 = arith.constant dense<0.000000e+00> : vector<16xf32>
    %611 = vector.multi_reduction <add>, %606, %cst_220 [1] : vector<16x32xf32> to vector<16xf32>
    %612 = vector.shape_cast %611 : vector<16xf32> to vector<16x1xf32>
    %cst_221 = arith.constant 3.200000e+01 : f32
    %613 = vector.broadcast %cst_221 : f32 to vector<16x1xf32>
    %614 = arith.divf %612, %613 : vector<16x1xf32>
    %615 = vector.broadcast %614 : vector<16x1xf32> to vector<16x32xf32>
    %616 = arith.subf %606, %615 : vector<16x32xf32>
    %617 = arith.mulf %616, %616 : vector<16x32xf32>
    %cst_222 = arith.constant dense<0.000000e+00> : vector<16xf32>
    %618 = vector.multi_reduction <add>, %617, %cst_222 [1] : vector<16x32xf32> to vector<16xf32>
    %619 = vector.shape_cast %618 : vector<16xf32> to vector<16x1xf32>
    %cst_223 = arith.constant 3.200000e+01 : f32
    %620 = vector.broadcast %cst_223 : f32 to vector<16x1xf32>
    %621 = arith.divf %619, %620 : vector<16x1xf32>
    %622 = vector.broadcast %614 : vector<16x1xf32> to vector<16x32xf32>
    %623 = arith.subf %606, %622 : vector<16x32xf32>
    %cst_224 = arith.constant 9.99999974E-6 : f32
    %624 = vector.broadcast %cst_224 : f32 to vector<16x1xf32>
    %625 = arith.addf %621, %624 : vector<16x1xf32>
    %626 = math.rsqrt %625 : vector<16x1xf32>
    %627 = vector.broadcast %626 : vector<16x1xf32> to vector<16x32xf32>
    %628 = arith.mulf %623, %627 : vector<16x32xf32>
    %629 = vector.broadcast %608 : vector<1x32xf32> to vector<16x32xf32>
    %630 = arith.mulf %628, %629 : vector<16x32xf32>
    %631 = vector.broadcast %610 : vector<1x32xf32> to vector<16x32xf32>
    %632 = arith.addf %630, %631 : vector<16x32xf32>
    %c0_225 = arith.constant 0 : index
    %c0_226 = arith.constant 0 : index
    %633 = vector.load %arg17[%c0_225, %c0_226] : memref<16x32xf32, #tpu.memory_space<vmem>>, vector<16x32xf32>
    tpu.vector_store %arg17[%c0_225, %c0_226], %632 {strides = array<i32>} : memref<16x32xf32, #tpu.memory_space<vmem>>, vector<16x32xf32>,
    return
  }
}

</mosaic_0001>

<llo_original>
// kernel: qformer_forward.1
$region0: #{qformer_forward.1}
  #allocation0 [shape = 'u32[]', space=smem, size = 0x4, offset = 0x4, fixed_abs, tag = 'smem constant byte address 0x4 - core index']
  #allocation1 [shape = 'u32[144,128]{1,0:T(1,128)}', space=vmem, size = 0x12000, scoped, tag = 'internal scratch']
  %s0 = inlined_call_operand.vmem [shape: f32[16,32], index: 0, kind: input, shape index: {}]
  %s1 = inlined_call_operand.vmem [shape: f32[32,32], index: 1, kind: input, shape index: {}]
  %s2 = inlined_call_operand.vmem [shape: f32[64,16], index: 2, kind: input, shape index: {}]
  %s3 = inlined_call_operand.vmem [shape: bf16[4,32,96], index: 3, kind: input, shape index: {}]
  %s4 = inlined_call_operand.vmem [shape: f32[4,1,96], index: 4, kind: input, shape index: {}]
  %s5 = inlined_call_operand.vmem [shape: bf16[4,32,32], index: 5, kind: input, shape index: {}]
  %s6 = inlined_call_operand.vmem [shape: f32[4,1,32], index: 6, kind: input, shape index: {}]
  %s7 = inlined_call_operand.vmem [shape: f32[6,1,32], index: 7, kind: input, shape index: {}]
  %s8 = inlined_call_operand.vmem [shape: f32[6,1,32], index: 8, kind: input, shape index: {}]
  %s9 = inlined_call_operand.vmem [shape: bf16[2,32,128], index: 9, kind: input, shape index: {}]
  %s10 = inlined_call_operand.vmem [shape: f32[2,1,128], index: 10, kind: input, shape index: {}]
  %s11 = inlined_call_operand.vmem [shape: bf16[2,128,32], index: 11, kind: input, shape index: {}]
  %s12 = inlined_call_operand.vmem [shape: f32[2,1,32], index: 12, kind: input, shape index: {}]
  %s13 = inlined_call_operand.vmem [shape: bf16[2,32,32], index: 13, kind: input, shape index: {}]
  %s14 = inlined_call_operand.vmem [shape: f32[2,1,32], index: 14, kind: input, shape index: {}]
  %s15 = inlined_call_operand.vmem [shape: f32[2,1,32], index: 15, kind: input, shape index: {}]
  %s16 = inlined_call_operand.vmem [shape: f32[2,1,32], index: 16, kind: input, shape index: {}]
  %s17 = inlined_call_operand.hbm [shape: f32[16,32], index: 17, kind: output, shape index: {}]
  %s18 = sld [smem:[#allocation0]]
  $region78: #{qformer_forward.1} parent=0
    _
  %s20 = ssub.s32 1, %s18
  %s21 = scalar_select 0, %s20, %s18
  $region1: #{qformer_forward.1} parent=0
    #allocation2 [shape = 'u8[8192]{0}', space=vmem, size = 0x2000, scoped, tag = 'output window, operand 0, single buffered']
    #allocation3 [shape = 's32[1]{0}', space=sflag, size = 0x4, scoped, tag = 'scoped memory for qformer_forward.1']
    %22 = vsyncpa [#allocation3], 0
    // Predicated region
    $region2: #{qformer_forward.1} parent=1 // pred_check
      _
    $region3: #{qformer_forward.1} parent=1 // pred_check_branch
      %24 = sbr.rel (0) target = $region5
    $region4: #{qformer_forward.1} parent=1 // pred_region
      _
    $region5: #{qformer_forward.1} parent=1 // pred_fallthru
      _
    // Predicated region
    $region6: #{qformer_forward.1} parent=1 // pred_check
      _
    $region7: #{qformer_forward.1} parent=1 // pred_check_branch
      %26 = sbr.rel (0) target = $region9
    $region8: #{qformer_forward.1} parent=1 // pred_region
      _
    $region9: #{qformer_forward.1} parent=1 // pred_fallthru
      _
    // Predicated region
    $region10: #{qformer_forward.1} parent=1 // pred_check
      _
    $region11: #{qformer_forward.1} parent=1 // pred_check_branch
      %28 = sbr.rel (0) target = $region13
    $region12: #{qformer_forward.1} parent=1 // pred_region
      _
    $region13: #{qformer_forward.1} parent=1 // pred_fallthru
      _
    // Predicated region
    $region14: #{qformer_forward.1} parent=1 // pred_check
      _
    $region15: #{qformer_forward.1} parent=1 // pred_check_branch
      %30 = sbr.rel (0) target = $region17
    $region16: #{qformer_forward.1} parent=1 // pred_region
      _
    $region17: #{qformer_forward.1} parent=1 // pred_fallthru
      _
    // Predicated region
    $region18: #{qformer_forward.1} parent=1 // pred_check
      _
    $region19: #{qformer_forward.1} parent=1 // pred_check_branch
      %32 = sbr.rel (0) target = $region21
    $region20: #{qformer_forward.1} parent=1 // pred_region
      _
    $region21: #{qformer_forward.1} parent=1 // pred_fallthru
      _
    // Predicated region
    $region22: #{qformer_forward.1} parent=1 // pred_check
      _
    $region23: #{qformer_forward.1} parent=1 // pred_check_branch
      %34 = sbr.rel (0) target = $region25
    $region24: #{qformer_forward.1} parent=1 // pred_region
      _
    $region25: #{qformer_forward.1} parent=1 // pred_fallthru
      _
    // Predicated region
    $region26: #{qformer_forward.1} parent=1 // pred_check
      _
    $region27: #{qformer_forward.1} parent=1 // pred_check_branch
      %36 = sbr.rel (0) target = $region29
    $region28: #{qformer_forward.1} parent=1 // pred_region
      _
    $region29: #{qformer_forward.1} parent=1 // pred_fallthru
      _
    // Predicated region
    $region30: #{qformer_forward.1} parent=1 // pred_check
      _
    $region31: #{qformer_forward.1} parent=1 // pred_check_branch
      %38 = sbr.rel (0) target = $region33
    $region32: #{qformer_forward.1} parent=1 // pred_region
      _
    $region33: #{qformer_forward.1} parent=1 // pred_fallthru
      _
    // Predicated region
    $region34: #{qformer_forward.1} parent=1 // pred_check
      _
    $region35: #{qformer_forward.1} parent=1 // pred_check_branch
      %40 = sbr.rel (0) target = $region37
    $region36: #{qformer_forward.1} parent=1 // pred_region
      _
    $region37: #{qformer_forward.1} parent=1 // pred_fallthru
      _
    // Predicated region
    $region38: #{qformer_forward.1} parent=1 // pred_check
      _
    $region39: #{qformer_forward.1} parent=1 // pred_check_branch
      %42 = sbr.rel (0) target = $region41
    $region40: #{qformer_forward.1} parent=1 // pred_region
      _
    $region41: #{qformer_forward.1} parent=1 // pred_fallthru
      _
    // Predicated region
    $region42: #{qformer_forward.1} parent=1 // pred_check
      _
    $region43: #{qformer_forward.1} parent=1 // pred_check_branch
      %44 = sbr.rel (0) target = $region45
    $region44: #{qformer_forward.1} parent=1 // pred_region
      _
    $region45: #{qformer_forward.1} parent=1 // pred_fallthru
      _
    // Predicated region
    $region46: #{qformer_forward.1} parent=1 // pred_check
      _
    $region47: #{qformer_forward.1} parent=1 // pred_check_branch
      %46 = sbr.rel (0) target = $region49
    $region48: #{qformer_forward.1} parent=1 // pred_region
      _
    $region49: #{qformer_forward.1} parent=1 // pred_fallthru
      _
    // Predicated region
    $region50: #{qformer_forward.1} parent=1 // pred_check
      _
    $region51: #{qformer_forward.1} parent=1 // pred_check_branch
      %48 = sbr.rel (0) target = $region53
    $region52: #{qformer_forward.1} parent=1 // pred_region
      _
    $region53: #{qformer_forward.1} parent=1 // pred_fallthru
      _
    // Predicated region
    $region54: #{qformer_forward.1} parent=1 // pred_check
      _
    $region55: #{qformer_forward.1} parent=1 // pred_check_branch
      %50 = sbr.rel (0) target = $region57
    $region56: #{qformer_forward.1} parent=1 // pred_region
      _
    $region57: #{qformer_forward.1} parent=1 // pred_fallthru
      _
    // Predicated region
    $region58: #{qformer_forward.1} parent=1 // pred_check
      _
    $region59: #{qformer_forward.1} parent=1 // pred_check_branch
      %52 = sbr.rel (0) target = $region61
    $region60: #{qformer_forward.1} parent=1 // pred_region
      _
    $region61: #{qformer_forward.1} parent=1 // pred_fallthru
      _
    // Predicated region
    $region62: #{qformer_forward.1} parent=1 // pred_check
      _
    $region63: #{qformer_forward.1} parent=1 // pred_check_branch
      %54 = sbr.rel (0) target = $region65
    $region64: #{qformer_forward.1} parent=1 // pred_region
      _
    $region65: #{qformer_forward.1} parent=1 // pred_fallthru
      _
    // Predicated region
    $region66: #{qformer_forward.1} parent=1 // pred_check
      _
    $region67: #{qformer_forward.1} parent=1 // pred_check_branch
      %56 = sbr.rel (0) target = $region69
    $region68: #{qformer_forward.1} parent=1 // pred_region
      _
    $region69: #{qformer_forward.1} parent=1 // pred_fallthru
      _
    %v58 = vld [vmem:[%s0] sm:$0xff]
    %v59 = vld [vmem:[%s0 + $0x8] sm:$0xff]
    %v60 = vld [vmem:[%s1] sm:$0xff]
    %v61 = vld [vmem:[%s1 + $0x8] sm:$0xff]
    %v62 = vld [vmem:[%s1 + $0x10] sm:$0xff]
    %v63 = vld [vmem:[%s1 + $0x18] sm:$0xff]
    %v64 = vld [vmem:[%s7] sm:$0x1]
    %v65 = vld [vmem:[%s8] sm:$0x1]
    %vm66 = vcmask 261120
    %v67 = vsel %vm66, %v58, 0.0
    %68 = vadd.xlane.f32.xlu0 %v67
    %v69 = vpop.xlane.xlu0 %68
    %v70 = vsel %vm66, %v59, 0.0
    %71 = vadd.xlane.f32.xlu0 %v70
    %v72 = vpop.xlane.xlu0 %71
    %v73 = vrcp.pop 32.0
    %v74 = vmul.f32 %v69, %v73
    %v75 = vmul.f32 %v72, %v73
    %v76 = vsub.f32 %v58, %v74
    %v77 = vsub.f32 %v59, %v75
    %v78 = vmul.f32 %v76, %v76
    %v79 = vmul.f32 %v77, %v77
    %v80 = vsel %vm66, %v78, 0.0
    %81 = vadd.xlane.f32.xlu0 %v80
    %v82 = vpop.xlane.xlu0 %81
    %v83 = vsel %vm66, %v79, 0.0
    %84 = vadd.xlane.f32.xlu0 %v83
    %v85 = vpop.xlane.xlu0 %84
    %v86 = vmul.f32 %v82, %v73
    %v87 = vmul.f32 %v85, %v73
    %v88 = vadd.f32 %v86, 1e-05
    %v89 = vadd.f32 %v87, 1e-05
    %v90 = vrsqrt.pop %v88
    %v91 = vrsqrt.pop %v89
    %v92 = vmul.f32 %v76, %v90
    %v93 = vmul.f32 %v77, %v91
    %v95 = vlaneseq
    %v96 = vshrl.u32 %v95, 7
    %v97 = vsub.s32 0, %v96
    %v98 = vrot.slane %v64, %v97
    %v100 = vmul.f32 %v92, %v98
    %v101 = vmul.f32 %v93, %v98
    %v103 = vlaneseq
    %v104 = vshrl.u32 %v103, 7
    %v105 = vsub.s32 0, %v104
    %v106 = vrot.slane %v65, %v105
    %v108 = vadd.f32 %v100, %v106
    %v109 = vadd.f32 %v101, %v106
    %v110 = vld [vmem:[%s3] sm:$0xf]
    %v111 = vld [vmem:[%s3 + $0x4] sm:$0xf]
    %v112 = vld [vmem:[%s3 + $0x8] sm:$0xf]
    %v113 = vld [vmem:[%s3 + $0xc] sm:$0xf]
    %v114 = vld [vmem:[%s4] sm:$0x1]
    %v115 = vpack.c.bf16 %v109, %v108
    %v117 = vlaneseq
    %v118 = vshrl.u32 %v117, 7
    %v119 = vsub.s32 0, %v118
    %v120 = vrot.slane %v114, %v119
    %v126 = vunpack.c.l.b16 %v110
    %v127 = vunpack.c.l.b16 %v111
    %v128 = vunpack.c.l.b16 %v112
    %v129 = vunpack.c.l.b16 %v113
    %v130 = vpack.c.b16 %v127, %v126
    %v131 = vpack.c.b16 %v129, %v128
    %v135 = vsel %vm66, %v115, 0
    %137 = vmatprep.subr.bf16.mxu0 0
    %138 = vmatpush1.bf16.msra.mxu0 %v130
    %139 = vmatprep.subr.bf16.mxu0 0
    %140 = vmatpush1.bf16.msra.mxu0 %v131
    %141 = vmatprep.subr.bf16.mxu0 0
    %142 = vmatpush1.bf16.msra.mxu0 0
    %143 = vmatprep.subr.bf16.mxu0 0
    %144 = vmatpush1.bf16.msra.mxu0 0
    %145 = vmatprep.subr.bf16.mxu0 0
    %146 = vmatpush1.bf16.msra.mxu0 0
    %147 = vmatprep.subr.bf16.mxu0 0
    %148 = vmatpush1.bf16.msra.mxu0 0
    %149 = vmatprep.subr.bf16.mxu0 0
    %150 = vmatpush1.bf16.msra.mxu0 0
    %151 = vmatprep.subr.bf16.mxu0 0
    %152 = vmatpush1.bf16.msra.mxu0 0
    %153 = vmatprep.subr.bf16.mxu0 0
    %154 = vmatpush1.bf16.msra.mxu0 0
    %155 = vmatprep.subr.bf16.mxu0 0
    %156 = vmatpush1.bf16.msra.mxu0 0
    %157 = vmatprep.subr.bf16.mxu0 0
    %158 = vmatpush1.bf16.msra.mxu0 0
    %159 = vmatprep.subr.bf16.mxu0 0
    %160 = vmatpush1.bf16.msra.mxu0 0
    %161 = vmatprep.subr.bf16.mxu0 0
    %162 = vmatpush1.bf16.msra.mxu0 0
    %163 = vmatprep.subr.bf16.mxu0 0
    %164 = vmatpush1.bf16.msra.mxu0 0
    %165 = vmatprep.subr.bf16.mxu0 0
    %166 = vmatpush1.bf16.msra.mxu0 0
    %167 = vmatprep.subr.bf16.mxu0 0
    %168 = vmatpush1.bf16.msra.mxu0 0
    %169 = vmatprep.mubr.bf16.mxu0 0
    %170 = vmatmul.mubr.bf16.gmra.mrb[0].mxu0 %v135
    %v171 = vpop.f32.mrb[0].mxu0
    %v172 = vadd.f32 %v120, %v171
    %v173 = vpop.f32.mrb[0].mxu0
    %v174 = vpop.f32.mrb[0].mxu0
    %v175 = vadd.f32 %v120, %v174
    %v176 = vpop.f32.mrb[0].mxu0
    %177 = vdwg.mxu0
    %179 = vrot.lane.b32.xlu0 %v172, 96
    %v180 = vpop.permute.xlu0 %179
    %182 = vxpose.xlu0.b32.start [1/16] %v180, 128
    %183 = vxpose.xlu0.b32.cont [2/16] 0.0, 128
    %184 = vxpose.xlu0.b32.cont [3/16] 0.0, 128
    %185 = vxpose.xlu0.b32.cont [4/16] 0.0, 128
    %186 = vxpose.xlu0.b32.cont [5/16] 0.0, 128
    %187 = vxpose.xlu0.b32.cont [6/16] 0.0, 128
    %188 = vxpose.xlu0.b32.cont [7/16] 0.0, 128
    %189 = vxpose.xlu0.b32.cont [8/16] 0.0, 128
    %190 = vxpose.xlu0.b32.cont [9/16] 0.0, 128
    %191 = vxpose.xlu0.b32.cont [10/16] 0.0, 128
    %192 = vxpose.xlu0.b32.cont [11/16] 0.0, 128
    %193 = vxpose.xlu0.b32.cont [12/16] 0.0, 128
    %194 = vxpose.xlu0.b32.cont [13/16] 0.0, 128
    %195 = vxpose.xlu0.b32.cont [14/16] 0.0, 128
    %196 = vxpose.xlu0.b32.cont [15/16] 0.0, 128
    %197 = vxpose.xlu0.b32.end [16/16] 0.0, 128
    %v198 = vpop.trf.xlu0
    %v199 = vpop.trf.xlu0
    %v200 = vpop.trf.xlu0
    %v201 = vpop.trf.xlu0
    %v202 = vpop.trf.xlu0
    %v203 = vpop.trf.xlu0
    %v204 = vpop.trf.xlu0
    %v205 = vpop.trf.xlu0
    %v206 = vpop.trf.xlu0
    %v207 = vpop.trf.xlu0
    %v208 = vpop.trf.xlu0
    %v209 = vpop.trf.xlu0
    %v210 = vpop.trf.xlu0
    %v211 = vpop.trf.xlu0
    %v212 = vpop.trf.xlu0
    %v213 = vpop.trf.xlu0
    %v214 = vpack.c.bf16 %v172, %v172
    %v215 = vpack.c.bf16 %v198, %v198
    %vm216 = vcmask 64512
    %v218 = vsel %vm216, %v214, 0
    %vm220 = vcmask 1043456
    %v222 = vsel %vm220, %v215, 0
    %224 = vmatprep.subr.bf16.mxu0 0
    %225 = vmatpush1.bf16.msra.mxu0 %v222
    %226 = vmatprep.subr.bf16.mxu0 0
    %227 = vmatpush1.bf16.msra.mxu0 0
    %228 = vmatprep.subr.bf16.mxu0 0
    %229 = vmatpush1.bf16.msra.mxu0 0
    %230 = vmatprep.subr.bf16.mxu0 0
    %231 = vmatpush1.bf16.msra.mxu0 0
    %232 = vmatprep.subr.bf16.mxu0 0
    %233 = vmatpush1.bf16.msra.mxu0 0
    %234 = vmatprep.subr.bf16.mxu0 0
    %235 = vmatpush1.bf16.msra.mxu0 0
    %236 = vmatprep.subr.bf16.mxu0 0
    %237 = vmatpush1.bf16.msra.mxu0 0
    %238 = vmatprep.subr.bf16.mxu0 0
    %239 = vmatpush1.bf16.msra.mxu0 0
    %240 = vmatprep.subr.bf16.mxu0 0
    %241 = vmatpush1.bf16.msra.mxu0 0
    %242 = vmatprep.subr.bf16.mxu0 0
    %243 = vmatpush1.bf16.msra.mxu0 0
    %244 = vmatprep.subr.bf16.mxu0 0
    %245 = vmatpush1.bf16.msra.mxu0 0
    %246 = vmatprep.subr.bf16.mxu0 0
    %247 = vmatpush1.bf16.msra.mxu0 0
    %248 = vmatprep.subr.bf16.mxu0 0
    %249 = vmatpush1.bf16.msra.mxu0 0
    %250 = vmatprep.subr.bf16.mxu0 0
    %251 = vmatpush1.bf16.msra.mxu0 0
    %252 = vmatprep.subr.bf16.mxu0 0
    %253 = vmatpush1.bf16.msra.mxu0 0
    %254 = vmatprep.subr.bf16.mxu0 0
    %255 = vmatpush1.bf16.msra.mxu0 0
    %256 = vmatprep.mubr.bf16.mxu0 0
    %257 = vmatmul.mubr.bf16.gmra.mrb[0].mxu0 %v218
    %v258 = vpop.f32.mrb[0].mxu0
    %v259 = vadd.f32 0.0, %v258
    %v260 = vpop.f32.mrb[0].mxu0
    %v261 = vpop.f32.mrb[0].mxu0
    %v262 = vpop.f32.mrb[0].mxu0
    %263 = vdwg.mxu0
    %v264 = vpack.c.bf16 %v199, %v199
    %266 = vrot.lane.b32.xlu0 %v214, 120
    %v267 = vpop.permute.xlu0 %266
    %v269 = vsel %vm216, %v267, 0
    %v272 = vsel %vm220, %v264, 0
    %274 = vmatprep.subr.bf16.mxu0 0
    %275 = vmatpush1.bf16.msra.mxu0 %v272
    %276 = vmatprep.subr.bf16.mxu0 0
    %277 = vmatpush1.bf16.msra.mxu0 0
    %278 = vmatprep.subr.bf16.mxu0 0
    %279 = vmatpush1.bf16.msra.mxu0 0
    %280 = vmatprep.subr.bf16.mxu0 0
    %281 = vmatpush1.bf16.msra.mxu0 0
    %282 = vmatprep.subr.bf16.mxu0 0
    %283 = vmatpush1.bf16.msra.mxu0 0
    %284 = vmatprep.subr.bf16.mxu0 0
    %285 = vmatpush1.bf16.msra.mxu0 0
    %286 = vmatprep.subr.bf16.mxu0 0
    %287 = vmatpush1.bf16.msra.mxu0 0
    %288 = vmatprep.subr.bf16.mxu0 0
    %289 = vmatpush1.bf16.msra.mxu0 0
    %290 = vmatprep.subr.bf16.mxu0 0
    %291 = vmatpush1.bf16.msra.mxu0 0
    %292 = vmatprep.subr.bf16.mxu0 0
    %293 = vmatpush1.bf16.msra.mxu0 0
    %294 = vmatprep.subr.bf16.mxu0 0
    %295 = vmatpush1.bf16.msra.mxu0 0
    %296 = vmatprep.subr.bf16.mxu0 0
    %297 = vmatpush1.bf16.msra.mxu0 0
    %298 = vmatprep.subr.bf16.mxu0 0
    %299 = vmatpush1.bf16.msra.mxu0 0
    %300 = vmatprep.subr.bf16.mxu0 0
    %301 = vmatpush1.bf16.msra.mxu0 0
    %302 = vmatprep.subr.bf16.mxu0 0
    %303 = vmatpush1.bf16.msra.mxu0 0
    %304 = vmatprep.subr.bf16.mxu0 0
    %305 = vmatpush1.bf16.msra.mxu0 0
    %306 = vmatprep.mubr.bf16.mxu0 0
    %307 = vmatmul.mubr.bf16.gmra.mrb[0].mxu0 %v269
    %v308 = vpop.f32.mrb[0].mxu0
    %v309 = vadd.f32 0.0, %v308
    %v310 = vpop.f32.mrb[0].mxu0
    %v311 = vpop.f32.mrb[0].mxu0
    %v312 = vpop.f32.mrb[0].mxu0
    %313 = vdwg.mxu0
    %v314 = vpack.c.bf16 %v200, %v200
    %315 = vrot.lane.b32.xlu0 %v214, 112
    %v316 = vpop.permute.xlu0 %315
    %v318 = vsel %vm216, %v316, 0
    %v321 = vsel %vm220, %v314, 0
    %323 = vmatprep.subr.bf16.mxu0 0
    %324 = vmatpush1.bf16.msra.mxu0 %v321
    %325 = vmatprep.subr.bf16.mxu0 0
    %326 = vmatpush1.bf16.msra.mxu0 0
    %327 = vmatprep.subr.bf16.mxu0 0
    %328 = vmatpush1.bf16.msra.mxu0 0
    %329 = vmatprep.subr.bf16.mxu0 0
    %330 = vmatpush1.bf16.msra.mxu0 0
    %331 = vmatprep.subr.bf16.mxu0 0
    %332 = vmatpush1.bf16.msra.mxu0 0
    %333 = vmatprep.subr.bf16.mxu0 0
    %334 = vmatpush1.bf16.msra.mxu0 0
    %335 = vmatprep.subr.bf16.mxu0 0
    %336 = vmatpush1.bf16.msra.mxu0 0
    %337 = vmatprep.subr.bf16.mxu0 0
    %338 = vmatpush1.bf16.msra.mxu0 0
    %339 = vmatprep.subr.bf16.mxu0 0
    %340 = vmatpush1.bf16.msra.mxu0 0
    %341 = vmatprep.subr.bf16.mxu0 0
    %342 = vmatpush1.bf16.msra.mxu0 0
    %343 = vmatprep.subr.bf16.mxu0 0
    %344 = vmatpush1.bf16.msra.mxu0 0
    %345 = vmatprep.subr.bf16.mxu0 0
    %346 = vmatpush1.bf16.msra.mxu0 0
    %347 = vmatprep.subr.bf16.mxu0 0
    %348 = vmatpush1.bf16.msra.mxu0 0
    %349 = vmatprep.subr.bf16.mxu0 0
    %350 = vmatpush1.bf16.msra.mxu0 0
    %351 = vmatprep.subr.bf16.mxu0 0
    %352 = vmatpush1.bf16.msra.mxu0 0
    %353 = vmatprep.subr.bf16.mxu0 0
    %354 = vmatpush1.bf16.msra.mxu0 0
    %355 = vmatprep.mubr.bf16.mxu0 0
    %356 = vmatmul.mubr.bf16.gmra.mrb[0].mxu0 %v318
    %v357 = vpop.f32.mrb[0].mxu0
    %v358 = vadd.f32 0.0, %v357
    %v359 = vpop.f32.mrb[0].mxu0
    %v360 = vpop.f32.mrb[0].mxu0
    %v361 = vpop.f32.mrb[0].mxu0
    %362 = vdwg.mxu0
    %v363 = vpack.c.bf16 %v201, %v201
    %364 = vrot.lane.b32.xlu0 %v214, 104
    %v365 = vpop.permute.xlu0 %364
    %v367 = vsel %vm216, %v365, 0
    %v370 = vsel %vm220, %v363, 0
    %372 = vmatprep.subr.bf16.mxu0 0
    %373 = vmatpush1.bf16.msra.mxu0 %v370
    %374 = vmatprep.subr.bf16.mxu0 0
    %375 = vmatpush1.bf16.msra.mxu0 0
    %376 = vmatprep.subr.bf16.mxu0 0
    %377 = vmatpush1.bf16.msra.mxu0 0
    %378 = vmatprep.subr.bf16.mxu0 0
    %379 = vmatpush1.bf16.msra.mxu0 0
    %380 = vmatprep.subr.bf16.mxu0 0
    %381 = vmatpush1.bf16.msra.mxu0 0
    %382 = vmatprep.subr.bf16.mxu0 0
    %383 = vmatpush1.bf16.msra.mxu0 0
    %384 = vmatprep.subr.bf16.mxu0 0
    %385 = vmatpush1.bf16.msra.mxu0 0
    %386 = vmatprep.subr.bf16.mxu0 0
    %387 = vmatpush1.bf16.msra.mxu0 0
    %388 = vmatprep.subr.bf16.mxu0 0
    %389 = vmatpush1.bf16.msra.mxu0 0
    %390 = vmatprep.subr.bf16.mxu0 0
    %391 = vmatpush1.bf16.msra.mxu0 0
    %392 = vmatprep.subr.bf16.mxu0 0
    %393 = vmatpush1.bf16.msra.mxu0 0
    %394 = vmatprep.subr.bf16.mxu0 0
    %395 = vmatpush1.bf16.msra.mxu0 0
    %396 = vmatprep.subr.bf16.mxu0 0
    %397 = vmatpush1.bf16.msra.mxu0 0
    %398 = vmatprep.subr.bf16.mxu0 0
    %399 = vmatpush1.bf16.msra.mxu0 0
    %400 = vmatprep.subr.bf16.mxu0 0
    %401 = vmatpush1.bf16.msra.mxu0 0
    %402 = vmatprep.subr.bf16.mxu0 0
    %403 = vmatpush1.bf16.msra.mxu0 0
    %404 = vmatprep.mubr.bf16.mxu0 0
    %405 = vmatmul.mubr.bf16.gmra.mrb[0].mxu0 %v367
    %v406 = vpop.f32.mrb[0].mxu0
    %v407 = vadd.f32 0.0, %v406
    %v408 = vpop.f32.mrb[0].mxu0
    %v409 = vpop.f32.mrb[0].mxu0
    %v410 = vpop.f32.mrb[0].mxu0
    %411 = vdwg.mxu0
    %413 = vrot.lane.b32.xlu0 %v175, 96
    %v414 = vpop.permute.xlu0 %413
    %416 = vxpose.xlu0.b32.start [1/16] %v414, 128
    %417 = vxpose.xlu0.b32.cont [2/16] 0.0, 128
    %418 = vxpose.xlu0.b32.cont [3/16] 0.0, 128
    %419 = vxpose.xlu0.b32.cont [4/16] 0.0, 128
    %420 = vxpose.xlu0.b32.cont [5/16] 0.0, 128
    %421 = vxpose.xlu0.b32.cont [6/16] 0.0, 128
    %422 = vxpose.xlu0.b32.cont [7/16] 0.0, 128
    %423 = vxpose.xlu0.b32.cont [8/16] 0.0, 128
    %424 = vxpose.xlu0.b32.cont [9/16] 0.0, 128
    %425 = vxpose.xlu0.b32.cont [10/16] 0.0, 128
    %426 = vxpose.xlu0.b32.cont [11/16] 0.0, 128
    %427 = vxpose.xlu0.b32.cont [12/16] 0.0, 128
    %428 = vxpose.xlu0.b32.cont [13/16] 0.0, 128
    %429 = vxpose.xlu0.b32.cont [14/16] 0.0, 128
    %430 = vxpose.xlu0.b32.cont [15/16] 0.0, 128
    %431 = vxpose.xlu0.b32.end [16/16] 0.0, 128
    %v432 = vpop.trf.xlu0
    %v433 = vpop.trf.xlu0
    %v434 = vpop.trf.xlu0
    %v435 = vpop.trf.xlu0
    %v436 = vpop.trf.xlu0
    %v437 = vpop.trf.xlu0
    %v438 = vpop.trf.xlu0
    %v439 = vpop.trf.xlu0
    %v440 = vpop.trf.xlu0
    %v441 = vpop.trf.xlu0
    %v442 = vpop.trf.xlu0
    %v443 = vpop.trf.xlu0
    %v444 = vpop.trf.xlu0
    %v445 = vpop.trf.xlu0
    %v446 = vpop.trf.xlu0
    %v447 = vpop.trf.xlu0
    %v448 = vpack.c.bf16 %v175, %v175
    %v449 = vpack.c.bf16 %v432, %v432
    %v451 = vsel %vm216, %v448, 0
    %v454 = vsel %vm220, %v449, 0
    %456 = vmatprep.subr.bf16.mxu0 0
    %457 = vmatpush1.bf16.msra.mxu0 %v454
    %458 = vmatprep.subr.bf16.mxu0 0
    %459 = vmatpush1.bf16.msra.mxu0 0
    %460 = vmatprep.subr.bf16.mxu0 0
    %461 = vmatpush1.bf16.msra.mxu0 0
    %462 = vmatprep.subr.bf16.mxu0 0
    %463 = vmatpush1.bf16.msra.mxu0 0
    %464 = vmatprep.subr.bf16.mxu0 0
    %465 = vmatpush1.bf16.msra.mxu0 0
    %466 = vmatprep.subr.bf16.mxu0 0
    %467 = vmatpush1.bf16.msra.mxu0 0
    %468 = vmatprep.subr.bf16.mxu0 0
    %469 = vmatpush1.bf16.msra.mxu0 0
    %470 = vmatprep.subr.bf16.mxu0 0
    %471 = vmatpush1.bf16.msra.mxu0 0
    %472 = vmatprep.subr.bf16.mxu0 0
    %473 = vmatpush1.bf16.msra.mxu0 0
    %474 = vmatprep.subr.bf16.mxu0 0
    %475 = vmatpush1.bf16.msra.mxu0 0
    %476 = vmatprep.subr.bf16.mxu0 0
    %477 = vmatpush1.bf16.msra.mxu0 0
    %478 = vmatprep.subr.bf16.mxu0 0
    %479 = vmatpush1.bf16.msra.mxu0 0
    %480 = vmatprep.subr.bf16.mxu0 0
    %481 = vmatpush1.bf16.msra.mxu0 0
    %482 = vmatprep.subr.bf16.mxu0 0
    %483 = vmatpush1.bf16.msra.mxu0 0
    %484 = vmatprep.subr.bf16.mxu0 0
    %485 = vmatpush1.bf16.msra.mxu0 0
    %486 = vmatprep.subr.bf16.mxu0 0
    %487 = vmatpush1.bf16.msra.mxu0 0
    %488 = vmatprep.mubr.bf16.mxu0 0
    %489 = vmatmul.mubr.bf16.gmra.mrb[0].mxu0 %v451
    %v490 = vpop.f32.mrb[0].mxu0
    %v491 = vadd.f32 0.0, %v490
    %v492 = vpop.f32.mrb[0].mxu0
    %v493 = vpop.f32.mrb[0].mxu0
    %v494 = vpop.f32.mrb[0].mxu0
    %495 = vdwg.mxu0
    %v496 = vpack.c.bf16 %v433, %v433
    %498 = vrot.lane.b32.xlu0 %v448, 120
    %v499 = vpop.permute.xlu0 %498
    %v501 = vsel %vm216, %v499, 0
    %v504 = vsel %vm220, %v496, 0
    %506 = vmatprep.subr.bf16.mxu0 0
    %507 = vmatpush1.bf16.msra.mxu0 %v504
    %508 = vmatprep.subr.bf16.mxu0 0
    %509 = vmatpush1.bf16.msra.mxu0 0
    %510 = vmatprep.subr.bf16.mxu0 0
    %511 = vmatpush1.bf16.msra.mxu0 0
    %512 = vmatprep.subr.bf16.mxu0 0
    %513 = vmatpush1.bf16.msra.mxu0 0
    %514 = vmatprep.subr.bf16.mxu0 0
    %515 = vmatpush1.bf16.msra.mxu0 0
    %516 = vmatprep.subr.bf16.mxu0 0
    %517 = vmatpush1.bf16.msra.mxu0 0
    %518 = vmatprep.subr.bf16.mxu0 0
    %519 = vmatpush1.bf16.msra.mxu0 0
    %520 = vmatprep.subr.bf16.mxu0 0
    %521 = vmatpush1.bf16.msra.mxu0 0
    %522 = vmatprep.subr.bf16.mxu0 0
    %523 = vmatpush1.bf16.msra.mxu0 0
    %524 = vmatprep.subr.bf16.mxu0 0
    %525 = vmatpush1.bf16.msra.mxu0 0
    %526 = vmatprep.subr.bf16.mxu0 0
    %527 = vmatpush1.bf16.msra.mxu0 0
    %528 = vmatprep.subr.bf16.mxu0 0
    %529 = vmatpush1.bf16.msra.mxu0 0
    %530 = vmatprep.subr.bf16.mxu0 0
    %531 = vmatpush1.bf16.msra.mxu0 0
    %532 = vmatprep.subr.bf16.mxu0 0
    %533 = vmatpush1.bf16.msra.mxu0 0
    %534 = vmatprep.subr.bf16.mxu0 0
    %535 = vmatpush1.bf16.msra.mxu0 0
    %536 = vmatprep.subr.bf16.mxu0 0
    %537 = vmatpush1.bf16.msra.mxu0 0
    %538 = vmatprep.mubr.bf16.mxu0 0
    %539 = vmatmul.mubr.bf16.gmra.mrb[0].mxu0 %v501
    %v540 = vpop.f32.mrb[0].mxu0
    %v541 = vadd.f32 0.0, %v540
    %v542 = vpop.f32.mrb[0].mxu0
    %v543 = vpop.f32.mrb[0].mxu0
    %v544 = vpop.f32.mrb[0].mxu0
    %545 = vdwg.mxu0
    %v546 = vpack.c.bf16 %v434, %v434
    %547 = vrot.lane.b32.xlu0 %v448, 112
    %v548 = vpop.permute.xlu0 %547
    %v550 = vsel %vm216, %v548, 0
    %v553 = vsel %vm220, %v546, 0
    %555 = vmatprep.subr.bf16.mxu0 0
    %556 = vmatpush1.bf16.msra.mxu0 %v553
    %557 = vmatprep.subr.bf16.mxu0 0
    %558 = vmatpush1.bf16.msra.mxu0 0
    %559 = vmatprep.subr.bf16.mxu0 0
    %560 = vmatpush1.bf16.msra.mxu0 0
    %561 = vmatprep.subr.bf16.mxu0 0
    %562 = vmatpush1.bf16.msra.mxu0 0
    %563 = vmatprep.subr.bf16.mxu0 0
    %564 = vmatpush1.bf16.msra.mxu0 0
    %565 = vmatprep.subr.bf16.mxu0 0
    %566 = vmatpush1.bf16.msra.mxu0 0
    %567 = vmatprep.subr.bf16.mxu0 0
    %568 = vmatpush1.bf16.msra.mxu0 0
    %569 = vmatprep.subr.bf16.mxu0 0
    %570 = vmatpush1.bf16.msra.mxu0 0
    %571 = vmatprep.subr.bf16.mxu0 0
    %572 = vmatpush1.bf16.msra.mxu0 0
    %573 = vmatprep.subr.bf16.mxu0 0
    %574 = vmatpush1.bf16.msra.mxu0 0
    %575 = vmatprep.subr.bf16.mxu0 0
    %576 = vmatpush1.bf16.msra.mxu0 0
    %577 = vmatprep.subr.bf16.mxu0 0
    %578 = vmatpush1.bf16.msra.mxu0 0
    %579 = vmatprep.subr.bf16.mxu0 0
    %580 = vmatpush1.bf16.msra.mxu0 0
    %581 = vmatprep.subr.bf16.mxu0 0
    %582 = vmatpush1.bf16.msra.mxu0 0
    %583 = vmatprep.subr.bf16.mxu0 0
    %584 = vmatpush1.bf16.msra.mxu0 0
    %585 = vmatprep.subr.bf16.mxu0 0
    %586 = vmatpush1.bf16.msra.mxu0 0
    %587 = vmatprep.mubr.bf16.mxu0 0
    %588 = vmatmul.mubr.bf16.gmra.mrb[0].mxu0 %v550
    %v589 = vpop.f32.mrb[0].mxu0
    %v590 = vadd.f32 0.0, %v589
    %v591 = vpop.f32.mrb[0].mxu0
    %v592 = vpop.f32.mrb[0].mxu0
    %v593 = vpop.f32.mrb[0].mxu0
    %594 = vdwg.mxu0
    %v595 = vpack.c.bf16 %v435, %v435
    %596 = vrot.lane.b32.xlu0 %v448, 104
    %v597 = vpop.permute.xlu0 %596
    %v599 = vsel %vm216, %v597, 0
    %v602 = vsel %vm220, %v595, 0
    %604 = vmatprep.subr.bf16.mxu0 0
    %605 = vmatpush1.bf16.msra.mxu0 %v602
    %606 = vmatprep.subr.bf16.mxu0 0
    %607 = vmatpush1.bf16.msra.mxu0 0
    %608 = vmatprep.subr.bf16.mxu0 0
    %609 = vmatpush1.bf16.msra.mxu0 0
    %610 = vmatprep.subr.bf16.mxu0 0
    %611 = vmatpush1.bf16.msra.mxu0 0
    %612 = vmatprep.subr.bf16.mxu0 0
    %613 = vmatpush1.bf16.msra.mxu0 0
    %614 = vmatprep.subr.bf16.mxu0 0
    %615 = vmatpush1.bf16.msra.mxu0 0
    %616 = vmatprep.subr.bf16.mxu0 0
    %617 = vmatpush1.bf16.msra.mxu0 0
    %618 = vmatprep.subr.bf16.mxu0 0
    %619 = vmatpush1.bf16.msra.mxu0 0
    %620 = vmatprep.subr.bf16.mxu0 0
    %621 = vmatpush1.bf16.msra.mxu0 0
    %622 = vmatprep.subr.bf16.mxu0 0
    %623 = vmatpush1.bf16.msra.mxu0 0
    %624 = vmatprep.subr.bf16.mxu0 0
    %625 = vmatpush1.bf16.msra.mxu0 0
    %626 = vmatprep.subr.bf16.mxu0 0
    %627 = vmatpush1.bf16.msra.mxu0 0
    %628 = vmatprep.subr.bf16.mxu0 0
    %629 = vmatpush1.bf16.msra.mxu0 0
    %630 = vmatprep.subr.bf16.mxu0 0
    %631 = vmatpush1.bf16.msra.mxu0 0
    %632 = vmatprep.subr.bf16.mxu0 0
    %633 = vmatpush1.bf16.msra.mxu0 0
    %634 = vmatprep.subr.bf16.mxu0 0
    %635 = vmatpush1.bf16.msra.mxu0 0
    %636 = vmatprep.mubr.bf16.mxu0 0
    %637 = vmatmul.mubr.bf16.gmra.mrb[0].mxu0 %v599
    %v638 = vpop.f32.mrb[0].mxu0
    %v639 = vadd.f32 0.0, %v638
    %v640 = vpop.f32.mrb[0].mxu0
    %v641 = vpop.f32.mrb[0].mxu0
    %v642 = vpop.f32.mrb[0].mxu0
    %643 = vdwg.mxu0
    %v644 = vsel %vm216, %v259, -inf
    %645 = vmax.xlane.f32.xlu0 %v644
    %v646 = vpop.xlane.xlu0 %645
    %v647 = vsel %vm216, %v309, -inf
    %648 = vmax.xlane.f32.xlu0 %v647
    %v649 = vpop.xlane.xlu0 %648
    %v650 = vsel %vm216, %v358, -inf
    %651 = vmax.xlane.f32.xlu0 %v650
    %v652 = vpop.xlane.xlu0 %651
    %v653 = vsel %vm216, %v407, -inf
    %654 = vmax.xlane.f32.xlu0 %v653
    %v655 = vpop.xlane.xlu0 %654
    %v656 = vsel %vm216, %v491, -inf
    %657 = vmax.xlane.f32.xlu0 %v656
    %v658 = vpop.xlane.xlu0 %657
    %v659 = vsel %vm216, %v541, -inf
    %660 = vmax.xlane.f32.xlu0 %v659
    %v661 = vpop.xlane.xlu0 %660
    %v662 = vsel %vm216, %v590, -inf
    %663 = vmax.xlane.f32.xlu0 %v662
    %v664 = vpop.xlane.xlu0 %663
    %v665 = vsel %vm216, %v639, -inf
    %666 = vmax.xlane.f32.xlu0 %v665
    %v667 = vpop.xlane.xlu0 %666
    %v668 = vsub.f32 %v259, %v646
    %v669 = vsub.f32 %v309, %v649
    %v670 = vsub.f32 %v358, %v652
    %v671 = vsub.f32 %v407, %v655
    %v672 = vsub.f32 %v491, %v658
    %v673 = vsub.f32 %v541, %v661
    %v674 = vsub.f32 %v590, %v664
    %v675 = vsub.f32 %v639, %v667
    %v676 = vmul.f32 %v668, 1.442695
    %v677 = vpow.pop %v676
    %v678 = vmul.f32 %v669, 1.442695
    %v679 = vpow.pop %v678
    %v680 = vmul.f32 %v670, 1.442695
    %v681 = vpow.pop %v680
    %v682 = vmul.f32 %v671, 1.442695
    %v683 = vpow.pop %v682
    %v684 = vmul.f32 %v672, 1.442695
    %v685 = vpow.pop %v684
    %v686 = vmul.f32 %v673, 1.442695
    %v687 = vpow.pop %v686
    %v688 = vmul.f32 %v674, 1.442695
    %v689 = vpow.pop %v688
    %v690 = vmul.f32 %v675, 1.442695
    %v691 = vpow.pop %v690
    %v692 = vsel %vm216, %v677, 0.0
    %693 = vadd.xlane.f32.xlu0 %v692
    %v694 = vpop.xlane.xlu0 %693
    %v695 = vsel %vm216, %v679, 0.0
    %696 = vadd.xlane.f32.xlu0 %v695
    %v697 = vpop.xlane.xlu0 %696
    %v698 = vsel %vm216, %v681, 0.0
    %699 = vadd.xlane.f32.xlu0 %v698
    %v700 = vpop.xlane.xlu0 %699
    %v701 = vsel %vm216, %v683, 0.0
    %702 = vadd.xlane.f32.xlu0 %v701
    %v703 = vpop.xlane.xlu0 %702
    %v704 = vsel %vm216, %v685, 0.0
    %705 = vadd.xlane.f32.xlu0 %v704
    %v706 = vpop.xlane.xlu0 %705
    %v707 = vsel %vm216, %v687, 0.0
    %708 = vadd.xlane.f32.xlu0 %v707
    %v709 = vpop.xlane.xlu0 %708
    %v710 = vsel %vm216, %v689, 0.0
    %711 = vadd.xlane.f32.xlu0 %v710
    %v712 = vpop.xlane.xlu0 %711
    %v713 = vsel %vm216, %v691, 0.0
    %714 = vadd.xlane.f32.xlu0 %v713
    %v715 = vpop.xlane.xlu0 %714
    %v716 = vrcp.pop %v694
    %v717 = vrcp.pop %v697
    %v718 = vrcp.pop %v700
    %v719 = vrcp.pop %v703
    %v720 = vrcp.pop %v706
    %v721 = vrcp.pop %v709
    %v722 = vrcp.pop %v712
    %v723 = vrcp.pop %v715
    %v724 = vmul.f32 %v677, %v716
    %v725 = vmul.f32 %v679, %v717
    %v726 = vmul.f32 %v681, %v718
    %v727 = vmul.f32 %v683, %v719
    %v728 = vmul.f32 %v685, %v720
    %v729 = vmul.f32 %v687, %v721
    %v730 = vmul.f32 %v689, %v722
    %v731 = vmul.f32 %v691, %v723
    %v732 = vpack.c.bf16 %v724, %v724
    %733 = vrot.lane.b32.xlu0 %v214, 64
    %v734 = vpop.permute.xlu0 %733
    %v736 = vsel %vm216, %v732, 0
    %v739 = vsel %vm220, %v734, 0
    %741 = vmatprep.subr.bf16.mxu0 0
    %742 = vmatpush1.bf16.msra.mxu0 %v739
    %743 = vmatprep.subr.bf16.mxu0 0
    %744 = vmatpush1.bf16.msra.mxu0 0
    %745 = vmatprep.subr.bf16.mxu0 0
    %746 = vmatpush1.bf16.msra.mxu0 0
    %747 = vmatprep.subr.bf16.mxu0 0
    %748 = vmatpush1.bf16.msra.mxu0 0
    %749 = vmatprep.subr.bf16.mxu0 0
    %750 = vmatpush1.bf16.msra.mxu0 0
    %751 = vmatprep.subr.bf16.mxu0 0
    %752 = vmatpush1.bf16.msra.mxu0 0
    %753 = vmatprep.subr.bf16.mxu0 0
    %754 = vmatpush1.bf16.msra.mxu0 0
    %755 = vmatprep.subr.bf16.mxu0 0
    %756 = vmatpush1.bf16.msra.mxu0 0
    %757 = vmatprep.subr.bf16.mxu0 0
    %758 = vmatpush1.bf16.msra.mxu0 0
    %759 = vmatprep.subr.bf16.mxu0 0
    %760 = vmatpush1.bf16.msra.mxu0 0
    %761 = vmatprep.subr.bf16.mxu0 0
    %762 = vmatpush1.bf16.msra.mxu0 0
    %763 = vmatprep.subr.bf16.mxu0 0
    %764 = vmatpush1.bf16.msra.mxu0 0
    %765 = vmatprep.subr.bf16.mxu0 0
    %766 = vmatpush1.bf16.msra.mxu0 0
    %767 = vmatprep.subr.bf16.mxu0 0
    %768 = vmatpush1.bf16.msra.mxu0 0
    %769 = vmatprep.subr.bf16.mxu0 0
    %770 = vmatpush1.bf16.msra.mxu0 0
    %771 = vmatprep.subr.bf16.mxu0 0
    %772 = vmatpush1.bf16.msra.mxu0 0
    %773 = vmatprep.mubr.bf16.mxu0 0
    %774 = vmatmul.mubr.bf16.gmra.mrb[0].mxu0 %v736
    %v775 = vpop.f32.mrb[0].mxu0
    %v776 = vadd.f32 0.0, %v775
    %v777 = vpop.f32.mrb[0].mxu0
    %v778 = vpop.f32.mrb[0].mxu0
    %v779 = vpop.f32.mrb[0].mxu0
    %780 = vdwg.mxu0
    %v781 = vpack.c.bf16 %v725, %v725
    %782 = vrot.lane.b32.xlu0 %v214, 56
    %v783 = vpop.permute.xlu0 %782
    %v785 = vsel %vm216, %v781, 0
    %v788 = vsel %vm220, %v783, 0
    %790 = vmatprep.subr.bf16.mxu0 0
    %791 = vmatpush1.bf16.msra.mxu0 %v788
    %792 = vmatprep.subr.bf16.mxu0 0
    %793 = vmatpush1.bf16.msra.mxu0 0
    %794 = vmatprep.subr.bf16.mxu0 0
    %795 = vmatpush1.bf16.msra.mxu0 0
    %796 = vmatprep.subr.bf16.mxu0 0
    %797 = vmatpush1.bf16.msra.mxu0 0
    %798 = vmatprep.subr.bf16.mxu0 0
    %799 = vmatpush1.bf16.msra.mxu0 0
    %800 = vmatprep.subr.bf16.mxu0 0
    %801 = vmatpush1.bf16.msra.mxu0 0
    %802 = vmatprep.subr.bf16.mxu0 0
    %803 = vmatpush1.bf16.msra.mxu0 0
    %804 = vmatprep.subr.bf16.mxu0 0
    %805 = vmatpush1.bf16.msra.mxu0 0
    %806 = vmatprep.subr.bf16.mxu0 0
    %807 = vmatpush1.bf16.msra.mxu0 0
    %808 = vmatprep.subr.bf16.mxu0 0
    %809 = vmatpush1.bf16.msra.mxu0 0
    %810 = vmatprep.subr.bf16.mxu0 0
    %811 = vmatpush1.bf16.msra.mxu0 0
    %812 = vmatprep.subr.bf16.mxu0 0
    %813 = vmatpush1.bf16.msra.mxu0 0
    %814 = vmatprep.subr.bf16.mxu0 0
    %815 = vmatpush1.bf16.msra.mxu0 0
    %816 = vmatprep.subr.bf16.mxu0 0
    %817 = vmatpush1.bf16.msra.mxu0 0
    %818 = vmatprep.subr.bf16.mxu0 0
    %819 = vmatpush1.bf16.msra.mxu0 0
    %820 = vmatprep.subr.bf16.mxu0 0
    %821 = vmatpush1.bf16.msra.mxu0 0
    %822 = vmatprep.mubr.bf16.mxu0 0
    %823 = vmatmul.mubr.bf16.gmra.mrb[0].mxu0 %v785
    %v824 = vpop.f32.mrb[0].mxu0
    %v825 = vadd.f32 0.0, %v824
    %v826 = vpop.f32.mrb[0].mxu0
    %v827 = vpop.f32.mrb[0].mxu0
    %v828 = vpop.f32.mrb[0].mxu0
    %829 = vdwg.mxu0
    %v830 = vpack.c.bf16 %v726, %v726
    %831 = vrot.lane.b32.xlu0 %v214, 48
    %v832 = vpop.permute.xlu0 %831
    %v834 = vsel %vm216, %v830, 0
    %v837 = vsel %vm220, %v832, 0
    %839 = vmatprep.subr.bf16.mxu0 0
    %840 = vmatpush1.bf16.msra.mxu0 %v837
    %841 = vmatprep.subr.bf16.mxu0 0
    %842 = vmatpush1.bf16.msra.mxu0 0
    %843 = vmatprep.subr.bf16.mxu0 0
    %844 = vmatpush1.bf16.msra.mxu0 0
    %845 = vmatprep.subr.bf16.mxu0 0
    %846 = vmatpush1.bf16.msra.mxu0 0
    %847 = vmatprep.subr.bf16.mxu0 0
    %848 = vmatpush1.bf16.msra.mxu0 0
    %849 = vmatprep.subr.bf16.mxu0 0
    %850 = vmatpush1.bf16.msra.mxu0 0
    %851 = vmatprep.subr.bf16.mxu0 0
    %852 = vmatpush1.bf16.msra.mxu0 0
    %853 = vmatprep.subr.bf16.mxu0 0
    %854 = vmatpush1.bf16.msra.mxu0 0
    %855 = vmatprep.subr.bf16.mxu0 0
    %856 = vmatpush1.bf16.msra.mxu0 0
    %857 = vmatprep.subr.bf16.mxu0 0
    %858 = vmatpush1.bf16.msra.mxu0 0
    %859 = vmatprep.subr.bf16.mxu0 0
    %860 = vmatpush1.bf16.msra.mxu0 0
    %861 = vmatprep.subr.bf16.mxu0 0
    %862 = vmatpush1.bf16.msra.mxu0 0
    %863 = vmatprep.subr.bf16.mxu0 0
    %864 = vmatpush1.bf16.msra.mxu0 0
    %865 = vmatprep.subr.bf16.mxu0 0
    %866 = vmatpush1.bf16.msra.mxu0 0
    %867 = vmatprep.subr.bf16.mxu0 0
    %868 = vmatpush1.bf16.msra.mxu0 0
    %869 = vmatprep.subr.bf16.mxu0 0
    %870 = vmatpush1.bf16.msra.mxu0 0
    %871 = vmatprep.mubr.bf16.mxu0 0
    %872 = vmatmul.mubr.bf16.gmra.mrb[0].mxu0 %v834
    %v873 = vpop.f32.mrb[0].mxu0
    %v874 = vadd.f32 0.0, %v873
    %v875 = vpop.f32.mrb[0].mxu0
    %v876 = vpop.f32.mrb[0].mxu0
    %v877 = vpop.f32.mrb[0].mxu0
    %878 = vdwg.mxu0
    %v879 = vpack.c.bf16 %v727, %v727
    %880 = vrot.lane.b32.xlu0 %v214, 40
    %v881 = vpop.permute.xlu0 %880
    %v883 = vsel %vm216, %v879, 0
    %v886 = vsel %vm220, %v881, 0
    %888 = vmatprep.subr.bf16.mxu0 0
    %889 = vmatpush1.bf16.msra.mxu0 %v886
    %890 = vmatprep.subr.bf16.mxu0 0
    %891 = vmatpush1.bf16.msra.mxu0 0
    %892 = vmatprep.subr.bf16.mxu0 0
    %893 = vmatpush1.bf16.msra.mxu0 0
    %894 = vmatprep.subr.bf16.mxu0 0
    %895 = vmatpush1.bf16.msra.mxu0 0
    %896 = vmatprep.subr.bf16.mxu0 0
    %897 = vmatpush1.bf16.msra.mxu0 0
    %898 = vmatprep.subr.bf16.mxu0 0
    %899 = vmatpush1.bf16.msra.mxu0 0
    %900 = vmatprep.subr.bf16.mxu0 0
    %901 = vmatpush1.bf16.msra.mxu0 0
    %902 = vmatprep.subr.bf16.mxu0 0
    %903 = vmatpush1.bf16.msra.mxu0 0
    %904 = vmatprep.subr.bf16.mxu0 0
    %905 = vmatpush1.bf16.msra.mxu0 0
    %906 = vmatprep.subr.bf16.mxu0 0
    %907 = vmatpush1.bf16.msra.mxu0 0
    %908 = vmatprep.subr.bf16.mxu0 0
    %909 = vmatpush1.bf16.msra.mxu0 0
    %910 = vmatprep.subr.bf16.mxu0 0
    %911 = vmatpush1.bf16.msra.mxu0 0
    %912 = vmatprep.subr.bf16.mxu0 0
    %913 = vmatpush1.bf16.msra.mxu0 0
    %914 = vmatprep.subr.bf16.mxu0 0
    %915 = vmatpush1.bf16.msra.mxu0 0
    %916 = vmatprep.subr.bf16.mxu0 0
    %917 = vmatpush1.bf16.msra.mxu0 0
    %918 = vmatprep.subr.bf16.mxu0 0
    %919 = vmatpush1.bf16.msra.mxu0 0
    %920 = vmatprep.mubr.bf16.mxu0 0
    %921 = vmatmul.mubr.bf16.gmra.mrb[0].mxu0 %v883
    %v922 = vpop.f32.mrb[0].mxu0
    %v923 = vadd.f32 0.0, %v922
    %v924 = vpop.f32.mrb[0].mxu0
    %v925 = vpop.f32.mrb[0].mxu0
    %v926 = vpop.f32.mrb[0].mxu0
    %927 = vdwg.mxu0
    %929 = vrot.lane.b32.xlu0 %v825, 8
    %v930 = vpop.permute.xlu0 %929
    %933 = vrot.lane.b32.xlu0 %v874, 16
    %v934 = vpop.permute.xlu0 %933
    %937 = vrot.lane.b32.xlu0 %v923, 24
    %v938 = vpop.permute.xlu0 %937
    %v940 = vsel %vm216, %v776, %v930
    %vm941 = vcmask 130048
    %v942 = vsel %vm941, %v940, %v934
    %vm943 = vcmask 195584
    %v944 = vsel %vm943, %v942, %v938
    %v945 = vpack.c.bf16 %v728, %v728
    %946 = vrot.lane.b32.xlu0 %v448, 64
    %v947 = vpop.permute.xlu0 %946
    %v949 = vsel %vm216, %v945, 0
    %v952 = vsel %vm220, %v947, 0
    %954 = vmatprep.subr.bf16.mxu0 0
    %955 = vmatpush1.bf16.msra.mxu0 %v952
    %956 = vmatprep.subr.bf16.mxu0 0
    %957 = vmatpush1.bf16.msra.mxu0 0
    %958 = vmatprep.subr.bf16.mxu0 0
    %959 = vmatpush1.bf16.msra.mxu0 0
    %960 = vmatprep.subr.bf16.mxu0 0
    %961 = vmatpush1.bf16.msra.mxu0 0
    %962 = vmatprep.subr.bf16.mxu0 0
    %963 = vmatpush1.bf16.msra.mxu0 0
    %964 = vmatprep.subr.bf16.mxu0 0
    %965 = vmatpush1.bf16.msra.mxu0 0
    %966 = vmatprep.subr.bf16.mxu0 0
    %967 = vmatpush1.bf16.msra.mxu0 0
    %968 = vmatprep.subr.bf16.mxu0 0
    %969 = vmatpush1.bf16.msra.mxu0 0
    %970 = vmatprep.subr.bf16.mxu0 0
    %971 = vmatpush1.bf16.msra.mxu0 0
    %972 = vmatprep.subr.bf16.mxu0 0
    %973 = vmatpush1.bf16.msra.mxu0 0
    %974 = vmatprep.subr.bf16.mxu0 0
    %975 = vmatpush1.bf16.msra.mxu0 0
    %976 = vmatprep.subr.bf16.mxu0 0
    %977 = vmatpush1.bf16.msra.mxu0 0
    %978 = vmatprep.subr.bf16.mxu0 0
    %979 = vmatpush1.bf16.msra.mxu0 0
    %980 = vmatprep.subr.bf16.mxu0 0
    %981 = vmatpush1.bf16.msra.mxu0 0
    %982 = vmatprep.subr.bf16.mxu0 0
    %983 = vmatpush1.bf16.msra.mxu0 0
    %984 = vmatprep.subr.bf16.mxu0 0
    %985 = vmatpush1.bf16.msra.mxu0 0
    %986 = vmatprep.mubr.bf16.mxu0 0
    %987 = vmatmul.mubr.bf16.gmra.mrb[0].mxu0 %v949
    %v988 = vpop.f32.mrb[0].mxu0
    %v989 = vadd.f32 0.0, %v988
    %v990 = vpop.f32.mrb[0].mxu0
    %v991 = vpop.f32.mrb[0].mxu0
    %v992 = vpop.f32.mrb[0].mxu0
    %993 = vdwg.mxu0
    %v994 = vpack.c.bf16 %v729, %v729
    %995 = vrot.lane.b32.xlu0 %v448, 56
    %v996 = vpop.permute.xlu0 %995
    %v998 = vsel %vm216, %v994, 0
    %v1001 = vsel %vm220, %v996, 0
    %1003 = vmatprep.subr.bf16.mxu0 0
    %1004 = vmatpush1.bf16.msra.mxu0 %v1001
    %1005 = vmatprep.subr.bf16.mxu0 0
    %1006 = vmatpush1.bf16.msra.mxu0 0
    %1007 = vmatprep.subr.bf16.mxu0 0
    %1008 = vmatpush1.bf16.msra.mxu0 0
    %1009 = vmatprep.subr.bf16.mxu0 0
    %1010 = vmatpush1.bf16.msra.mxu0 0
    %1011 = vmatprep.subr.bf16.mxu0 0
    %1012 = vmatpush1.bf16.msra.mxu0 0
    %1013 = vmatprep.subr.bf16.mxu0 0
    %1014 = vmatpush1.bf16.msra.mxu0 0
    %1015 = vmatprep.subr.bf16.mxu0 0
    %1016 = vmatpush1.bf16.msra.mxu0 0
    %1017 = vmatprep.subr.bf16.mxu0 0
    %1018 = vmatpush1.bf16.msra.mxu0 0
    %1019 = vmatprep.subr.bf16.mxu0 0
    %1020 = vmatpush1.bf16.msra.mxu0 0
    %1021 = vmatprep.subr.bf16.mxu0 0
    %1022 = vmatpush1.bf16.msra.mxu0 0
    %1023 = vmatprep.subr.bf16.mxu0 0
    %1024 = vmatpush1.bf16.msra.mxu0 0
    %1025 = vmatprep.subr.bf16.mxu0 0
    %1026 = vmatpush1.bf16.msra.mxu0 0
    %1027 = vmatprep.subr.bf16.mxu0 0
    %1028 = vmatpush1.bf16.msra.mxu0 0
    %1029 = vmatprep.subr.bf16.mxu0 0
    %1030 = vmatpush1.bf16.msra.mxu0 0
    %1031 = vmatprep.subr.bf16.mxu0 0
    %1032 = vmatpush1.bf16.msra.mxu0 0
    %1033 = vmatprep.subr.bf16.mxu0 0
    %1034 = vmatpush1.bf16.msra.mxu0 0
    %1035 = vmatprep.mubr.bf16.mxu0 0
    %1036 = vmatmul.mubr.bf16.gmra.mrb[0].mxu0 %v998
    %v1037 = vpop.f32.mrb[0].mxu0
    %v1038 = vadd.f32 0.0, %v1037
    %v1039 = vpop.f32.mrb[0].mxu0
    %v1040 = vpop.f32.mrb[0].mxu0
    %v1041 = vpop.f32.mrb[0].mxu0
    %1042 = vdwg.mxu0
    %v1043 = vpack.c.bf16 %v730, %v730
    %1044 = vrot.lane.b32.xlu0 %v448, 48
    %v1045 = vpop.permute.xlu0 %1044
    %v1047 = vsel %vm216, %v1043, 0
    %v1050 = vsel %vm220, %v1045, 0
    %1052 = vmatprep.subr.bf16.mxu0 0
    %1053 = vmatpush1.bf16.msra.mxu0 %v1050
    %1054 = vmatprep.subr.bf16.mxu0 0
    %1055 = vmatpush1.bf16.msra.mxu0 0
    %1056 = vmatprep.subr.bf16.mxu0 0
    %1057 = vmatpush1.bf16.msra.mxu0 0
    %1058 = vmatprep.subr.bf16.mxu0 0
    %1059 = vmatpush1.bf16.msra.mxu0 0
    %1060 = vmatprep.subr.bf16.mxu0 0
    %1061 = vmatpush1.bf16.msra.mxu0 0
    %1062 = vmatprep.subr.bf16.mxu0 0
    %1063 = vmatpush1.bf16.msra.mxu0 0
    %1064 = vmatprep.subr.bf16.mxu0 0
    %1065 = vmatpush1.bf16.msra.mxu0 0
    %1066 = vmatprep.subr.bf16.mxu0 0
    %1067 = vmatpush1.bf16.msra.mxu0 0
    %1068 = vmatprep.subr.bf16.mxu0 0
    %1069 = vmatpush1.bf16.msra.mxu0 0
    %1070 = vmatprep.subr.bf16.mxu0 0
    %1071 = vmatpush1.bf16.msra.mxu0 0
    %1072 = vmatprep.subr.bf16.mxu0 0
    %1073 = vmatpush1.bf16.msra.mxu0 0
    %1074 = vmatprep.subr.bf16.mxu0 0
    %1075 = vmatpush1.bf16.msra.mxu0 0
    %1076 = vmatprep.subr.bf16.mxu0 0
    %1077 = vmatpush1.bf16.msra.mxu0 0
    %1078 = vmatprep.subr.bf16.mxu0 0
    %1079 = vmatpush1.bf16.msra.mxu0 0
    %1080 = vmatprep.subr.bf16.mxu0 0
    %1081 = vmatpush1.bf16.msra.mxu0 0
    %1082 = vmatprep.subr.bf16.mxu0 0
    %1083 = vmatpush1.bf16.msra.mxu0 0
    %1084 = vmatprep.mubr.bf16.mxu0 0
    %1085 = vmatmul.mubr.bf16.gmra.mrb[0].mxu0 %v1047
    %v1086 = vpop.f32.mrb[0].mxu0
    %v1087 = vadd.f32 0.0, %v1086
    %v1088 = vpop.f32.mrb[0].mxu0
    %v1089 = vpop.f32.mrb[0].mxu0
    %v1090 = vpop.f32.mrb[0].mxu0
    %1091 = vdwg.mxu0
    %v1092 = vpack.c.bf16 %v731, %v731
    %1093 = vrot.lane.b32.xlu0 %v448, 40
    %v1094 = vpop.permute.xlu0 %1093
    %v1096 = vsel %vm216, %v1092, 0
    %v1099 = vsel %vm220, %v1094, 0
    %1101 = vmatprep.subr.bf16.mxu0 0
    %1102 = vmatpush1.bf16.msra.mxu0 %v1099
    %1103 = vmatprep.subr.bf16.mxu0 0
    %1104 = vmatpush1.bf16.msra.mxu0 0
    %1105 = vmatprep.subr.bf16.mxu0 0
    %1106 = vmatpush1.bf16.msra.mxu0 0
    %1107 = vmatprep.subr.bf16.mxu0 0
    %1108 = vmatpush1.bf16.msra.mxu0 0
    %1109 = vmatprep.subr.bf16.mxu0 0
    %1110 = vmatpush1.bf16.msra.mxu0 0
    %1111 = vmatprep.subr.bf16.mxu0 0
    %1112 = vmatpush1.bf16.msra.mxu0 0
    %1113 = vmatprep.subr.bf16.mxu0 0
    %1114 = vmatpush1.bf16.msra.mxu0 0
    %1115 = vmatprep.subr.bf16.mxu0 0
    %1116 = vmatpush1.bf16.msra.mxu0 0
    %1117 = vmatprep.subr.bf16.mxu0 0
    %1118 = vmatpush1.bf16.msra.mxu0 0
    %1119 = vmatprep.subr.bf16.mxu0 0
    %1120 = vmatpush1.bf16.msra.mxu0 0
    %1121 = vmatprep.subr.bf16.mxu0 0
    %1122 = vmatpush1.bf16.msra.mxu0 0
    %1123 = vmatprep.subr.bf16.mxu0 0
    %1124 = vmatpush1.bf16.msra.mxu0 0
    %1125 = vmatprep.subr.bf16.mxu0 0
    %1126 = vmatpush1.bf16.msra.mxu0 0
    %1127 = vmatprep.subr.bf16.mxu0 0
    %1128 = vmatpush1.bf16.msra.mxu0 0
    %1129 = vmatprep.subr.bf16.mxu0 0
    %1130 = vmatpush1.bf16.msra.mxu0 0
    %1131 = vmatprep.subr.bf16.mxu0 0
    %1132 = vmatpush1.bf16.msra.mxu0 0
    %1133 = vmatprep.mubr.bf16.mxu0 0
    %1134 = vmatmul.mubr.bf16.gmra.mrb[0].mxu0 %v1096
    %v1135 = vpop.f32.mrb[0].mxu0
    %v1136 = vadd.f32 0.0, %v1135
    %v1137 = vpop.f32.mrb[0].mxu0
    %v1138 = vpop.f32.mrb[0].mxu0
    %v1139 = vpop.f32.mrb[0].mxu0
    %1140 = vdwg.mxu0
    %1142 = vrot.lane.b32.xlu0 %v1038, 8
    %v1143 = vpop.permute.xlu0 %1142
    %1146 = vrot.lane.b32.xlu0 %v1087, 16
    %v1147 = vpop.permute.xlu0 %1146
    %1150 = vrot.lane.b32.xlu0 %v1136, 24
    %v1151 = vpop.permute.xlu0 %1150
    %v1153 = vsel %vm216, %v989, %v1143
    %v1154 = vsel %vm941, %v1153, %v1147
    %v1155 = vsel %vm943, %v1154, %v1151
    %v1156 = vld [vmem:[%s5] sm:$0xf]
    %v1157 = vld [vmem:[%s5 + $0x4] sm:$0xf]
    %v1158 = vld [vmem:[%s5 + $0x8] sm:$0xf]
    %v1159 = vld [vmem:[%s5 + $0xc] sm:$0xf]
    %v1160 = vpack.c.bf16 %v1155, %v944
    %v1161 = vld [vmem:[%s6] sm:$0x1]
    %v1163 = vlaneseq
    %v1164 = vshrl.u32 %v1163, 7
    %v1165 = vsub.s32 0, %v1164
    %v1166 = vrot.slane %v1161, %v1165
    %v1172 = vunpack.c.l.b16 %v1156
    %v1173 = vunpack.c.l.b16 %v1157
    %v1174 = vunpack.c.l.b16 %v1158
    %v1175 = vunpack.c.l.b16 %v1159
    %v1176 = vpack.c.b16 %v1173, %v1172
    %v1177 = vpack.c.b16 %v1175, %v1174
    %v1181 = vsel %vm66, %v1160, 0
    %1183 = vmatprep.subr.bf16.mxu0 0
    %1184 = vmatpush1.bf16.msra.mxu0 %v1176
    %1185 = vmatprep.subr.bf16.mxu0 0
    %1186 = vmatpush1.bf16.msra.mxu0 %v1177
    %1187 = vmatprep.subr.bf16.mxu0 0
    %1188 = vmatpush1.bf16.msra.mxu0 0
    %1189 = vmatprep.subr.bf16.mxu0 0
    %1190 = vmatpush1.bf16.msra.mxu0 0
    %1191 = vmatprep.subr.bf16.mxu0 0
    %1192 = vmatpush1.bf16.msra.mxu0 0
    %1193 = vmatprep.subr.bf16.mxu0 0
    %1194 = vmatpush1.bf16.msra.mxu0 0
    %1195 = vmatprep.subr.bf16.mxu0 0
    %1196 = vmatpush1.bf16.msra.mxu0 0
    %1197 = vmatprep.subr.bf16.mxu0 0
    %1198 = vmatpush1.bf16.msra.mxu0 0
    %1199 = vmatprep.subr.bf16.mxu0 0
    %1200 = vmatpush1.bf16.msra.mxu0 0
    %1201 = vmatprep.subr.bf16.mxu0 0
    %1202 = vmatpush1.bf16.msra.mxu0 0
    %1203 = vmatprep.subr.bf16.mxu0 0
    %1204 = vmatpush1.bf16.msra.mxu0 0
    %1205 = vmatprep.subr.bf16.mxu0 0
    %1206 = vmatpush1.bf16.msra.mxu0 0
    %1207 = vmatprep.subr.bf16.mxu0 0
    %1208 = vmatpush1.bf16.msra.mxu0 0
    %1209 = vmatprep.subr.bf16.mxu0 0
    %1210 = vmatpush1.bf16.msra.mxu0 0
    %1211 = vmatprep.subr.bf16.mxu0 0
    %1212 = vmatpush1.bf16.msra.mxu0 0
    %1213 = vmatprep.subr.bf16.mxu0 0
    %1214 = vmatpush1.bf16.msra.mxu0 0
    %1215 = vmatprep.mubr.bf16.mxu0 0
    %1216 = vmatmul.mubr.bf16.gmra.mrb[0].mxu0 %v1181
    %v1217 = vpop.f32.mrb[0].mxu0
    %v1218 = vadd.f32 %v1166, %v1217
    %v1219 = vpop.f32.mrb[0].mxu0
    %v1220 = vpop.f32.mrb[0].mxu0
    %v1221 = vadd.f32 %v1166, %v1220
    %v1222 = vpop.f32.mrb[0].mxu0
    %1223 = vdwg.mxu0
    %v1224 = vadd.f32 %v58, %v1218
    %v1225 = vadd.f32 %v59, %v1221
    %s1226 = scalar_lea.vmem %s7, 1
    %v1227 = vld [vmem:[%s1226] sm:$0x1]
    %s1228 = scalar_lea.vmem %s8, 1
    %v1229 = vld [vmem:[%s1228] sm:$0x1]
    %v1230 = vsel %vm66, %v1224, 0.0
    %1231 = vadd.xlane.f32.xlu0 %v1230
    %v1232 = vpop.xlane.xlu0 %1231
    %v1233 = vsel %vm66, %v1225, 0.0
    %1234 = vadd.xlane.f32.xlu0 %v1233
    %v1235 = vpop.xlane.xlu0 %1234
    %v1236 = vmul.f32 %v1232, %v73
    %v1237 = vmul.f32 %v1235, %v73
    %v1238 = vsub.f32 %v1224, %v1236
    %v1239 = vsub.f32 %v1225, %v1237
    %v1240 = vmul.f32 %v1238, %v1238
    %v1241 = vmul.f32 %v1239, %v1239
    %v1242 = vsel %vm66, %v1240, 0.0
    %1243 = vadd.xlane.f32.xlu0 %v1242
    %v1244 = vpop.xlane.xlu0 %1243
    %v1245 = vsel %vm66, %v1241, 0.0
    %1246 = vadd.xlane.f32.xlu0 %v1245
    %v1247 = vpop.xlane.xlu0 %1246
    %v1248 = vmul.f32 %v1244, %v73
    %v1249 = vmul.f32 %v1247, %v73
    %v1250 = vadd.f32 %v1248, 1e-05
    %v1251 = vadd.f32 %v1249, 1e-05
    %v1252 = vrsqrt.pop %v1250
    %v1253 = vrsqrt.pop %v1251
    %v1254 = vmul.f32 %v1238, %v1252
    %v1255 = vmul.f32 %v1239, %v1253
    %v1257 = vlaneseq
    %v1258 = vshrl.u32 %v1257, 7
    %v1259 = vsub.s32 0, %v1258
    %v1260 = vrot.slane %v1227, %v1259
    %v1262 = vmul.f32 %v1254, %v1260
    %v1263 = vmul.f32 %v1255, %v1260
    %v1265 = vlaneseq
    %v1266 = vshrl.u32 %v1265, 7
    %v1267 = vsub.s32 0, %v1266
    %v1268 = vrot.slane %v1229, %v1267
    %v1270 = vadd.f32 %v1262, %v1268
    %v1271 = vadd.f32 %v1263, %v1268
    %s1272 = scalar_lea.vmem %s3, 16
    %v1273 = vld [vmem:[%s1272] sm:$0xf]
    %v1274 = vld [vmem:[%s1272 + $0x4] sm:$0xf]
    %v1275 = vld [vmem:[%s1272 + $0x8] sm:$0xf]
    %v1276 = vld [vmem:[%s1272 + $0xc] sm:$0xf]
    %s1277 = scalar_lea.vmem %s4, 1
    %v1278 = vld [vmem:[%s1277] sm:$0x1]
    %v1279 = vpack.c.bf16 %v1271, %v1270
    %v1281 = vlaneseq
    %v1282 = vshrl.u32 %v1281, 7
    %v1283 = vsub.s32 0, %v1282
    %v1284 = vrot.slane %v1278, %v1283
    %v1290 = vunpack.c.l.b16 %v1273
    %v1291 = vunpack.c.l.b16 %v1274
    %v1292 = vunpack.c.l.b16 %v1275
    %v1293 = vunpack.c.l.b16 %v1276
    %v1294 = vpack.c.b16 %v1291, %v1290
    %v1295 = vpack.c.b16 %v1293, %v1292
    %v1299 = vsel %vm66, %v1279, 0
    %1301 = vmatprep.subr.bf16.mxu0 0
    %1302 = vmatpush1.bf16.msra.mxu0 %v1294
    %1303 = vmatprep.subr.bf16.mxu0 0
    %1304 = vmatpush1.bf16.msra.mxu0 %v1295
    %1305 = vmatprep.subr.bf16.mxu0 0
    %1306 = vmatpush1.bf16.msra.mxu0 0
    %1307 = vmatprep.subr.bf16.mxu0 0
    %1308 = vmatpush1.bf16.msra.mxu0 0
    %1309 = vmatprep.subr.bf16.mxu0 0
    %1310 = vmatpush1.bf16.msra.mxu0 0
    %1311 = vmatprep.subr.bf16.mxu0 0
    %1312 = vmatpush1.bf16.msra.mxu0 0
    %1313 = vmatprep.subr.bf16.mxu0 0
    %1314 = vmatpush1.bf16.msra.mxu0 0
    %1315 = vmatprep.subr.bf16.mxu0 0
    %1316 = vmatpush1.bf16.msra.mxu0 0
    %1317 = vmatprep.subr.bf16.mxu0 0
    %1318 = vmatpush1.bf16.msra.mxu0 0
    %1319 = vmatprep.subr.bf16.mxu0 0
    %1320 = vmatpush1.bf16.msra.mxu0 0
    %1321 = vmatprep.subr.bf16.mxu0 0
    %1322 = vmatpush1.bf16.msra.mxu0 0
    %1323 = vmatprep.subr.bf16.mxu0 0
    %1324 = vmatpush1.bf16.msra.mxu0 0
    %1325 = vmatprep.subr.bf16.mxu0 0
    %1326 = vmatpush1.bf16.msra.mxu0 0
    %1327 = vmatprep.subr.bf16.mxu0 0
    %1328 = vmatpush1.bf16.msra.mxu0 0
    %1329 = vmatprep.subr.bf16.mxu0 0
    %1330 = vmatpush1.bf16.msra.mxu0 0
    %1331 = vmatprep.subr.bf16.mxu0 0
    %1332 = vmatpush1.bf16.msra.mxu0 0
    %1333 = vmatprep.mubr.bf16.mxu0 0
    %1334 = vmatmul.mubr.bf16.gmra.mrb[0].mxu0 %v1299
    %v1335 = vpop.f32.mrb[0].mxu0
    %v1336 = vadd.f32 %v1284, %v1335
    %v1337 = vpop.f32.mrb[0].mxu0
    %v1338 = vpop.f32.mrb[0].mxu0
    %v1339 = vadd.f32 %v1284, %v1338
    %v1340 = vpop.f32.mrb[0].mxu0
    %1341 = vdwg.mxu0
    %v1342 = vpack.c.bf16 %v61, %v60
    %v1343 = vpack.c.bf16 %v63, %v62
    %1344 = vrot.lane.b32.xlu0 %v1294, 96
    %v1345 = vpop.permute.xlu0 %1344
    %1346 = vrot.lane.b32.xlu0 %v1295, 96
    %v1347 = vpop.permute.xlu0 %1346
    %1350 = vrot.lane.b32.xlu0 %v1284, 96
    %v1351 = vpop.permute.xlu0 %1350
    %v1354 = vsel %vm66, %v1342, 0
    %v1357 = vsel %vm66, %v1343, 0
    %1359 = vmatprep.subr.bf16.mxu0 0
    %1360 = vmatpush1.bf16.msra.mxu0 %v1345
    %1361 = vmatprep.subr.bf16.mxu0 0
    %1362 = vmatpush1.bf16.msra.mxu0 %v1347
    %1363 = vmatprep.subr.bf16.mxu0 0
    %1364 = vmatpush1.bf16.msra.mxu0 0
    %1365 = vmatprep.subr.bf16.mxu0 0
    %1366 = vmatpush1.bf16.msra.mxu0 0
    %1367 = vmatprep.subr.bf16.mxu0 0
    %1368 = vmatpush1.bf16.msra.mxu0 0
    %1369 = vmatprep.subr.bf16.mxu0 0
    %1370 = vmatpush1.bf16.msra.mxu0 0
    %1371 = vmatprep.subr.bf16.mxu0 0
    %1372 = vmatpush1.bf16.msra.mxu0 0
    %1373 = vmatprep.subr.bf16.mxu0 0
    %1374 = vmatpush1.bf16.msra.mxu0 0
    %1375 = vmatprep.subr.bf16.mxu0 0
    %1376 = vmatpush1.bf16.msra.mxu0 0
    %1377 = vmatprep.subr.bf16.mxu0 0
    %1378 = vmatpush1.bf16.msra.mxu0 0
    %1379 = vmatprep.subr.bf16.mxu0 0
    %1380 = vmatpush1.bf16.msra.mxu0 0
    %1381 = vmatprep.subr.bf16.mxu0 0
    %1382 = vmatpush1.bf16.msra.mxu0 0
    %1383 = vmatprep.subr.bf16.mxu0 0
    %1384 = vmatpush1.bf16.msra.mxu0 0
    %1385 = vmatprep.subr.bf16.mxu0 0
    %1386 = vmatpush1.bf16.msra.mxu0 0
    %1387 = vmatprep.subr.bf16.mxu0 0
    %1388 = vmatpush1.bf16.msra.mxu0 0
    %1389 = vmatprep.subr.bf16.mxu0 0
    %1390 = vmatpush1.bf16.msra.mxu0 0
    %1391 = vmatprep.mubr.bf16.mxu0 0
    %1392 = vmatmul.mubr.bf16.gmra.mrb[0].mxu0 %v1354
    %v1393 = vpop.f32.mrb[0].mxu0
    %v1394 = vadd.f32 %v1351, %v1393
    %v1395 = vpop.f32.mrb[0].mxu0
    %v1396 = vpop.f32.mrb[0].mxu0
    %v1397 = vadd.f32 %v1351, %v1396
    %v1398 = vpop.f32.mrb[0].mxu0
    %1399 = vmatprep.mubr.bf16.mxu0 0
    %1400 = vmatmul.mubr.bf16.gmra.mrb[0].mxu0 %v1357
    %v1401 = vpop.f32.mrb[0].mxu0
    %v1402 = vadd.f32 %v1351, %v1401
    %v1403 = vpop.f32.mrb[0].mxu0
    %v1404 = vpop.f32.mrb[0].mxu0
    %v1405 = vadd.f32 %v1351, %v1404
    %v1406 = vpop.f32.mrb[0].mxu0
    %1407 = vdwg.mxu0
    %1408 = vxpose.xlu0.b32.start [1/16] %v1394, 128
    %1409 = vxpose.xlu0.b32.cont [2/16] %v1397, 128
    %1410 = vxpose.xlu0.b32.cont [3/16] 0.0, 128
    %1411 = vxpose.xlu0.b32.cont [4/16] 0.0, 128
    %1412 = vxpose.xlu0.b32.cont [5/16] 0.0, 128
    %1413 = vxpose.xlu0.b32.cont [6/16] 0.0, 128
    %1414 = vxpose.xlu0.b32.cont [7/16] 0.0, 128
    %1415 = vxpose.xlu0.b32.cont [8/16] 0.0, 128
    %1416 = vxpose.xlu0.b32.cont [9/16] 0.0, 128
    %1417 = vxpose.xlu0.b32.cont [10/16] 0.0, 128
    %1418 = vxpose.xlu0.b32.cont [11/16] 0.0, 128
    %1419 = vxpose.xlu0.b32.cont [12/16] 0.0, 128
    %1420 = vxpose.xlu0.b32.cont [13/16] 0.0, 128
    %1421 = vxpose.xlu0.b32.cont [14/16] 0.0, 128
    %1422 = vxpose.xlu0.b32.cont [15/16] 0.0, 128
    %1423 = vxpose.xlu0.b32.end [16/16] 0.0, 128
    %v1424 = vpop.trf.xlu0
    %v1425 = vpop.trf.xlu0
    %v1426 = vpop.trf.xlu0
    %v1427 = vpop.trf.xlu0
    %v1428 = vpop.trf.xlu0
    %v1429 = vpop.trf.xlu0
    %v1430 = vpop.trf.xlu0
    %v1431 = vpop.trf.xlu0
    %v1432 = vpop.trf.xlu0
    %v1433 = vpop.trf.xlu0
    %v1434 = vpop.trf.xlu0
    %v1435 = vpop.trf.xlu0
    %v1436 = vpop.trf.xlu0
    %v1437 = vpop.trf.xlu0
    %v1438 = vpop.trf.xlu0
    %v1439 = vpop.trf.xlu0
    %v1440 = vpack.c.bf16 %v1336, %v1336
    %v1441 = vpack.c.bf16 %v1424, %v1424
    %v1443 = vsel %vm216, %v1440, 0
    %v1446 = vsel %vm220, %v1441, 0
    %1448 = vmatprep.subr.bf16.mxu0 0
    %1449 = vmatpush1.bf16.msra.mxu0 %v1446
    %1450 = vmatprep.subr.bf16.mxu0 0
    %1451 = vmatpush1.bf16.msra.mxu0 0
    %1452 = vmatprep.subr.bf16.mxu0 0
    %1453 = vmatpush1.bf16.msra.mxu0 0
    %1454 = vmatprep.subr.bf16.mxu0 0
    %1455 = vmatpush1.bf16.msra.mxu0 0
    %1456 = vmatprep.subr.bf16.mxu0 0
    %1457 = vmatpush1.bf16.msra.mxu0 0
    %1458 = vmatprep.subr.bf16.mxu0 0
    %1459 = vmatpush1.bf16.msra.mxu0 0
    %1460 = vmatprep.subr.bf16.mxu0 0
    %1461 = vmatpush1.bf16.msra.mxu0 0
    %1462 = vmatprep.subr.bf16.mxu0 0
    %1463 = vmatpush1.bf16.msra.mxu0 0
    %1464 = vmatprep.subr.bf16.mxu0 0
    %1465 = vmatpush1.bf16.msra.mxu0 0
    %1466 = vmatprep.subr.bf16.mxu0 0
    %1467 = vmatpush1.bf16.msra.mxu0 0
    %1468 = vmatprep.subr.bf16.mxu0 0
    %1469 = vmatpush1.bf16.msra.mxu0 0
    %1470 = vmatprep.subr.bf16.mxu0 0
    %1471 = vmatpush1.bf16.msra.mxu0 0
    %1472 = vmatprep.subr.bf16.mxu0 0
    %1473 = vmatpush1.bf16.msra.mxu0 0
    %1474 = vmatprep.subr.bf16.mxu0 0
    %1475 = vmatpush1.bf16.msra.mxu0 0
    %1476 = vmatprep.subr.bf16.mxu0 0
    %1477 = vmatpush1.bf16.msra.mxu0 0
    %1478 = vmatprep.subr.bf16.mxu0 0
    %1479 = vmatpush1.bf16.msra.mxu0 0
    %1480 = vmatprep.mubr.bf16.mxu0 0
    %1481 = vmatmul.mubr.bf16.gmra.mrb[0].mxu0 %v1443
    %v1482 = vpop.f32.mrb[0].mxu0
    %v1483 = vadd.f32 0.0, %v1482
    %v1484 = vpop.f32.mrb[0].mxu0
    %v1485 = vpop.f32.mrb[0].mxu0
    %v1486 = vpop.f32.mrb[0].mxu0
    %1487 = vdwg.mxu0
    %v1488 = vpack.c.bf16 %v1425, %v1425
    %1490 = vrot.lane.b32.xlu0 %v1440, 120
    %v1491 = vpop.permute.xlu0 %1490
    %v1493 = vsel %vm216, %v1491, 0
    %v1496 = vsel %vm220, %v1488, 0
    %1498 = vmatprep.subr.bf16.mxu0 0
    %1499 = vmatpush1.bf16.msra.mxu0 %v1496
    %1500 = vmatprep.subr.bf16.mxu0 0
    %1501 = vmatpush1.bf16.msra.mxu0 0
    %1502 = vmatprep.subr.bf16.mxu0 0
    %1503 = vmatpush1.bf16.msra.mxu0 0
    %1504 = vmatprep.subr.bf16.mxu0 0
    %1505 = vmatpush1.bf16.msra.mxu0 0
    %1506 = vmatprep.subr.bf16.mxu0 0
    %1507 = vmatpush1.bf16.msra.mxu0 0
    %1508 = vmatprep.subr.bf16.mxu0 0
    %1509 = vmatpush1.bf16.msra.mxu0 0
    %1510 = vmatprep.subr.bf16.mxu0 0
    %1511 = vmatpush1.bf16.msra.mxu0 0
    %1512 = vmatprep.subr.bf16.mxu0 0
    %1513 = vmatpush1.bf16.msra.mxu0 0
    %1514 = vmatprep.subr.bf16.mxu0 0
    %1515 = vmatpush1.bf16.msra.mxu0 0
    %1516 = vmatprep.subr.bf16.mxu0 0
    %1517 = vmatpush1.bf16.msra.mxu0 0
    %1518 = vmatprep.subr.bf16.mxu0 0
    %1519 = vmatpush1.bf16.msra.mxu0 0
    %1520 = vmatprep.subr.bf16.mxu0 0
    %1521 = vmatpush1.bf16.msra.mxu0 0
    %1522 = vmatprep.subr.bf16.mxu0 0
    %1523 = vmatpush1.bf16.msra.mxu0 0
    %1524 = vmatprep.subr.bf16.mxu0 0
    %1525 = vmatpush1.bf16.msra.mxu0 0
    %1526 = vmatprep.subr.bf16.mxu0 0
    %1527 = vmatpush1.bf16.msra.mxu0 0
    %1528 = vmatprep.subr.bf16.mxu0 0
    %1529 = vmatpush1.bf16.msra.mxu0 0
    %1530 = vmatprep.mubr.bf16.mxu0 0
    %1531 = vmatmul.mubr.bf16.gmra.mrb[0].mxu0 %v1493
    %v1532 = vpop.f32.mrb[0].mxu0
    %v1533 = vadd.f32 0.0, %v1532
    %v1534 = vpop.f32.mrb[0].mxu0
    %v1535 = vpop.f32.mrb[0].mxu0
    %v1536 = vpop.f32.mrb[0].mxu0
    %1537 = vdwg.mxu0
    %v1538 = vpack.c.bf16 %v1426, %v1426
    %1539 = vrot.lane.b32.xlu0 %v1440, 112
    %v1540 = vpop.permute.xlu0 %1539
    %v1542 = vsel %vm216, %v1540, 0
    %v1545 = vsel %vm220, %v1538, 0
    %1547 = vmatprep.subr.bf16.mxu0 0
    %1548 = vmatpush1.bf16.msra.mxu0 %v1545
    %1549 = vmatprep.subr.bf16.mxu0 0
    %1550 = vmatpush1.bf16.msra.mxu0 0
    %1551 = vmatprep.subr.bf16.mxu0 0
    %1552 = vmatpush1.bf16.msra.mxu0 0
    %1553 = vmatprep.subr.bf16.mxu0 0
    %1554 = vmatpush1.bf16.msra.mxu0 0
    %1555 = vmatprep.subr.bf16.mxu0 0
    %1556 = vmatpush1.bf16.msra.mxu0 0
    %1557 = vmatprep.subr.bf16.mxu0 0
    %1558 = vmatpush1.bf16.msra.mxu0 0
    %1559 = vmatprep.subr.bf16.mxu0 0
    %1560 = vmatpush1.bf16.msra.mxu0 0
    %1561 = vmatprep.subr.bf16.mxu0 0
    %1562 = vmatpush1.bf16.msra.mxu0 0
    %1563 = vmatprep.subr.bf16.mxu0 0
    %1564 = vmatpush1.bf16.msra.mxu0 0
    %1565 = vmatprep.subr.bf16.mxu0 0
    %1566 = vmatpush1.bf16.msra.mxu0 0
    %1567 = vmatprep.subr.bf16.mxu0 0
    %1568 = vmatpush1.bf16.msra.mxu0 0
    %1569 = vmatprep.subr.bf16.mxu0 0
    %1570 = vmatpush1.bf16.msra.mxu0 0
    %1571 = vmatprep.subr.bf16.mxu0 0
    %1572 = vmatpush1.bf16.msra.mxu0 0
    %1573 = vmatprep.subr.bf16.mxu0 0
    %1574 = vmatpush1.bf16.msra.mxu0 0
    %1575 = vmatprep.subr.bf16.mxu0 0
    %1576 = vmatpush1.bf16.msra.mxu0 0
    %1577 = vmatprep.subr.bf16.mxu0 0
    %1578 = vmatpush1.bf16.msra.mxu0 0
    %1579 = vmatprep.mubr.bf16.mxu0 0
    %1580 = vmatmul.mubr.bf16.gmra.mrb[0].mxu0 %v1542
    %v1581 = vpop.f32.mrb[0].mxu0
    %v1582 = vadd.f32 0.0, %v1581
    %v1583 = vpop.f32.mrb[0].mxu0
    %v1584 = vpop.f32.mrb[0].mxu0
    %v1585 = vpop.f32.mrb[0].mxu0
    %1586 = vdwg.mxu0
    %v1587 = vpack.c.bf16 %v1427, %v1427
    %1588 = vrot.lane.b32.xlu0 %v1440, 104
    %v1589 = vpop.permute.xlu0 %1588
    %v1591 = vsel %vm216, %v1589, 0
    %v1594 = vsel %vm220, %v1587, 0
    %1596 = vmatprep.subr.bf16.mxu0 0
    %1597 = vmatpush1.bf16.msra.mxu0 %v1594
    %1598 = vmatprep.subr.bf16.mxu0 0
    %1599 = vmatpush1.bf16.msra.mxu0 0
    %1600 = vmatprep.subr.bf16.mxu0 0
    %1601 = vmatpush1.bf16.msra.mxu0 0
    %1602 = vmatprep.subr.bf16.mxu0 0
    %1603 = vmatpush1.bf16.msra.mxu0 0
    %1604 = vmatprep.subr.bf16.mxu0 0
    %1605 = vmatpush1.bf16.msra.mxu0 0
    %1606 = vmatprep.subr.bf16.mxu0 0
    %1607 = vmatpush1.bf16.msra.mxu0 0
    %1608 = vmatprep.subr.bf16.mxu0 0
    %1609 = vmatpush1.bf16.msra.mxu0 0
    %1610 = vmatprep.subr.bf16.mxu0 0
    %1611 = vmatpush1.bf16.msra.mxu0 0
    %1612 = vmatprep.subr.bf16.mxu0 0
    %1613 = vmatpush1.bf16.msra.mxu0 0
    %1614 = vmatprep.subr.bf16.mxu0 0
    %1615 = vmatpush1.bf16.msra.mxu0 0
    %1616 = vmatprep.subr.bf16.mxu0 0
    %1617 = vmatpush1.bf16.msra.mxu0 0
    %1618 = vmatprep.subr.bf16.mxu0 0
    %1619 = vmatpush1.bf16.msra.mxu0 0
    %1620 = vmatprep.subr.bf16.mxu0 0
    %1621 = vmatpush1.bf16.msra.mxu0 0
    %1622 = vmatprep.subr.bf16.mxu0 0
    %1623 = vmatpush1.bf16.msra.mxu0 0
    %1624 = vmatprep.subr.bf16.mxu0 0
    %1625 = vmatpush1.bf16.msra.mxu0 0
    %1626 = vmatprep.subr.bf16.mxu0 0
    %1627 = vmatpush1.bf16.msra.mxu0 0
    %1628 = vmatprep.mubr.bf16.mxu0 0
    %1629 = vmatmul.mubr.bf16.gmra.mrb[0].mxu0 %v1591
    %v1630 = vpop.f32.mrb[0].mxu0
    %v1631 = vadd.f32 0.0, %v1630
    %v1632 = vpop.f32.mrb[0].mxu0
    %v1633 = vpop.f32.mrb[0].mxu0
    %v1634 = vpop.f32.mrb[0].mxu0
    %1635 = vdwg.mxu0
    %1636 = vxpose.xlu0.b32.start [1/16] %v1402, 128
    %1637 = vxpose.xlu0.b32.cont [2/16] %v1405, 128
    %1638 = vxpose.xlu0.b32.cont [3/16] 0.0, 128
    %1639 = vxpose.xlu0.b32.cont [4/16] 0.0, 128
    %1640 = vxpose.xlu0.b32.cont [5/16] 0.0, 128
    %1641 = vxpose.xlu0.b32.cont [6/16] 0.0, 128
    %1642 = vxpose.xlu0.b32.cont [7/16] 0.0, 128
    %1643 = vxpose.xlu0.b32.cont [8/16] 0.0, 128
    %1644 = vxpose.xlu0.b32.cont [9/16] 0.0, 128
    %1645 = vxpose.xlu0.b32.cont [10/16] 0.0, 128
    %1646 = vxpose.xlu0.b32.cont [11/16] 0.0, 128
    %1647 = vxpose.xlu0.b32.cont [12/16] 0.0, 128
    %1648 = vxpose.xlu0.b32.cont [13/16] 0.0, 128
    %1649 = vxpose.xlu0.b32.cont [14/16] 0.0, 128
    %1650 = vxpose.xlu0.b32.cont [15/16] 0.0, 128
    %1651 = vxpose.xlu0.b32.end [16/16] 0.0, 128
    %v1652 = vpop.trf.xlu0
    %v1653 = vpop.trf.xlu0
    %v1654 = vpop.trf.xlu0
    %v1655 = vpop.trf.xlu0
    %v1656 = vpop.trf.xlu0
    %v1657 = vpop.trf.xlu0
    %v1658 = vpop.trf.xlu0
    %v1659 = vpop.trf.xlu0
    %v1660 = vpop.trf.xlu0
    %v1661 = vpop.trf.xlu0
    %v1662 = vpop.trf.xlu0
    %v1663 = vpop.trf.xlu0
    %v1664 = vpop.trf.xlu0
    %v1665 = vpop.trf.xlu0
    %v1666 = vpop.trf.xlu0
    %v1667 = vpop.trf.xlu0
    %v1668 = vpack.c.bf16 %v1339, %v1339
    %v1669 = vpack.c.bf16 %v1652, %v1652
    %v1671 = vsel %vm216, %v1668, 0
    %v1674 = vsel %vm220, %v1669, 0
    %1676 = vmatprep.subr.bf16.mxu0 0
    %1677 = vmatpush1.bf16.msra.mxu0 %v1674
    %1678 = vmatprep.subr.bf16.mxu0 0
    %1679 = vmatpush1.bf16.msra.mxu0 0
    %1680 = vmatprep.subr.bf16.mxu0 0
    %1681 = vmatpush1.bf16.msra.mxu0 0
    %1682 = vmatprep.subr.bf16.mxu0 0
    %1683 = vmatpush1.bf16.msra.mxu0 0
    %1684 = vmatprep.subr.bf16.mxu0 0
    %1685 = vmatpush1.bf16.msra.mxu0 0
    %1686 = vmatprep.subr.bf16.mxu0 0
    %1687 = vmatpush1.bf16.msra.mxu0 0
    %1688 = vmatprep.subr.bf16.mxu0 0
    %1689 = vmatpush1.bf16.msra.mxu0 0
    %1690 = vmatprep.subr.bf16.mxu0 0
    %1691 = vmatpush1.bf16.msra.mxu0 0
    %1692 = vmatprep.subr.bf16.mxu0 0
    %1693 = vmatpush1.bf16.msra.mxu0 0
    %1694 = vmatprep.subr.bf16.mxu0 0
    %1695 = vmatpush1.bf16.msra.mxu0 0
    %1696 = vmatprep.subr.bf16.mxu0 0
    %1697 = vmatpush1.bf16.msra.mxu0 0
    %1698 = vmatprep.subr.bf16.mxu0 0
    %1699 = vmatpush1.bf16.msra.mxu0 0
    %1700 = vmatprep.subr.bf16.mxu0 0
    %1701 = vmatpush1.bf16.msra.mxu0 0
    %1702 = vmatprep.subr.bf16.mxu0 0
    %1703 = vmatpush1.bf16.msra.mxu0 0
    %1704 = vmatprep.subr.bf16.mxu0 0
    %1705 = vmatpush1.bf16.msra.mxu0 0
    %1706 = vmatprep.subr.bf16.mxu0 0
    %1707 = vmatpush1.bf16.msra.mxu0 0
    %1708 = vmatprep.mubr.bf16.mxu0 0
    %1709 = vmatmul.mubr.bf16.gmra.mrb[0].mxu0 %v1671
    %v1710 = vpop.f32.mrb[0].mxu0
    %v1711 = vadd.f32 0.0, %v1710
    %v1712 = vpop.f32.mrb[0].mxu0
    %v1713 = vpop.f32.mrb[0].mxu0
    %v1714 = vpop.f32.mrb[0].mxu0
    %1715 = vdwg.mxu0
    %v1716 = vpack.c.bf16 %v1653, %v1653
    %1718 = vrot.lane.b32.xlu0 %v1668, 120
    %v1719 = vpop.permute.xlu0 %1718
    %v1721 = vsel %vm216, %v1719, 0
    %v1724 = vsel %vm220, %v1716, 0
    %1726 = vmatprep.subr.bf16.mxu0 0
    %1727 = vmatpush1.bf16.msra.mxu0 %v1724
    %1728 = vmatprep.subr.bf16.mxu0 0
    %1729 = vmatpush1.bf16.msra.mxu0 0
    %1730 = vmatprep.subr.bf16.mxu0 0
    %1731 = vmatpush1.bf16.msra.mxu0 0
    %1732 = vmatprep.subr.bf16.mxu0 0
    %1733 = vmatpush1.bf16.msra.mxu0 0
    %1734 = vmatprep.subr.bf16.mxu0 0
    %1735 = vmatpush1.bf16.msra.mxu0 0
    %1736 = vmatprep.subr.bf16.mxu0 0
    %1737 = vmatpush1.bf16.msra.mxu0 0
    %1738 = vmatprep.subr.bf16.mxu0 0
    %1739 = vmatpush1.bf16.msra.mxu0 0
    %1740 = vmatprep.subr.bf16.mxu0 0
    %1741 = vmatpush1.bf16.msra.mxu0 0
    %1742 = vmatprep.subr.bf16.mxu0 0
    %1743 = vmatpush1.bf16.msra.mxu0 0
    %1744 = vmatprep.subr.bf16.mxu0 0
    %1745 = vmatpush1.bf16.msra.mxu0 0
    %1746 = vmatprep.subr.bf16.mxu0 0
    %1747 = vmatpush1.bf16.msra.mxu0 0
    %1748 = vmatprep.subr.bf16.mxu0 0
    %1749 = vmatpush1.bf16.msra.mxu0 0
    %1750 = vmatprep.subr.bf16.mxu0 0
    %1751 = vmatpush1.bf16.msra.mxu0 0
    %1752 = vmatprep.subr.bf16.mxu0 0
    %1753 = vmatpush1.bf16.msra.mxu0 0
    %1754 = vmatprep.subr.bf16.mxu0 0
    %1755 = vmatpush1.bf16.msra.mxu0 0
    %1756 = vmatprep.subr.bf16.mxu0 0
    %1757 = vmatpush1.bf16.msra.mxu0 0
    %1758 = vmatprep.mubr.bf16.mxu0 0
    %1759 = vmatmul.mubr.bf16.gmra.mrb[0].mxu0 %v1721
    %v1760 = vpop.f32.mrb[0].mxu0
    %v1761 = vadd.f32 0.0, %v1760
    %v1762 = vpop.f32.mrb[0].mxu0
    %v1763 = vpop.f32.mrb[0].mxu0
    %v1764 = vpop.f32.mrb[0].mxu0
    %1765 = vdwg.mxu0
    %v1766 = vpack.c.bf16 %v1654, %v1654
    %1767 = vrot.lane.b32.xlu0 %v1668, 112
    %v1768 = vpop.permute.xlu0 %1767
    %v1770 = vsel %vm216, %v1768, 0
    %v1773 = vsel %vm220, %v1766, 0
    %1775 = vmatprep.subr.bf16.mxu0 0
    %1776 = vmatpush1.bf16.msra.mxu0 %v1773
    %1777 = vmatprep.subr.bf16.mxu0 0
    %1778 = vmatpush1.bf16.msra.mxu0 0
    %1779 = vmatprep.subr.bf16.mxu0 0
    %1780 = vmatpush1.bf16.msra.mxu0 0
    %1781 = vmatprep.subr.bf16.mxu0 0
    %1782 = vmatpush1.bf16.msra.mxu0 0
    %1783 = vmatprep.subr.bf16.mxu0 0
    %1784 = vmatpush1.bf16.msra.mxu0 0
    %1785 = vmatprep.subr.bf16.mxu0 0
    %1786 = vmatpush1.bf16.msra.mxu0 0
    %1787 = vmatprep.subr.bf16.mxu0 0
    %1788 = vmatpush1.bf16.msra.mxu0 0
    %1789 = vmatprep.subr.bf16.mxu0 0
    %1790 = vmatpush1.bf16.msra.mxu0 0
    %1791 = vmatprep.subr.bf16.mxu0 0
    %1792 = vmatpush1.bf16.msra.mxu0 0
    %1793 = vmatprep.subr.bf16.mxu0 0
    %1794 = vmatpush1.bf16.msra.mxu0 0
    %1795 = vmatprep.subr.bf16.mxu0 0
    %1796 = vmatpush1.bf16.msra.mxu0 0
    %1797 = vmatprep.subr.bf16.mxu0 0
    %1798 = vmatpush1.bf16.msra.mxu0 0
    %1799 = vmatprep.subr.bf16.mxu0 0
    %1800 = vmatpush1.bf16.msra.mxu0 0
    %1801 = vmatprep.subr.bf16.mxu0 0
    %1802 = vmatpush1.bf16.msra.mxu0 0
    %1803 = vmatprep.subr.bf16.mxu0 0
    %1804 = vmatpush1.bf16.msra.mxu0 0
    %1805 = vmatprep.subr.bf16.mxu0 0
    %1806 = vmatpush1.bf16.msra.mxu0 0
    %1807 = vmatprep.mubr.bf16.mxu0 0
    %1808 = vmatmul.mubr.bf16.gmra.mrb[0].mxu0 %v1770
    %v1809 = vpop.f32.mrb[0].mxu0
    %v1810 = vadd.f32 0.0, %v1809
    %v1811 = vpop.f32.mrb[0].mxu0
    %v1812 = vpop.f32.mrb[0].mxu0
    %v1813 = vpop.f32.mrb[0].mxu0
    %1814 = vdwg.mxu0
    %v1815 = vpack.c.bf16 %v1655, %v1655
    %1816 = vrot.lane.b32.xlu0 %v1668, 104
    %v1817 = vpop.permute.xlu0 %1816
    %v1819 = vsel %vm216, %v1817, 0
    %v1822 = vsel %vm220, %v1815, 0
    %1824 = vmatprep.subr.bf16.mxu0 0
    %1825 = vmatpush1.bf16.msra.mxu0 %v1822
    %1826 = vmatprep.subr.bf16.mxu0 0
    %1827 = vmatpush1.bf16.msra.mxu0 0
    %1828 = vmatprep.subr.bf16.mxu0 0
    %1829 = vmatpush1.bf16.msra.mxu0 0
    %1830 = vmatprep.subr.bf16.mxu0 0
    %1831 = vmatpush1.bf16.msra.mxu0 0
    %1832 = vmatprep.subr.bf16.mxu0 0
    %1833 = vmatpush1.bf16.msra.mxu0 0
    %1834 = vmatprep.subr.bf16.mxu0 0
    %1835 = vmatpush1.bf16.msra.mxu0 0
    %1836 = vmatprep.subr.bf16.mxu0 0
    %1837 = vmatpush1.bf16.msra.mxu0 0
    %1838 = vmatprep.subr.bf16.mxu0 0
    %1839 = vmatpush1.bf16.msra.mxu0 0
    %1840 = vmatprep.subr.bf16.mxu0 0
    %1841 = vmatpush1.bf16.msra.mxu0 0
    %1842 = vmatprep.subr.bf16.mxu0 0
    %1843 = vmatpush1.bf16.msra.mxu0 0
    %1844 = vmatprep.subr.bf16.mxu0 0
    %1845 = vmatpush1.bf16.msra.mxu0 0
    %1846 = vmatprep.subr.bf16.mxu0 0
    %1847 = vmatpush1.bf16.msra.mxu0 0
    %1848 = vmatprep.subr.bf16.mxu0 0
    %1849 = vmatpush1.bf16.msra.mxu0 0
    %1850 = vmatprep.subr.bf16.mxu0 0
    %1851 = vmatpush1.bf16.msra.mxu0 0
    %1852 = vmatprep.subr.bf16.mxu0 0
    %1853 = vmatpush1.bf16.msra.mxu0 0
    %1854 = vmatprep.subr.bf16.mxu0 0
    %1855 = vmatpush1.bf16.msra.mxu0 0
    %1856 = vmatprep.mubr.bf16.mxu0 0
    %1857 = vmatmul.mubr.bf16.gmra.mrb[0].mxu0 %v1819
    %v1858 = vpop.f32.mrb[0].mxu0
    %v1859 = vadd.f32 0.0, %v1858
    %v1860 = vpop.f32.mrb[0].mxu0
    %v1861 = vpop.f32.mrb[0].mxu0
    %v1862 = vpop.f32.mrb[0].mxu0
    %1863 = vdwg.mxu0
    %v1864 = vld [vmem:[%s2] sm:$0xff]
    %v1865 = vld [vmem:[%s2 + $0x8] sm:$0xff]
    %v1866 = vld [vmem:[%s2 + $0x10] sm:$0xff]
    %v1867 = vld [vmem:[%s2 + $0x18] sm:$0xff]
    %v1868 = vld [vmem:[%s2 + $0x20] sm:$0xff]
    %v1869 = vld [vmem:[%s2 + $0x28] sm:$0xff]
    %v1870 = vld [vmem:[%s2 + $0x30] sm:$0xff]
    %v1871 = vld [vmem:[%s2 + $0x38] sm:$0xff]
    %v1872 = vadd.f32 %v1483, %v1864
    %v1873 = vadd.f32 %v1533, %v1865
    %v1874 = vadd.f32 %v1582, %v1866
    %v1875 = vadd.f32 %v1631, %v1867
    %v1876 = vadd.f32 %v1711, %v1868
    %v1877 = vadd.f32 %v1761, %v1869
    %v1878 = vadd.f32 %v1810, %v1870
    %v1879 = vadd.f32 %v1859, %v1871
    %v1880 = vsel %vm941, %v1872, -inf
    %1881 = vmax.xlane.f32.xlu0 %v1880
    %v1882 = vpop.xlane.xlu0 %1881
    %v1883 = vsel %vm941, %v1873, -inf
    %1884 = vmax.xlane.f32.xlu0 %v1883
    %v1885 = vpop.xlane.xlu0 %1884
    %v1886 = vsel %vm941, %v1874, -inf
    %1887 = vmax.xlane.f32.xlu0 %v1886
    %v1888 = vpop.xlane.xlu0 %1887
    %v1889 = vsel %vm941, %v1875, -inf
    %1890 = vmax.xlane.f32.xlu0 %v1889
    %v1891 = vpop.xlane.xlu0 %1890
    %v1892 = vsel %vm941, %v1876, -inf
    %1893 = vmax.xlane.f32.xlu0 %v1892
    %v1894 = vpop.xlane.xlu0 %1893
    %v1895 = vsel %vm941, %v1877, -inf
    %1896 = vmax.xlane.f32.xlu0 %v1895
    %v1897 = vpop.xlane.xlu0 %1896
    %v1898 = vsel %vm941, %v1878, -inf
    %1899 = vmax.xlane.f32.xlu0 %v1898
    %v1900 = vpop.xlane.xlu0 %1899
    %v1901 = vsel %vm941, %v1879, -inf
    %1902 = vmax.xlane.f32.xlu0 %v1901
    %v1903 = vpop.xlane.xlu0 %1902
    %v1904 = vsub.f32 %v1872, %v1882
    %v1905 = vsub.f32 %v1873, %v1885
    %v1906 = vsub.f32 %v1874, %v1888
    %v1907 = vsub.f32 %v1875, %v1891
    %v1908 = vsub.f32 %v1876, %v1894
    %v1909 = vsub.f32 %v1877, %v1897
    %v1910 = vsub.f32 %v1878, %v1900
    %v1911 = vsub.f32 %v1879, %v1903
    %v1912 = vmul.f32 %v1904, 1.442695
    %v1913 = vpow.pop %v1912
    %v1914 = vmul.f32 %v1905, 1.442695
    %v1915 = vpow.pop %v1914
    %v1916 = vmul.f32 %v1906, 1.442695
    %v1917 = vpow.pop %v1916
    %v1918 = vmul.f32 %v1907, 1.442695
    %v1919 = vpow.pop %v1918
    %v1920 = vmul.f32 %v1908, 1.442695
    %v1921 = vpow.pop %v1920
    %v1922 = vmul.f32 %v1909, 1.442695
    %v1923 = vpow.pop %v1922
    %v1924 = vmul.f32 %v1910, 1.442695
    %v1925 = vpow.pop %v1924
    %v1926 = vmul.f32 %v1911, 1.442695
    %v1927 = vpow.pop %v1926
    %v1928 = vsel %vm941, %v1913, 0.0
    %1929 = vadd.xlane.f32.xlu0 %v1928
    %v1930 = vpop.xlane.xlu0 %1929
    %v1931 = vsel %vm941, %v1915, 0.0
    %1932 = vadd.xlane.f32.xlu0 %v1931
    %v1933 = vpop.xlane.xlu0 %1932
    %v1934 = vsel %vm941, %v1917, 0.0
    %1935 = vadd.xlane.f32.xlu0 %v1934
    %v1936 = vpop.xlane.xlu0 %1935
    %v1937 = vsel %vm941, %v1919, 0.0
    %1938 = vadd.xlane.f32.xlu0 %v1937
    %v1939 = vpop.xlane.xlu0 %1938
    %v1940 = vsel %vm941, %v1921, 0.0
    %1941 = vadd.xlane.f32.xlu0 %v1940
    %v1942 = vpop.xlane.xlu0 %1941
    %v1943 = vsel %vm941, %v1923, 0.0
    %1944 = vadd.xlane.f32.xlu0 %v1943
    %v1945 = vpop.xlane.xlu0 %1944
    %v1946 = vsel %vm941, %v1925, 0.0
    %1947 = vadd.xlane.f32.xlu0 %v1946
    %v1948 = vpop.xlane.xlu0 %1947
    %v1949 = vsel %vm941, %v1927, 0.0
    %1950 = vadd.xlane.f32.xlu0 %v1949
    %v1951 = vpop.xlane.xlu0 %1950
    %v1952 = vrcp.pop %v1930
    %v1953 = vrcp.pop %v1933
    %v1954 = vrcp.pop %v1936
    %v1955 = vrcp.pop %v1939
    %v1956 = vrcp.pop %v1942
    %v1957 = vrcp.pop %v1945
    %v1958 = vrcp.pop %v1948
    %v1959 = vrcp.pop %v1951
    %v1960 = vmul.f32 %v1913, %v1952
    %v1961 = vmul.f32 %v1915, %v1953
    %v1962 = vmul.f32 %v1917, %v1954
    %v1963 = vmul.f32 %v1919, %v1955
    %v1964 = vmul.f32 %v1921, %v1956
    %v1965 = vmul.f32 %v1923, %v1957
    %v1966 = vmul.f32 %v1925, %v1958
    %v1967 = vmul.f32 %v1927, %v1959
    %v1968 = vpack.c.bf16 %v1960, %v1960
    %v1969 = vpack.c.bf16 %v1397, %v1394
    %1971 = vrot.lane.b32.xlu0 %v1969, 96
    %v1972 = vpop.permute.xlu0 %1971
    %v1975 = vsel %vm941, %v1968, 0
    %1977 = vmatprep.subr.bf16.mxu0 0
    %1978 = vmatpush1.bf16.msra.mxu0 %v1972
    %1979 = vmatprep.subr.bf16.mxu0 0
    %1980 = vmatpush1.bf16.msra.mxu0 0
    %1981 = vmatprep.subr.bf16.mxu0 0
    %1982 = vmatpush1.bf16.msra.mxu0 0
    %1983 = vmatprep.subr.bf16.mxu0 0
    %1984 = vmatpush1.bf16.msra.mxu0 0
    %1985 = vmatprep.subr.bf16.mxu0 0
    %1986 = vmatpush1.bf16.msra.mxu0 0
    %1987 = vmatprep.subr.bf16.mxu0 0
    %1988 = vmatpush1.bf16.msra.mxu0 0
    %1989 = vmatprep.subr.bf16.mxu0 0
    %1990 = vmatpush1.bf16.msra.mxu0 0
    %1991 = vmatprep.subr.bf16.mxu0 0
    %1992 = vmatpush1.bf16.msra.mxu0 0
    %1993 = vmatprep.subr.bf16.mxu0 0
    %1994 = vmatpush1.bf16.msra.mxu0 0
    %1995 = vmatprep.subr.bf16.mxu0 0
    %1996 = vmatpush1.bf16.msra.mxu0 0
    %1997 = vmatprep.subr.bf16.mxu0 0
    %1998 = vmatpush1.bf16.msra.mxu0 0
    %1999 = vmatprep.subr.bf16.mxu0 0
    %2000 = vmatpush1.bf16.msra.mxu0 0
    %2001 = vmatprep.subr.bf16.mxu0 0
    %2002 = vmatpush1.bf16.msra.mxu0 0
    %2003 = vmatprep.subr.bf16.mxu0 0
    %2004 = vmatpush1.bf16.msra.mxu0 0
    %2005 = vmatprep.subr.bf16.mxu0 0
    %2006 = vmatpush1.bf16.msra.mxu0 0
    %2007 = vmatprep.subr.bf16.mxu0 0
    %2008 = vmatpush1.bf16.msra.mxu0 0
    %2009 = vmatprep.mubr.bf16.mxu0 0
    %2010 = vmatmul.mubr.bf16.gmra.mrb[0].mxu0 %v1975
    %v2011 = vpop.f32.mrb[0].mxu0
    %v2012 = vadd.f32 0.0, %v2011
    %v2013 = vpop.f32.mrb[0].mxu0
    %v2014 = vpop.f32.mrb[0].mxu0
    %v2015 = vpop.f32.mrb[0].mxu0
    %2016 = vdwg.mxu0
    %v2017 = vpack.c.bf16 %v1961, %v1961
    %2018 = vrot.lane.b32.xlu0 %v1969, 88
    %v2019 = vpop.permute.xlu0 %2018
    %v2022 = vsel %vm941, %v2017, 0
    %2024 = vmatprep.subr.bf16.mxu0 0
    %2025 = vmatpush1.bf16.msra.mxu0 %v2019
    %2026 = vmatprep.subr.bf16.mxu0 0
    %2027 = vmatpush1.bf16.msra.mxu0 0
    %2028 = vmatprep.subr.bf16.mxu0 0
    %2029 = vmatpush1.bf16.msra.mxu0 0
    %2030 = vmatprep.subr.bf16.mxu0 0
    %2031 = vmatpush1.bf16.msra.mxu0 0
    %2032 = vmatprep.subr.bf16.mxu0 0
    %2033 = vmatpush1.bf16.msra.mxu0 0
    %2034 = vmatprep.subr.bf16.mxu0 0
    %2035 = vmatpush1.bf16.msra.mxu0 0
    %2036 = vmatprep.subr.bf16.mxu0 0
    %2037 = vmatpush1.bf16.msra.mxu0 0
    %2038 = vmatprep.subr.bf16.mxu0 0
    %2039 = vmatpush1.bf16.msra.mxu0 0
    %2040 = vmatprep.subr.bf16.mxu0 0
    %2041 = vmatpush1.bf16.msra.mxu0 0
    %2042 = vmatprep.subr.bf16.mxu0 0
    %2043 = vmatpush1.bf16.msra.mxu0 0
    %2044 = vmatprep.subr.bf16.mxu0 0
    %2045 = vmatpush1.bf16.msra.mxu0 0
    %2046 = vmatprep.subr.bf16.mxu0 0
    %2047 = vmatpush1.bf16.msra.mxu0 0
    %2048 = vmatprep.subr.bf16.mxu0 0
    %2049 = vmatpush1.bf16.msra.mxu0 0
    %2050 = vmatprep.subr.bf16.mxu0 0
    %2051 = vmatpush1.bf16.msra.mxu0 0
    %2052 = vmatprep.subr.bf16.mxu0 0
    %2053 = vmatpush1.bf16.msra.mxu0 0
    %2054 = vmatprep.subr.bf16.mxu0 0
    %2055 = vmatpush1.bf16.msra.mxu0 0
    %2056 = vmatprep.mubr.bf16.mxu0 0
    %2057 = vmatmul.mubr.bf16.gmra.mrb[0].mxu0 %v2022
    %v2058 = vpop.f32.mrb[0].mxu0
    %v2059 = vadd.f32 0.0, %v2058
    %v2060 = vpop.f32.mrb[0].mxu0
    %v2061 = vpop.f32.mrb[0].mxu0
    %v2062 = vpop.f32.mrb[0].mxu0
    %2063 = vdwg.mxu0
    %v2064 = vpack.c.bf16 %v1962, %v1962
    %2065 = vrot.lane.b32.xlu0 %v1969, 80
    %v2066 = vpop.permute.xlu0 %2065
    %v2069 = vsel %vm941, %v2064, 0
    %2071 = vmatprep.subr.bf16.mxu0 0
    %2072 = vmatpush1.bf16.msra.mxu0 %v2066
    %2073 = vmatprep.subr.bf16.mxu0 0
    %2074 = vmatpush1.bf16.msra.mxu0 0
    %2075 = vmatprep.subr.bf16.mxu0 0
    %2076 = vmatpush1.bf16.msra.mxu0 0
    %2077 = vmatprep.subr.bf16.mxu0 0
    %2078 = vmatpush1.bf16.msra.mxu0 0
    %2079 = vmatprep.subr.bf16.mxu0 0
    %2080 = vmatpush1.bf16.msra.mxu0 0
    %2081 = vmatprep.subr.bf16.mxu0 0
    %2082 = vmatpush1.bf16.msra.mxu0 0
    %2083 = vmatprep.subr.bf16.mxu0 0
    %2084 = vmatpush1.bf16.msra.mxu0 0
    %2085 = vmatprep.subr.bf16.mxu0 0
    %2086 = vmatpush1.bf16.msra.mxu0 0
    %2087 = vmatprep.subr.bf16.mxu0 0
    %2088 = vmatpush1.bf16.msra.mxu0 0
    %2089 = vmatprep.subr.bf16.mxu0 0
    %2090 = vmatpush1.bf16.msra.mxu0 0
    %2091 = vmatprep.subr.bf16.mxu0 0
    %2092 = vmatpush1.bf16.msra.mxu0 0
    %2093 = vmatprep.subr.bf16.mxu0 0
    %2094 = vmatpush1.bf16.msra.mxu0 0
    %2095 = vmatprep.subr.bf16.mxu0 0
    %2096 = vmatpush1.bf16.msra.mxu0 0
    %2097 = vmatprep.subr.bf16.mxu0 0
    %2098 = vmatpush1.bf16.msra.mxu0 0
    %2099 = vmatprep.subr.bf16.mxu0 0
    %2100 = vmatpush1.bf16.msra.mxu0 0
    %2101 = vmatprep.subr.bf16.mxu0 0
    %2102 = vmatpush1.bf16.msra.mxu0 0
    %2103 = vmatprep.mubr.bf16.mxu0 0
    %2104 = vmatmul.mubr.bf16.gmra.mrb[0].mxu0 %v2069
    %v2105 = vpop.f32.mrb[0].mxu0
    %v2106 = vadd.f32 0.0, %v2105
    %v2107 = vpop.f32.mrb[0].mxu0
    %v2108 = vpop.f32.mrb[0].mxu0
    %v2109 = vpop.f32.mrb[0].mxu0
    %2110 = vdwg.mxu0
    %v2111 = vpack.c.bf16 %v1963, %v1963
    %2112 = vrot.lane.b32.xlu0 %v1969, 72
    %v2113 = vpop.permute.xlu0 %2112
    %v2116 = vsel %vm941, %v2111, 0
    %2118 = vmatprep.subr.bf16.mxu0 0
    %2119 = vmatpush1.bf16.msra.mxu0 %v2113
    %2120 = vmatprep.subr.bf16.mxu0 0
    %2121 = vmatpush1.bf16.msra.mxu0 0
    %2122 = vmatprep.subr.bf16.mxu0 0
    %2123 = vmatpush1.bf16.msra.mxu0 0
    %2124 = vmatprep.subr.bf16.mxu0 0
    %2125 = vmatpush1.bf16.msra.mxu0 0
    %2126 = vmatprep.subr.bf16.mxu0 0
    %2127 = vmatpush1.bf16.msra.mxu0 0
    %2128 = vmatprep.subr.bf16.mxu0 0
    %2129 = vmatpush1.bf16.msra.mxu0 0
    %2130 = vmatprep.subr.bf16.mxu0 0
    %2131 = vmatpush1.bf16.msra.mxu0 0
    %2132 = vmatprep.subr.bf16.mxu0 0
    %2133 = vmatpush1.bf16.msra.mxu0 0
    %2134 = vmatprep.subr.bf16.mxu0 0
    %2135 = vmatpush1.bf16.msra.mxu0 0
    %2136 = vmatprep.subr.bf16.mxu0 0
    %2137 = vmatpush1.bf16.msra.mxu0 0
    %2138 = vmatprep.subr.bf16.mxu0 0
    %2139 = vmatpush1.bf16.msra.mxu0 0
    %2140 = vmatprep.subr.bf16.mxu0 0
    %2141 = vmatpush1.bf16.msra.mxu0 0
    %2142 = vmatprep.subr.bf16.mxu0 0
    %2143 = vmatpush1.bf16.msra.mxu0 0
    %2144 = vmatprep.subr.bf16.mxu0 0
    %2145 = vmatpush1.bf16.msra.mxu0 0
    %2146 = vmatprep.subr.bf16.mxu0 0
    %2147 = vmatpush1.bf16.msra.mxu0 0
    %2148 = vmatprep.subr.bf16.mxu0 0
    %2149 = vmatpush1.bf16.msra.mxu0 0
    %2150 = vmatprep.mubr.bf16.mxu0 0
    %2151 = vmatmul.mubr.bf16.gmra.mrb[0].mxu0 %v2116
    %v2152 = vpop.f32.mrb[0].mxu0
    %v2153 = vadd.f32 0.0, %v2152
    %v2154 = vpop.f32.mrb[0].mxu0
    %v2155 = vpop.f32.mrb[0].mxu0
    %v2156 = vpop.f32.mrb[0].mxu0
    %2157 = vdwg.mxu0
    %2159 = vrot.lane.b32.xlu0 %v2059, 8
    %v2160 = vpop.permute.xlu0 %2159
    %2163 = vrot.lane.b32.xlu0 %v2106, 16
    %v2164 = vpop.permute.xlu0 %2163
    %2167 = vrot.lane.b32.xlu0 %v2153, 24
    %v2168 = vpop.permute.xlu0 %2167
    %v2170 = vsel %vm216, %v2012, %v2160
    %v2171 = vsel %vm941, %v2170, %v2164
    %v2172 = vsel %vm943, %v2171, %v2168
    %v2173 = vpack.c.bf16 %v1964, %v1964
    %v2174 = vpack.c.bf16 %v1405, %v1402
    %2176 = vrot.lane.b32.xlu0 %v2174, 96
    %v2177 = vpop.permute.xlu0 %2176
    %v2180 = vsel %vm941, %v2173, 0
    %2182 = vmatprep.subr.bf16.mxu0 0
    %2183 = vmatpush1.bf16.msra.mxu0 %v2177
    %2184 = vmatprep.subr.bf16.mxu0 0
    %2185 = vmatpush1.bf16.msra.mxu0 0
    %2186 = vmatprep.subr.bf16.mxu0 0
    %2187 = vmatpush1.bf16.msra.mxu0 0
    %2188 = vmatprep.subr.bf16.mxu0 0
    %2189 = vmatpush1.bf16.msra.mxu0 0
    %2190 = vmatprep.subr.bf16.mxu0 0
    %2191 = vmatpush1.bf16.msra.mxu0 0
    %2192 = vmatprep.subr.bf16.mxu0 0
    %2193 = vmatpush1.bf16.msra.mxu0 0
    %2194 = vmatprep.subr.bf16.mxu0 0
    %2195 = vmatpush1.bf16.msra.mxu0 0
    %2196 = vmatprep.subr.bf16.mxu0 0
    %2197 = vmatpush1.bf16.msra.mxu0 0
    %2198 = vmatprep.subr.bf16.mxu0 0
    %2199 = vmatpush1.bf16.msra.mxu0 0
    %2200 = vmatprep.subr.bf16.mxu0 0
    %2201 = vmatpush1.bf16.msra.mxu0 0
    %2202 = vmatprep.subr.bf16.mxu0 0
    %2203 = vmatpush1.bf16.msra.mxu0 0
    %2204 = vmatprep.subr.bf16.mxu0 0
    %2205 = vmatpush1.bf16.msra.mxu0 0
    %2206 = vmatprep.subr.bf16.mxu0 0
    %2207 = vmatpush1.bf16.msra.mxu0 0
    %2208 = vmatprep.subr.bf16.mxu0 0
    %2209 = vmatpush1.bf16.msra.mxu0 0
    %2210 = vmatprep.subr.bf16.mxu0 0
    %2211 = vmatpush1.bf16.msra.mxu0 0
    %2212 = vmatprep.subr.bf16.mxu0 0
    %2213 = vmatpush1.bf16.msra.mxu0 0
    %2214 = vmatprep.mubr.bf16.mxu0 0
    %2215 = vmatmul.mubr.bf16.gmra.mrb[0].mxu0 %v2180
    %v2216 = vpop.f32.mrb[0].mxu0
    %v2217 = vadd.f32 0.0, %v2216
    %v2218 = vpop.f32.mrb[0].mxu0
    %v2219 = vpop.f32.mrb[0].mxu0
    %v2220 = vpop.f32.mrb[0].mxu0
    %2221 = vdwg.mxu0
    %v2222 = vpack.c.bf16 %v1965, %v1965
    %2223 = vrot.lane.b32.xlu0 %v2174, 88
    %v2224 = vpop.permute.xlu0 %2223
    %v2227 = vsel %vm941, %v2222, 0
    %2229 = vmatprep.subr.bf16.mxu0 0
    %2230 = vmatpush1.bf16.msra.mxu0 %v2224
    %2231 = vmatprep.subr.bf16.mxu0 0
    %2232 = vmatpush1.bf16.msra.mxu0 0
    %2233 = vmatprep.subr.bf16.mxu0 0
    %2234 = vmatpush1.bf16.msra.mxu0 0
    %2235 = vmatprep.subr.bf16.mxu0 0
    %2236 = vmatpush1.bf16.msra.mxu0 0
    %2237 = vmatprep.subr.bf16.mxu0 0
    %2238 = vmatpush1.bf16.msra.mxu0 0
    %2239 = vmatprep.subr.bf16.mxu0 0
    %2240 = vmatpush1.bf16.msra.mxu0 0
    %2241 = vmatprep.subr.bf16.mxu0 0
    %2242 = vmatpush1.bf16.msra.mxu0 0
    %2243 = vmatprep.subr.bf16.mxu0 0
    %2244 = vmatpush1.bf16.msra.mxu0 0
    %2245 = vmatprep.subr.bf16.mxu0 0
    %2246 = vmatpush1.bf16.msra.mxu0 0
    %2247 = vmatprep.subr.bf16.mxu0 0
    %2248 = vmatpush1.bf16.msra.mxu0 0
    %2249 = vmatprep.subr.bf16.mxu0 0
    %2250 = vmatpush1.bf16.msra.mxu0 0
    %2251 = vmatprep.subr.bf16.mxu0 0
    %2252 = vmatpush1.bf16.msra.mxu0 0
    %2253 = vmatprep.subr.bf16.mxu0 0
    %2254 = vmatpush1.bf16.msra.mxu0 0
    %2255 = vmatprep.subr.bf16.mxu0 0
    %2256 = vmatpush1.bf16.msra.mxu0 0
    %2257 = vmatprep.subr.bf16.mxu0 0
    %2258 = vmatpush1.bf16.msra.mxu0 0
    %2259 = vmatprep.subr.bf16.mxu0 0
    %2260 = vmatpush1.bf16.msra.mxu0 0
    %2261 = vmatprep.mubr.bf16.mxu0 0
    %2262 = vmatmul.mubr.bf16.gmra.mrb[0].mxu0 %v2227
    %v2263 = vpop.f32.mrb[0].mxu0
    %v2264 = vadd.f32 0.0, %v2263
    %v2265 = vpop.f32.mrb[0].mxu0
    %v2266 = vpop.f32.mrb[0].mxu0
    %v2267 = vpop.f32.mrb[0].mxu0
    %2268 = vdwg.mxu0
    %v2269 = vpack.c.bf16 %v1966, %v1966
    %2270 = vrot.lane.b32.xlu0 %v2174, 80
    %v2271 = vpop.permute.xlu0 %2270
    %v2274 = vsel %vm941, %v2269, 0
    %2276 = vmatprep.subr.bf16.mxu0 0
    %2277 = vmatpush1.bf16.msra.mxu0 %v2271
    %2278 = vmatprep.subr.bf16.mxu0 0
    %2279 = vmatpush1.bf16.msra.mxu0 0
    %2280 = vmatprep.subr.bf16.mxu0 0
    %2281 = vmatpush1.bf16.msra.mxu0 0
    %2282 = vmatprep.subr.bf16.mxu0 0
    %2283 = vmatpush1.bf16.msra.mxu0 0
    %2284 = vmatprep.subr.bf16.mxu0 0
    %2285 = vmatpush1.bf16.msra.mxu0 0
    %2286 = vmatprep.subr.bf16.mxu0 0
    %2287 = vmatpush1.bf16.msra.mxu0 0
    %2288 = vmatprep.subr.bf16.mxu0 0
    %2289 = vmatpush1.bf16.msra.mxu0 0
    %2290 = vmatprep.subr.bf16.mxu0 0
    %2291 = vmatpush1.bf16.msra.mxu0 0
    %2292 = vmatprep.subr.bf16.mxu0 0
    %2293 = vmatpush1.bf16.msra.mxu0 0
    %2294 = vmatprep.subr.bf16.mxu0 0
    %2295 = vmatpush1.bf16.msra.mxu0 0
    %2296 = vmatprep.subr.bf16.mxu0 0
    %2297 = vmatpush1.bf16.msra.mxu0 0
    %2298 = vmatprep.subr.bf16.mxu0 0
    %2299 = vmatpush1.bf16.msra.mxu0 0
    %2300 = vmatprep.subr.bf16.mxu0 0
    %2301 = vmatpush1.bf16.msra.mxu0 0
    %2302 = vmatprep.subr.bf16.mxu0 0
    %2303 = vmatpush1.bf16.msra.mxu0 0
    %2304 = vmatprep.subr.bf16.mxu0 0
    %2305 = vmatpush1.bf16.msra.mxu0 0
    %2306 = vmatprep.subr.bf16.mxu0 0
    %2307 = vmatpush1.bf16.msra.mxu0 0
    %2308 = vmatprep.mubr.bf16.mxu0 0
    %2309 = vmatmul.mubr.bf16.gmra.mrb[0].mxu0 %v2274
    %v2310 = vpop.f32.mrb[0].mxu0
    %v2311 = vadd.f32 0.0, %v2310
    %v2312 = vpop.f32.mrb[0].mxu0
    %v2313 = vpop.f32.mrb[0].mxu0
    %v2314 = vpop.f32.mrb[0].mxu0
    %2315 = vdwg.mxu0
    %v2316 = vpack.c.bf16 %v1967, %v1967
    %2317 = vrot.lane.b32.xlu0 %v2174, 72
    %v2318 = vpop.permute.xlu0 %2317
    %v2321 = vsel %vm941, %v2316, 0
    %2323 = vmatprep.subr.bf16.mxu0 0
    %2324 = vmatpush1.bf16.msra.mxu0 %v2318
    %2325 = vmatprep.subr.bf16.mxu0 0
    %2326 = vmatpush1.bf16.msra.mxu0 0
    %2327 = vmatprep.subr.bf16.mxu0 0
    %2328 = vmatpush1.bf16.msra.mxu0 0
    %2329 = vmatprep.subr.bf16.mxu0 0
    %2330 = vmatpush1.bf16.msra.mxu0 0
    %2331 = vmatprep.subr.bf16.mxu0 0
    %2332 = vmatpush1.bf16.msra.mxu0 0
    %2333 = vmatprep.subr.bf16.mxu0 0
    %2334 = vmatpush1.bf16.msra.mxu0 0
    %2335 = vmatprep.subr.bf16.mxu0 0
    %2336 = vmatpush1.bf16.msra.mxu0 0
    %2337 = vmatprep.subr.bf16.mxu0 0
    %2338 = vmatpush1.bf16.msra.mxu0 0
    %2339 = vmatprep.subr.bf16.mxu0 0
    %2340 = vmatpush1.bf16.msra.mxu0 0
    %2341 = vmatprep.subr.bf16.mxu0 0
    %2342 = vmatpush1.bf16.msra.mxu0 0
    %2343 = vmatprep.subr.bf16.mxu0 0
    %2344 = vmatpush1.bf16.msra.mxu0 0
    %2345 = vmatprep.subr.bf16.mxu0 0
    %2346 = vmatpush1.bf16.msra.mxu0 0
    %2347 = vmatprep.subr.bf16.mxu0 0
    %2348 = vmatpush1.bf16.msra.mxu0 0
    %2349 = vmatprep.subr.bf16.mxu0 0
    %2350 = vmatpush1.bf16.msra.mxu0 0
    %2351 = vmatprep.subr.bf16.mxu0 0
    %2352 = vmatpush1.bf16.msra.mxu0 0
    %2353 = vmatprep.subr.bf16.mxu0 0
    %2354 = vmatpush1.bf16.msra.mxu0 0
    %2355 = vmatprep.mubr.bf16.mxu0 0
    %2356 = vmatmul.mubr.bf16.gmra.mrb[0].mxu0 %v2321
    %v2357 = vpop.f32.mrb[0].mxu0
    %v2358 = vadd.f32 0.0, %v2357
    %v2359 = vpop.f32.mrb[0].mxu0
    %v2360 = vpop.f32.mrb[0].mxu0
    %v2361 = vpop.f32.mrb[0].mxu0
    %2362 = vdwg.mxu0
    %2364 = vrot.lane.b32.xlu0 %v2264, 8
    %v2365 = vpop.permute.xlu0 %2364
    %2368 = vrot.lane.b32.xlu0 %v2311, 16
    %v2369 = vpop.permute.xlu0 %2368
    %2372 = vrot.lane.b32.xlu0 %v2358, 24
    %v2373 = vpop.permute.xlu0 %2372
    %v2375 = vsel %vm216, %v2217, %v2365
    %v2376 = vsel %vm941, %v2375, %v2369
    %v2377 = vsel %vm943, %v2376, %v2373
    %s2378 = scalar_lea.vmem %s5, 16
    %v2379 = vld [vmem:[%s2378] sm:$0xf]
    %v2380 = vld [vmem:[%s2378 + $0x4] sm:$0xf]
    %v2381 = vld [vmem:[%s2378 + $0x8] sm:$0xf]
    %v2382 = vld [vmem:[%s2378 + $0xc] sm:$0xf]
    %v2383 = vpack.c.bf16 %v2377, %v2172
    %s2384 = scalar_lea.vmem %s6, 1
    %v2385 = vld [vmem:[%s2384] sm:$0x1]
    %v2387 = vlaneseq
    %v2388 = vshrl.u32 %v2387, 7
    %v2389 = vsub.s32 0, %v2388
    %v2390 = vrot.slane %v2385, %v2389
    %v2396 = vunpack.c.l.b16 %v2379
    %v2397 = vunpack.c.l.b16 %v2380
    %v2398 = vunpack.c.l.b16 %v2381
    %v2399 = vunpack.c.l.b16 %v2382
    %v2400 = vpack.c.b16 %v2397, %v2396
    %v2401 = vpack.c.b16 %v2399, %v2398
    %v2405 = vsel %vm66, %v2383, 0
    %2407 = vmatprep.subr.bf16.mxu0 0
    %2408 = vmatpush1.bf16.msra.mxu0 %v2400
    %2409 = vmatprep.subr.bf16.mxu0 0
    %2410 = vmatpush1.bf16.msra.mxu0 %v2401
    %2411 = vmatprep.subr.bf16.mxu0 0
    %2412 = vmatpush1.bf16.msra.mxu0 0
    %2413 = vmatprep.subr.bf16.mxu0 0
    %2414 = vmatpush1.bf16.msra.mxu0 0
    %2415 = vmatprep.subr.bf16.mxu0 0
    %2416 = vmatpush1.bf16.msra.mxu0 0
    %2417 = vmatprep.subr.bf16.mxu0 0
    %2418 = vmatpush1.bf16.msra.mxu0 0
    %2419 = vmatprep.subr.bf16.mxu0 0
    %2420 = vmatpush1.bf16.msra.mxu0 0
    %2421 = vmatprep.subr.bf16.mxu0 0
    %2422 = vmatpush1.bf16.msra.mxu0 0
    %2423 = vmatprep.subr.bf16.mxu0 0
    %2424 = vmatpush1.bf16.msra.mxu0 0
    %2425 = vmatprep.subr.bf16.mxu0 0
    %2426 = vmatpush1.bf16.msra.mxu0 0
    %2427 = vmatprep.subr.bf16.mxu0 0
    %2428 = vmatpush1.bf16.msra.mxu0 0
    %2429 = vmatprep.subr.bf16.mxu0 0
    %2430 = vmatpush1.bf16.msra.mxu0 0
    %2431 = vmatprep.subr.bf16.mxu0 0
    %2432 = vmatpush1.bf16.msra.mxu0 0
    %2433 = vmatprep.subr.bf16.mxu0 0
    %2434 = vmatpush1.bf16.msra.mxu0 0
    %2435 = vmatprep.subr.bf16.mxu0 0
    %2436 = vmatpush1.bf16.msra.mxu0 0
    %2437 = vmatprep.subr.bf16.mxu0 0
    %2438 = vmatpush1.bf16.msra.mxu0 0
    %2439 = vmatprep.mubr.bf16.mxu0 0
    %2440 = vmatmul.mubr.bf16.gmra.mrb[0].mxu0 %v2405
    %v2441 = vpop.f32.mrb[0].mxu0
    %v2442 = vadd.f32 %v2390, %v2441
    %v2443 = vpop.f32.mrb[0].mxu0
    %v2444 = vpop.f32.mrb[0].mxu0
    %v2445 = vadd.f32 %v2390, %v2444
    %v2446 = vpop.f32.mrb[0].mxu0
    %2447 = vdwg.mxu0
    %v2448 = vadd.f32 %v1224, %v2442
    %v2449 = vadd.f32 %v1225, %v2445
    %s2450 = scalar_lea.vmem %s7, 2
    %v2451 = vld [vmem:[%s2450] sm:$0x1]
    %s2452 = scalar_lea.vmem %s8, 2
    %v2453 = vld [vmem:[%s2452] sm:$0x1]
    %v2454 = vsel %vm66, %v2448, 0.0
    %2455 = vadd.xlane.f32.xlu0 %v2454
    %v2456 = vpop.xlane.xlu0 %2455
    %v2457 = vsel %vm66, %v2449, 0.0
    %2458 = vadd.xlane.f32.xlu0 %v2457
    %v2459 = vpop.xlane.xlu0 %2458
    %v2460 = vmul.f32 %v2456, %v73
    %v2461 = vmul.f32 %v2459, %v73
    %v2462 = vsub.f32 %v2448, %v2460
    %v2463 = vsub.f32 %v2449, %v2461
    %v2464 = vmul.f32 %v2462, %v2462
    %v2465 = vmul.f32 %v2463, %v2463
    %v2466 = vsel %vm66, %v2464, 0.0
    %2467 = vadd.xlane.f32.xlu0 %v2466
    %v2468 = vpop.xlane.xlu0 %2467
    %v2469 = vsel %vm66, %v2465, 0.0
    %2470 = vadd.xlane.f32.xlu0 %v2469
    %v2471 = vpop.xlane.xlu0 %2470
    %v2472 = vmul.f32 %v2468, %v73
    %v2473 = vmul.f32 %v2471, %v73
    %v2474 = vadd.f32 %v2472, 1e-05
    %v2475 = vadd.f32 %v2473, 1e-05
    %v2476 = vrsqrt.pop %v2474
    %v2477 = vrsqrt.pop %v2475
    %v2478 = vmul.f32 %v2462, %v2476
    %v2479 = vmul.f32 %v2463, %v2477
    %v2481 = vlaneseq
    %v2482 = vshrl.u32 %v2481, 7
    %v2483 = vsub.s32 0, %v2482
    %v2484 = vrot.slane %v2451, %v2483
    %v2486 = vmul.f32 %v2478, %v2484
    %v2487 = vmul.f32 %v2479, %v2484
    %v2489 = vlaneseq
    %v2490 = vshrl.u32 %v2489, 7
    %v2491 = vsub.s32 0, %v2490
    %v2492 = vrot.slane %v2453, %v2491
    %v2494 = vadd.f32 %v2486, %v2492
    %v2495 = vadd.f32 %v2487, %v2492
    %v2496 = vld [vmem:[%s9] sm:$0xf]
    %v2497 = vld [vmem:[%s9 + $0x4] sm:$0xf]
    %v2498 = vld [vmem:[%s9 + $0x8] sm:$0xf]
    %v2499 = vld [vmem:[%s9 + $0xc] sm:$0xf]
    %v2500 = vpack.c.bf16 %v2495, %v2494
    %v2501 = vld [vmem:[%s10] sm:$0x1]
    %v2503 = vlaneseq
    %v2504 = vshrl.u32 %v2503, 7
    %v2505 = vsub.s32 0, %v2504
    %v2506 = vrot.slane %v2501, %v2505
    %v2512 = vunpack.c.l.b16 %v2496
    %v2513 = vunpack.c.l.b16 %v2497
    %v2514 = vunpack.c.l.b16 %v2498
    %v2515 = vunpack.c.l.b16 %v2499
    %v2516 = vpack.c.b16 %v2513, %v2512
    %v2517 = vpack.c.b16 %v2515, %v2514
    %v2521 = vsel %vm66, %v2500, 0
    %2523 = vmatprep.subr.bf16.mxu0 0
    %2524 = vmatpush1.bf16.msra.mxu0 %v2516
    %2525 = vmatprep.subr.bf16.mxu0 0
    %2526 = vmatpush1.bf16.msra.mxu0 %v2517
    %2527 = vmatprep.subr.bf16.mxu0 0
    %2528 = vmatpush1.bf16.msra.mxu0 0
    %2529 = vmatprep.subr.bf16.mxu0 0
    %2530 = vmatpush1.bf16.msra.mxu0 0
    %2531 = vmatprep.subr.bf16.mxu0 0
    %2532 = vmatpush1.bf16.msra.mxu0 0
    %2533 = vmatprep.subr.bf16.mxu0 0
    %2534 = vmatpush1.bf16.msra.mxu0 0
    %2535 = vmatprep.subr.bf16.mxu0 0
    %2536 = vmatpush1.bf16.msra.mxu0 0
    %2537 = vmatprep.subr.bf16.mxu0 0
    %2538 = vmatpush1.bf16.msra.mxu0 0
    %2539 = vmatprep.subr.bf16.mxu0 0
    %2540 = vmatpush1.bf16.msra.mxu0 0
    %2541 = vmatprep.subr.bf16.mxu0 0
    %2542 = vmatpush1.bf16.msra.mxu0 0
    %2543 = vmatprep.subr.bf16.mxu0 0
    %2544 = vmatpush1.bf16.msra.mxu0 0
    %2545 = vmatprep.subr.bf16.mxu0 0
    %2546 = vmatpush1.bf16.msra.mxu0 0
    %2547 = vmatprep.subr.bf16.mxu0 0
    %2548 = vmatpush1.bf16.msra.mxu0 0
    %2549 = vmatprep.subr.bf16.mxu0 0
    %2550 = vmatpush1.bf16.msra.mxu0 0
    %2551 = vmatprep.subr.bf16.mxu0 0
    %2552 = vmatpush1.bf16.msra.mxu0 0
    %2553 = vmatprep.subr.bf16.mxu0 0
    %2554 = vmatpush1.bf16.msra.mxu0 0
    %2555 = vmatprep.mubr.bf16.mxu0 0
    %2556 = vmatmul.mubr.bf16.gmra.mrb[0].mxu0 %v2521
    %v2557 = vpop.f32.mrb[0].mxu0
    %v2558 = vadd.f32 %v2506, %v2557
    %v2559 = vpop.f32.mrb[0].mxu0
    %v2560 = vpop.f32.mrb[0].mxu0
    %v2561 = vadd.f32 %v2506, %v2560
    %v2562 = vpop.f32.mrb[0].mxu0
    %2563 = vdwg.mxu0
    %v2564 = vmul.f32 %v2558, 0.5
    %v2565 = vmul.f32 %v2561, 0.5
    %v2566 = vmul.f32 %v2558, 0.70710677
    %v2567 = vmul.f32 %v2561, 0.70710677
    %v2568 = verf.f32.pop %v2566
    %v2569 = verf.f32.pop %v2567
    %v2570 = vadd.f32 %v2568, 1.0
    %v2571 = vadd.f32 %v2569, 1.0
    %v2572 = vmul.f32 %v2564, %v2570
    %v2573 = vmul.f32 %v2565, %v2571
    %v2574 = vld [vmem:[%s11] sm:$0xf]
    %v2575 = vld [vmem:[%s11 + $0x4] sm:$0xf]
    %v2576 = vld [vmem:[%s11 + $0x8] sm:$0xf]
    %v2577 = vld [vmem:[%s11 + $0xc] sm:$0xf]
    %v2578 = vld [vmem:[%s11 + $0x10] sm:$0xf]
    %v2579 = vld [vmem:[%s11 + $0x14] sm:$0xf]
    %v2580 = vld [vmem:[%s11 + $0x18] sm:$0xf]
    %v2581 = vld [vmem:[%s11 + $0x1c] sm:$0xf]
    %v2582 = vld [vmem:[%s11 + $0x20] sm:$0xf]
    %v2583 = vld [vmem:[%s11 + $0x24] sm:$0xf]
    %v2584 = vld [vmem:[%s11 + $0x28] sm:$0xf]
    %v2585 = vld [vmem:[%s11 + $0x2c] sm:$0xf]
    %v2586 = vld [vmem:[%s11 + $0x30] sm:$0xf]
    %v2587 = vld [vmem:[%s11 + $0x34] sm:$0xf]
    %v2588 = vld [vmem:[%s11 + $0x38] sm:$0xf]
    %v2589 = vld [vmem:[%s11 + $0x3c] sm:$0xf]
    %v2590 = vpack.c.bf16 %v2573, %v2572
    %v2607 = vunpack.c.l.b16 %v2574
    %v2608 = vunpack.c.l.b16 %v2575
    %v2609 = vunpack.c.l.b16 %v2576
    %v2610 = vunpack.c.l.b16 %v2577
    %v2611 = vunpack.c.l.b16 %v2578
    %v2612 = vunpack.c.l.b16 %v2579
    %v2613 = vunpack.c.l.b16 %v2580
    %v2614 = vunpack.c.l.b16 %v2581
    %v2615 = vunpack.c.l.b16 %v2582
    %v2616 = vunpack.c.l.b16 %v2583
    %v2617 = vunpack.c.l.b16 %v2584
    %v2618 = vunpack.c.l.b16 %v2585
    %v2619 = vunpack.c.l.b16 %v2586
    %v2620 = vunpack.c.l.b16 %v2587
    %v2621 = vunpack.c.l.b16 %v2588
    %v2622 = vunpack.c.l.b16 %v2589
    %v2623 = vpack.c.b16 %v2608, %v2607
    %v2624 = vpack.c.b16 %v2610, %v2609
    %v2625 = vpack.c.b16 %v2612, %v2611
    %v2626 = vpack.c.b16 %v2614, %v2613
    %v2627 = vpack.c.b16 %v2616, %v2615
    %v2628 = vpack.c.b16 %v2618, %v2617
    %v2629 = vpack.c.b16 %v2620, %v2619
    %v2630 = vpack.c.b16 %v2622, %v2621
    %2639 = vmatprep.subr.bf16.mxu0 0
    %2640 = vmatpush1.bf16.msra.mxu0 %v2623
    %2641 = vmatprep.subr.bf16.mxu0 0
    %2642 = vmatpush1.bf16.msra.mxu0 %v2624
    %2643 = vmatprep.subr.bf16.mxu0 0
    %2644 = vmatpush1.bf16.msra.mxu0 %v2625
    %2645 = vmatprep.subr.bf16.mxu0 0
    %2646 = vmatpush1.bf16.msra.mxu0 %v2626
    %2647 = vmatprep.subr.bf16.mxu0 0
    %2648 = vmatpush1.bf16.msra.mxu0 %v2627
    %2649 = vmatprep.subr.bf16.mxu0 0
    %2650 = vmatpush1.bf16.msra.mxu0 %v2628
    %2651 = vmatprep.subr.bf16.mxu0 0
    %2652 = vmatpush1.bf16.msra.mxu0 %v2629
    %2653 = vmatprep.subr.bf16.mxu0 0
    %2654 = vmatpush1.bf16.msra.mxu0 %v2630
    %2655 = vmatprep.subr.bf16.mxu0 0
    %2656 = vmatpush1.bf16.msra.mxu0 0
    %2657 = vmatprep.subr.bf16.mxu0 0
    %2658 = vmatpush1.bf16.msra.mxu0 0
    %2659 = vmatprep.subr.bf16.mxu0 0
    %2660 = vmatpush1.bf16.msra.mxu0 0
    %2661 = vmatprep.subr.bf16.mxu0 0
    %2662 = vmatpush1.bf16.msra.mxu0 0
    %2663 = vmatprep.subr.bf16.mxu0 0
    %2664 = vmatpush1.bf16.msra.mxu0 0
    %2665 = vmatprep.subr.bf16.mxu0 0
    %2666 = vmatpush1.bf16.msra.mxu0 0
    %2667 = vmatprep.subr.bf16.mxu0 0
    %2668 = vmatpush1.bf16.msra.mxu0 0
    %2669 = vmatprep.subr.bf16.mxu0 0
    %2670 = vmatpush1.bf16.msra.mxu0 0
    %2671 = vmatprep.mubr.bf16.mxu0 0
    %2672 = vmatmul.mubr.bf16.gmra.mrb[0].mxu0 %v2590
    %v2673 = vpop.f32.mrb[0].mxu0
    %v2674 = vadd.f32 0.0, %v2673
    %v2675 = vpop.f32.mrb[0].mxu0
    %v2676 = vpop.f32.mrb[0].mxu0
    %v2677 = vadd.f32 0.0, %v2676
    %v2678 = vpop.f32.mrb[0].mxu0
    %2679 = vdwg.mxu0
    %v2680 = vadd.f32 %v2448, %v2674
    %v2681 = vadd.f32 %v2449, %v2677
    %v2682 = vld [vmem:[%s12] sm:$0x1]
    %v2684 = vlaneseq
    %v2685 = vshrl.u32 %v2684, 7
    %v2686 = vsub.s32 0, %v2685
    %v2687 = vrot.slane %v2682, %v2686
    %v2689 = vadd.f32 %v2680, %v2687
    %v2690 = vadd.f32 %v2681, %v2687
    %s2691 = scalar_lea.vmem %s7, 3
    %v2692 = vld [vmem:[%s2691] sm:$0x1]
    %s2693 = scalar_lea.vmem %s8, 3
    %v2694 = vld [vmem:[%s2693] sm:$0x1]
    %v2695 = vsel %vm66, %v2689, 0.0
    %2696 = vadd.xlane.f32.xlu0 %v2695
    %v2697 = vpop.xlane.xlu0 %2696
    %v2698 = vsel %vm66, %v2690, 0.0
    %2699 = vadd.xlane.f32.xlu0 %v2698
    %v2700 = vpop.xlane.xlu0 %2699
    %v2701 = vmul.f32 %v2697, %v73
    %v2702 = vmul.f32 %v2700, %v73
    %v2703 = vsub.f32 %v2689, %v2701
    %v2704 = vsub.f32 %v2690, %v2702
    %v2705 = vmul.f32 %v2703, %v2703
    %v2706 = vmul.f32 %v2704, %v2704
    %v2707 = vsel %vm66, %v2705, 0.0
    %2708 = vadd.xlane.f32.xlu0 %v2707
    %v2709 = vpop.xlane.xlu0 %2708
    %v2710 = vsel %vm66, %v2706, 0.0
    %2711 = vadd.xlane.f32.xlu0 %v2710
    %v2712 = vpop.xlane.xlu0 %2711
    %v2713 = vmul.f32 %v2709, %v73
    %v2714 = vmul.f32 %v2712, %v73
    %v2715 = vadd.f32 %v2713, 1e-05
    %v2716 = vadd.f32 %v2714, 1e-05
    %v2717 = vrsqrt.pop %v2715
    %v2718 = vrsqrt.pop %v2716
    %v2719 = vmul.f32 %v2703, %v2717
    %v2720 = vmul.f32 %v2704, %v2718
    %v2722 = vlaneseq
    %v2723 = vshrl.u32 %v2722, 7
    %v2724 = vsub.s32 0, %v2723
    %v2725 = vrot.slane %v2692, %v2724
    %v2727 = vmul.f32 %v2719, %v2725
    %v2728 = vmul.f32 %v2720, %v2725
    %v2730 = vlaneseq
    %v2731 = vshrl.u32 %v2730, 7
    %v2732 = vsub.s32 0, %v2731
    %v2733 = vrot.slane %v2694, %v2732
    %v2735 = vadd.f32 %v2727, %v2733
    %v2736 = vadd.f32 %v2728, %v2733
    %s2737 = scalar_lea.vmem %s3, 32
    %v2738 = vld [vmem:[%s2737] sm:$0xf]
    %v2739 = vld [vmem:[%s2737 + $0x4] sm:$0xf]
    %v2740 = vld [vmem:[%s2737 + $0x8] sm:$0xf]
    %v2741 = vld [vmem:[%s2737 + $0xc] sm:$0xf]
    %s2742 = scalar_lea.vmem %s4, 2
    %v2743 = vld [vmem:[%s2742] sm:$0x1]
    %v2744 = vpack.c.bf16 %v2736, %v2735
    %v2746 = vlaneseq
    %v2747 = vshrl.u32 %v2746, 7
    %v2748 = vsub.s32 0, %v2747
    %v2749 = vrot.slane %v2743, %v2748
    %v2755 = vunpack.c.l.b16 %v2738
    %v2756 = vunpack.c.l.b16 %v2739
    %v2757 = vunpack.c.l.b16 %v2740
    %v2758 = vunpack.c.l.b16 %v2741
    %v2759 = vpack.c.b16 %v2756, %v2755
    %v2760 = vpack.c.b16 %v2758, %v2757
    %v2764 = vsel %vm66, %v2744, 0
    %2766 = vmatprep.subr.bf16.mxu0 0
    %2767 = vmatpush1.bf16.msra.mxu0 %v2759
    %2768 = vmatprep.subr.bf16.mxu0 0
    %2769 = vmatpush1.bf16.msra.mxu0 %v2760
    %2770 = vmatprep.subr.bf16.mxu0 0
    %2771 = vmatpush1.bf16.msra.mxu0 0
    %2772 = vmatprep.subr.bf16.mxu0 0
    %2773 = vmatpush1.bf16.msra.mxu0 0
    %2774 = vmatprep.subr.bf16.mxu0 0
    %2775 = vmatpush1.bf16.msra.mxu0 0
    %2776 = vmatprep.subr.bf16.mxu0 0
    %2777 = vmatpush1.bf16.msra.mxu0 0
    %2778 = vmatprep.subr.bf16.mxu0 0
    %2779 = vmatpush1.bf16.msra.mxu0 0
    %2780 = vmatprep.subr.bf16.mxu0 0
    %2781 = vmatpush1.bf16.msra.mxu0 0
    %2782 = vmatprep.subr.bf16.mxu0 0
    %2783 = vmatpush1.bf16.msra.mxu0 0
    %2784 = vmatprep.subr.bf16.mxu0 0
    %2785 = vmatpush1.bf16.msra.mxu0 0
    %2786 = vmatprep.subr.bf16.mxu0 0
    %2787 = vmatpush1.bf16.msra.mxu0 0
    %2788 = vmatprep.subr.bf16.mxu0 0
    %2789 = vmatpush1.bf16.msra.mxu0 0
    %2790 = vmatprep.subr.bf16.mxu0 0
    %2791 = vmatpush1.bf16.msra.mxu0 0
    %2792 = vmatprep.subr.bf16.mxu0 0
    %2793 = vmatpush1.bf16.msra.mxu0 0
    %2794 = vmatprep.subr.bf16.mxu0 0
    %2795 = vmatpush1.bf16.msra.mxu0 0
    %2796 = vmatprep.subr.bf16.mxu0 0
    %2797 = vmatpush1.bf16.msra.mxu0 0
    %2798 = vmatprep.mubr.bf16.mxu0 0
    %2799 = vmatmul.mubr.bf16.gmra.mrb[0].mxu0 %v2764
    %v2800 = vpop.f32.mrb[0].mxu0
    %v2801 = vadd.f32 %v2749, %v2800
    %v2802 = vpop.f32.mrb[0].mxu0
    %v2803 = vpop.f32.mrb[0].mxu0
    %v2804 = vadd.f32 %v2749, %v2803
    %v2805 = vpop.f32.mrb[0].mxu0
    %2806 = vdwg.mxu0
    %2808 = vrot.lane.b32.xlu0 %v2801, 96
    %v2809 = vpop.permute.xlu0 %2808
    %2811 = vxpose.xlu0.b32.start [1/16] %v2809, 128
    %2812 = vxpose.xlu0.b32.cont [2/16] 0.0, 128
    %2813 = vxpose.xlu0.b32.cont [3/16] 0.0, 128
    %2814 = vxpose.xlu0.b32.cont [4/16] 0.0, 128
    %2815 = vxpose.xlu0.b32.cont [5/16] 0.0, 128
    %2816 = vxpose.xlu0.b32.cont [6/16] 0.0, 128
    %2817 = vxpose.xlu0.b32.cont [7/16] 0.0, 128
    %2818 = vxpose.xlu0.b32.cont [8/16] 0.0, 128
    %2819 = vxpose.xlu0.b32.cont [9/16] 0.0, 128
    %2820 = vxpose.xlu0.b32.cont [10/16] 0.0, 128
    %2821 = vxpose.xlu0.b32.cont [11/16] 0.0, 128
    %2822 = vxpose.xlu0.b32.cont [12/16] 0.0, 128
    %2823 = vxpose.xlu0.b32.cont [13/16] 0.0, 128
    %2824 = vxpose.xlu0.b32.cont [14/16] 0.0, 128
    %2825 = vxpose.xlu0.b32.cont [15/16] 0.0, 128
    %2826 = vxpose.xlu0.b32.end [16/16] 0.0, 128
    %v2827 = vpop.trf.xlu0
    %v2828 = vpop.trf.xlu0
    %v2829 = vpop.trf.xlu0
    %v2830 = vpop.trf.xlu0
    %v2831 = vpop.trf.xlu0
    %v2832 = vpop.trf.xlu0
    %v2833 = vpop.trf.xlu0
    %v2834 = vpop.trf.xlu0
    %v2835 = vpop.trf.xlu0
    %v2836 = vpop.trf.xlu0
    %v2837 = vpop.trf.xlu0
    %v2838 = vpop.trf.xlu0
    %v2839 = vpop.trf.xlu0
    %v2840 = vpop.trf.xlu0
    %v2841 = vpop.trf.xlu0
    %v2842 = vpop.trf.xlu0
    %v2843 = vpack.c.bf16 %v2801, %v2801
    %v2844 = vpack.c.bf16 %v2827, %v2827
    %v2846 = vsel %vm216, %v2843, 0
    %v2849 = vsel %vm220, %v2844, 0
    %2851 = vmatprep.subr.bf16.mxu0 0
    %2852 = vmatpush1.bf16.msra.mxu0 %v2849
    %2853 = vmatprep.subr.bf16.mxu0 0
    %2854 = vmatpush1.bf16.msra.mxu0 0
    %2855 = vmatprep.subr.bf16.mxu0 0
    %2856 = vmatpush1.bf16.msra.mxu0 0
    %2857 = vmatprep.subr.bf16.mxu0 0
    %2858 = vmatpush1.bf16.msra.mxu0 0
    %2859 = vmatprep.subr.bf16.mxu0 0
    %2860 = vmatpush1.bf16.msra.mxu0 0
    %2861 = vmatprep.subr.bf16.mxu0 0
    %2862 = vmatpush1.bf16.msra.mxu0 0
    %2863 = vmatprep.subr.bf16.mxu0 0
    %2864 = vmatpush1.bf16.msra.mxu0 0
    %2865 = vmatprep.subr.bf16.mxu0 0
    %2866 = vmatpush1.bf16.msra.mxu0 0
    %2867 = vmatprep.subr.bf16.mxu0 0
    %2868 = vmatpush1.bf16.msra.mxu0 0
    %2869 = vmatprep.subr.bf16.mxu0 0
    %2870 = vmatpush1.bf16.msra.mxu0 0
    %2871 = vmatprep.subr.bf16.mxu0 0
    %2872 = vmatpush1.bf16.msra.mxu0 0
    %2873 = vmatprep.subr.bf16.mxu0 0
    %2874 = vmatpush1.bf16.msra.mxu0 0
    %2875 = vmatprep.subr.bf16.mxu0 0
    %2876 = vmatpush1.bf16.msra.mxu0 0
    %2877 = vmatprep.subr.bf16.mxu0 0
    %2878 = vmatpush1.bf16.msra.mxu0 0
    %2879 = vmatprep.subr.bf16.mxu0 0
    %2880 = vmatpush1.bf16.msra.mxu0 0
    %2881 = vmatprep.subr.bf16.mxu0 0
    %2882 = vmatpush1.bf16.msra.mxu0 0
    %2883 = vmatprep.mubr.bf16.mxu0 0
    %2884 = vmatmul.mubr.bf16.gmra.mrb[0].mxu0 %v2846
    %v2885 = vpop.f32.mrb[0].mxu0
    %v2886 = vadd.f32 0.0, %v2885
    %v2887 = vpop.f32.mrb[0].mxu0
    %v2888 = vpop.f32.mrb[0].mxu0
    %v2889 = vpop.f32.mrb[0].mxu0
    %2890 = vdwg.mxu0
    %v2891 = vpack.c.bf16 %v2828, %v2828
    %2893 = vrot.lane.b32.xlu0 %v2843, 120
    %v2894 = vpop.permute.xlu0 %2893
    %v2896 = vsel %vm216, %v2894, 0
    %v2899 = vsel %vm220, %v2891, 0
    %2901 = vmatprep.subr.bf16.mxu0 0
    %2902 = vmatpush1.bf16.msra.mxu0 %v2899
    %2903 = vmatprep.subr.bf16.mxu0 0
    %2904 = vmatpush1.bf16.msra.mxu0 0
    %2905 = vmatprep.subr.bf16.mxu0 0
    %2906 = vmatpush1.bf16.msra.mxu0 0
    %2907 = vmatprep.subr.bf16.mxu0 0
    %2908 = vmatpush1.bf16.msra.mxu0 0
    %2909 = vmatprep.subr.bf16.mxu0 0
    %2910 = vmatpush1.bf16.msra.mxu0 0
    %2911 = vmatprep.subr.bf16.mxu0 0
    %2912 = vmatpush1.bf16.msra.mxu0 0
    %2913 = vmatprep.subr.bf16.mxu0 0
    %2914 = vmatpush1.bf16.msra.mxu0 0
    %2915 = vmatprep.subr.bf16.mxu0 0
    %2916 = vmatpush1.bf16.msra.mxu0 0
    %2917 = vmatprep.subr.bf16.mxu0 0
    %2918 = vmatpush1.bf16.msra.mxu0 0
    %2919 = vmatprep.subr.bf16.mxu0 0
    %2920 = vmatpush1.bf16.msra.mxu0 0
    %2921 = vmatprep.subr.bf16.mxu0 0
    %2922 = vmatpush1.bf16.msra.mxu0 0
    %2923 = vmatprep.subr.bf16.mxu0 0
    %2924 = vmatpush1.bf16.msra.mxu0 0
    %2925 = vmatprep.subr.bf16.mxu0 0
    %2926 = vmatpush1.bf16.msra.mxu0 0
    %2927 = vmatprep.subr.bf16.mxu0 0
    %2928 = vmatpush1.bf16.msra.mxu0 0
    %2929 = vmatprep.subr.bf16.mxu0 0
    %2930 = vmatpush1.bf16.msra.mxu0 0
    %2931 = vmatprep.subr.bf16.mxu0 0
    %2932 = vmatpush1.bf16.msra.mxu0 0
    %2933 = vmatprep.mubr.bf16.mxu0 0
    %2934 = vmatmul.mubr.bf16.gmra.mrb[0].mxu0 %v2896
    %v2935 = vpop.f32.mrb[0].mxu0
    %v2936 = vadd.f32 0.0, %v2935
    %v2937 = vpop.f32.mrb[0].mxu0
    %v2938 = vpop.f32.mrb[0].mxu0
    %v2939 = vpop.f32.mrb[0].mxu0
    %2940 = vdwg.mxu0
    %v2941 = vpack.c.bf16 %v2829, %v2829
    %2942 = vrot.lane.b32.xlu0 %v2843, 112
    %v2943 = vpop.permute.xlu0 %2942
    %v2945 = vsel %vm216, %v2943, 0
    %v2948 = vsel %vm220, %v2941, 0
    %2950 = vmatprep.subr.bf16.mxu0 0
    %2951 = vmatpush1.bf16.msra.mxu0 %v2948
    %2952 = vmatprep.subr.bf16.mxu0 0
    %2953 = vmatpush1.bf16.msra.mxu0 0
    %2954 = vmatprep.subr.bf16.mxu0 0
    %2955 = vmatpush1.bf16.msra.mxu0 0
    %2956 = vmatprep.subr.bf16.mxu0 0
    %2957 = vmatpush1.bf16.msra.mxu0 0
    %2958 = vmatprep.subr.bf16.mxu0 0
    %2959 = vmatpush1.bf16.msra.mxu0 0
    %2960 = vmatprep.subr.bf16.mxu0 0
    %2961 = vmatpush1.bf16.msra.mxu0 0
    %2962 = vmatprep.subr.bf16.mxu0 0
    %2963 = vmatpush1.bf16.msra.mxu0 0
    %2964 = vmatprep.subr.bf16.mxu0 0
    %2965 = vmatpush1.bf16.msra.mxu0 0
    %2966 = vmatprep.subr.bf16.mxu0 0
    %2967 = vmatpush1.bf16.msra.mxu0 0
    %2968 = vmatprep.subr.bf16.mxu0 0
    %2969 = vmatpush1.bf16.msra.mxu0 0
    %2970 = vmatprep.subr.bf16.mxu0 0
    %2971 = vmatpush1.bf16.msra.mxu0 0
    %2972 = vmatprep.subr.bf16.mxu0 0
    %2973 = vmatpush1.bf16.msra.mxu0 0
    %2974 = vmatprep.subr.bf16.mxu0 0
    %2975 = vmatpush1.bf16.msra.mxu0 0
    %2976 = vmatprep.subr.bf16.mxu0 0
    %2977 = vmatpush1.bf16.msra.mxu0 0
    %2978 = vmatprep.subr.bf16.mxu0 0
    %2979 = vmatpush1.bf16.msra.mxu0 0
    %2980 = vmatprep.subr.bf16.mxu0 0
    %2981 = vmatpush1.bf16.msra.mxu0 0
    %2982 = vmatprep.mubr.bf16.mxu0 0
    %2983 = vmatmul.mubr.bf16.gmra.mrb[0].mxu0 %v2945
    %v2984 = vpop.f32.mrb[0].mxu0
    %v2985 = vadd.f32 0.0, %v2984
    %v2986 = vpop.f32.mrb[0].mxu0
    %v2987 = vpop.f32.mrb[0].mxu0
    %v2988 = vpop.f32.mrb[0].mxu0
    %2989 = vdwg.mxu0
    %v2990 = vpack.c.bf16 %v2830, %v2830
    %2991 = vrot.lane.b32.xlu0 %v2843, 104
    %v2992 = vpop.permute.xlu0 %2991
    %v2994 = vsel %vm216, %v2992, 0
    %v2997 = vsel %vm220, %v2990, 0
    %2999 = vmatprep.subr.bf16.mxu0 0
    %3000 = vmatpush1.bf16.msra.mxu0 %v2997
    %3001 = vmatprep.subr.bf16.mxu0 0
    %3002 = vmatpush1.bf16.msra.mxu0 0
    %3003 = vmatprep.subr.bf16.mxu0 0
    %3004 = vmatpush1.bf16.msra.mxu0 0
    %3005 = vmatprep.subr.bf16.mxu0 0
    %3006 = vmatpush1.bf16.msra.mxu0 0
    %3007 = vmatprep.subr.bf16.mxu0 0
    %3008 = vmatpush1.bf16.msra.mxu0 0
    %3009 = vmatprep.subr.bf16.mxu0 0
    %3010 = vmatpush1.bf16.msra.mxu0 0
    %3011 = vmatprep.subr.bf16.mxu0 0
    %3012 = vmatpush1.bf16.msra.mxu0 0
    %3013 = vmatprep.subr.bf16.mxu0 0
    %3014 = vmatpush1.bf16.msra.mxu0 0
    %3015 = vmatprep.subr.bf16.mxu0 0
    %3016 = vmatpush1.bf16.msra.mxu0 0
    %3017 = vmatprep.subr.bf16.mxu0 0
    %3018 = vmatpush1.bf16.msra.mxu0 0
    %3019 = vmatprep.subr.bf16.mxu0 0
    %3020 = vmatpush1.bf16.msra.mxu0 0
    %3021 = vmatprep.subr.bf16.mxu0 0
    %3022 = vmatpush1.bf16.msra.mxu0 0
    %3023 = vmatprep.subr.bf16.mxu0 0
    %3024 = vmatpush1.bf16.msra.mxu0 0
    %3025 = vmatprep.subr.bf16.mxu0 0
    %3026 = vmatpush1.bf16.msra.mxu0 0
    %3027 = vmatprep.subr.bf16.mxu0 0
    %3028 = vmatpush1.bf16.msra.mxu0 0
    %3029 = vmatprep.subr.bf16.mxu0 0
    %3030 = vmatpush1.bf16.msra.mxu0 0
    %3031 = vmatprep.mubr.bf16.mxu0 0
    %3032 = vmatmul.mubr.bf16.gmra.mrb[0].mxu0 %v2994
    %v3033 = vpop.f32.mrb[0].mxu0
    %v3034 = vadd.f32 0.0, %v3033
    %v3035 = vpop.f32.mrb[0].mxu0
    %v3036 = vpop.f32.mrb[0].mxu0
    %v3037 = vpop.f32.mrb[0].mxu0
    %3038 = vdwg.mxu0
    %3040 = vrot.lane.b32.xlu0 %v2804, 96
    %v3041 = vpop.permute.xlu0 %3040
    %3043 = vxpose.xlu0.b32.start [1/16] %v3041, 128
    %3044 = vxpose.xlu0.b32.cont [2/16] 0.0, 128
    %3045 = vxpose.xlu0.b32.cont [3/16] 0.0, 128
    %3046 = vxpose.xlu0.b32.cont [4/16] 0.0, 128
    %3047 = vxpose.xlu0.b32.cont [5/16] 0.0, 128
    %3048 = vxpose.xlu0.b32.cont [6/16] 0.0, 128
    %3049 = vxpose.xlu0.b32.cont [7/16] 0.0, 128
    %3050 = vxpose.xlu0.b32.cont [8/16] 0.0, 128
    %3051 = vxpose.xlu0.b32.cont [9/16] 0.0, 128
    %3052 = vxpose.xlu0.b32.cont [10/16] 0.0, 128
    %3053 = vxpose.xlu0.b32.cont [11/16] 0.0, 128
    %3054 = vxpose.xlu0.b32.cont [12/16] 0.0, 128
    %3055 = vxpose.xlu0.b32.cont [13/16] 0.0, 128
    %3056 = vxpose.xlu0.b32.cont [14/16] 0.0, 128
    %3057 = vxpose.xlu0.b32.cont [15/16] 0.0, 128
    %3058 = vxpose.xlu0.b32.end [16/16] 0.0, 128
    %v3059 = vpop.trf.xlu0
    %v3060 = vpop.trf.xlu0
    %v3061 = vpop.trf.xlu0
    %v3062 = vpop.trf.xlu0
    %v3063 = vpop.trf.xlu0
    %v3064 = vpop.trf.xlu0
    %v3065 = vpop.trf.xlu0
    %v3066 = vpop.trf.xlu0
    %v3067 = vpop.trf.xlu0
    %v3068 = vpop.trf.xlu0
    %v3069 = vpop.trf.xlu0
    %v3070 = vpop.trf.xlu0
    %v3071 = vpop.trf.xlu0
    %v3072 = vpop.trf.xlu0
    %v3073 = vpop.trf.xlu0
    %v3074 = vpop.trf.xlu0
    %v3075 = vpack.c.bf16 %v2804, %v2804
    %v3076 = vpack.c.bf16 %v3059, %v3059
    %v3078 = vsel %vm216, %v3075, 0
    %v3081 = vsel %vm220, %v3076, 0
    %3083 = vmatprep.subr.bf16.mxu0 0
    %3084 = vmatpush1.bf16.msra.mxu0 %v3081
    %3085 = vmatprep.subr.bf16.mxu0 0
    %3086 = vmatpush1.bf16.msra.mxu0 0
    %3087 = vmatprep.subr.bf16.mxu0 0
    %3088 = vmatpush1.bf16.msra.mxu0 0
    %3089 = vmatprep.subr.bf16.mxu0 0
    %3090 = vmatpush1.bf16.msra.mxu0 0
    %3091 = vmatprep.subr.bf16.mxu0 0
    %3092 = vmatpush1.bf16.msra.mxu0 0
    %3093 = vmatprep.subr.bf16.mxu0 0
    %3094 = vmatpush1.bf16.msra.mxu0 0
    %3095 = vmatprep.subr.bf16.mxu0 0
    %3096 = vmatpush1.bf16.msra.mxu0 0
    %3097 = vmatprep.subr.bf16.mxu0 0
    %3098 = vmatpush1.bf16.msra.mxu0 0
    %3099 = vmatprep.subr.bf16.mxu0 0
    %3100 = vmatpush1.bf16.msra.mxu0 0
    %3101 = vmatprep.subr.bf16.mxu0 0
    %3102 = vmatpush1.bf16.msra.mxu0 0
    %3103 = vmatprep.subr.bf16.mxu0 0
    %3104 = vmatpush1.bf16.msra.mxu0 0
    %3105 = vmatprep.subr.bf16.mxu0 0
    %3106 = vmatpush1.bf16.msra.mxu0 0
    %3107 = vmatprep.subr.bf16.mxu0 0
    %3108 = vmatpush1.bf16.msra.mxu0 0
    %3109 = vmatprep.subr.bf16.mxu0 0
    %3110 = vmatpush1.bf16.msra.mxu0 0
    %3111 = vmatprep.subr.bf16.mxu0 0
    %3112 = vmatpush1.bf16.msra.mxu0 0
    %3113 = vmatprep.subr.bf16.mxu0 0
    %3114 = vmatpush1.bf16.msra.mxu0 0
    %3115 = vmatprep.mubr.bf16.mxu0 0
    %3116 = vmatmul.mubr.bf16.gmra.mrb[0].mxu0 %v3078
    %v3117 = vpop.f32.mrb[0].mxu0
    %v3118 = vadd.f32 0.0, %v3117
    %v3119 = vpop.f32.mrb[0].mxu0
    %v3120 = vpop.f32.mrb[0].mxu0
    %v3121 = vpop.f32.mrb[0].mxu0
    %3122 = vdwg.mxu0
    %v3123 = vpack.c.bf16 %v3060, %v3060
    %3125 = vrot.lane.b32.xlu0 %v3075, 120
    %v3126 = vpop.permute.xlu0 %3125
    %v3128 = vsel %vm216, %v3126, 0
    %v3131 = vsel %vm220, %v3123, 0
    %3133 = vmatprep.subr.bf16.mxu0 0
    %3134 = vmatpush1.bf16.msra.mxu0 %v3131
    %3135 = vmatprep.subr.bf16.mxu0 0
    %3136 = vmatpush1.bf16.msra.mxu0 0
    %3137 = vmatprep.subr.bf16.mxu0 0
    %3138 = vmatpush1.bf16.msra.mxu0 0
    %3139 = vmatprep.subr.bf16.mxu0 0
    %3140 = vmatpush1.bf16.msra.mxu0 0
    %3141 = vmatprep.subr.bf16.mxu0 0
    %3142 = vmatpush1.bf16.msra.mxu0 0
    %3143 = vmatprep.subr.bf16.mxu0 0
    %3144 = vmatpush1.bf16.msra.mxu0 0
    %3145 = vmatprep.subr.bf16.mxu0 0
    %3146 = vmatpush1.bf16.msra.mxu0 0
    %3147 = vmatprep.subr.bf16.mxu0 0
    %3148 = vmatpush1.bf16.msra.mxu0 0
    %3149 = vmatprep.subr.bf16.mxu0 0
    %3150 = vmatpush1.bf16.msra.mxu0 0
    %3151 = vmatprep.subr.bf16.mxu0 0
    %3152 = vmatpush1.bf16.msra.mxu0 0
    %3153 = vmatprep.subr.bf16.mxu0 0
    %3154 = vmatpush1.bf16.msra.mxu0 0
    %3155 = vmatprep.subr.bf16.mxu0 0
    %3156 = vmatpush1.bf16.msra.mxu0 0
    %3157 = vmatprep.subr.bf16.mxu0 0
    %3158 = vmatpush1.bf16.msra.mxu0 0
    %3159 = vmatprep.subr.bf16.mxu0 0
    %3160 = vmatpush1.bf16.msra.mxu0 0
    %3161 = vmatprep.subr.bf16.mxu0 0
    %3162 = vmatpush1.bf16.msra.mxu0 0
    %3163 = vmatprep.subr.bf16.mxu0 0
    %3164 = vmatpush1.bf16.msra.mxu0 0
    %3165 = vmatprep.mubr.bf16.mxu0 0
    %3166 = vmatmul.mubr.bf16.gmra.mrb[0].mxu0 %v3128
    %v3167 = vpop.f32.mrb[0].mxu0
    %v3168 = vadd.f32 0.0, %v3167
    %v3169 = vpop.f32.mrb[0].mxu0
    %v3170 = vpop.f32.mrb[0].mxu0
    %v3171 = vpop.f32.mrb[0].mxu0
    %3172 = vdwg.mxu0
    %v3173 = vpack.c.bf16 %v3061, %v3061
    %3174 = vrot.lane.b32.xlu0 %v3075, 112
    %v3175 = vpop.permute.xlu0 %3174
    %v3177 = vsel %vm216, %v3175, 0
    %v3180 = vsel %vm220, %v3173, 0
    %3182 = vmatprep.subr.bf16.mxu0 0
    %3183 = vmatpush1.bf16.msra.mxu0 %v3180
    %3184 = vmatprep.subr.bf16.mxu0 0
    %3185 = vmatpush1.bf16.msra.mxu0 0
    %3186 = vmatprep.subr.bf16.mxu0 0
    %3187 = vmatpush1.bf16.msra.mxu0 0
    %3188 = vmatprep.subr.bf16.mxu0 0
    %3189 = vmatpush1.bf16.msra.mxu0 0
    %3190 = vmatprep.subr.bf16.mxu0 0
    %3191 = vmatpush1.bf16.msra.mxu0 0
    %3192 = vmatprep.subr.bf16.mxu0 0
    %3193 = vmatpush1.bf16.msra.mxu0 0
    %3194 = vmatprep.subr.bf16.mxu0 0
    %3195 = vmatpush1.bf16.msra.mxu0 0
    %3196 = vmatprep.subr.bf16.mxu0 0
    %3197 = vmatpush1.bf16.msra.mxu0 0
    %3198 = vmatprep.subr.bf16.mxu0 0
    %3199 = vmatpush1.bf16.msra.mxu0 0
    %3200 = vmatprep.subr.bf16.mxu0 0
    %3201 = vmatpush1.bf16.msra.mxu0 0
    %3202 = vmatprep.subr.bf16.mxu0 0
    %3203 = vmatpush1.bf16.msra.mxu0 0
    %3204 = vmatprep.subr.bf16.mxu0 0
    %3205 = vmatpush1.bf16.msra.mxu0 0
    %3206 = vmatprep.subr.bf16.mxu0 0
    %3207 = vmatpush1.bf16.msra.mxu0 0
    %3208 = vmatprep.subr.bf16.mxu0 0
    %3209 = vmatpush1.bf16.msra.mxu0 0
    %3210 = vmatprep.subr.bf16.mxu0 0
    %3211 = vmatpush1.bf16.msra.mxu0 0
    %3212 = vmatprep.subr.bf16.mxu0 0
    %3213 = vmatpush1.bf16.msra.mxu0 0
    %3214 = vmatprep.mubr.bf16.mxu0 0
    %3215 = vmatmul.mubr.bf16.gmra.mrb[0].mxu0 %v3177
    %v3216 = vpop.f32.mrb[0].mxu0
    %v3217 = vadd.f32 0.0, %v3216
    %v3218 = vpop.f32.mrb[0].mxu0
    %v3219 = vpop.f32.mrb[0].mxu0
    %v3220 = vpop.f32.mrb[0].mxu0
    %3221 = vdwg.mxu0
    %v3222 = vpack.c.bf16 %v3062, %v3062
    %3223 = vrot.lane.b32.xlu0 %v3075, 104
    %v3224 = vpop.permute.xlu0 %3223
    %v3226 = vsel %vm216, %v3224, 0
    %v3229 = vsel %vm220, %v3222, 0
    %3231 = vmatprep.subr.bf16.mxu0 0
    %3232 = vmatpush1.bf16.msra.mxu0 %v3229
    %3233 = vmatprep.subr.bf16.mxu0 0
    %3234 = vmatpush1.bf16.msra.mxu0 0
    %3235 = vmatprep.subr.bf16.mxu0 0
    %3236 = vmatpush1.bf16.msra.mxu0 0
    %3237 = vmatprep.subr.bf16.mxu0 0
    %3238 = vmatpush1.bf16.msra.mxu0 0
    %3239 = vmatprep.subr.bf16.mxu0 0
    %3240 = vmatpush1.bf16.msra.mxu0 0
    %3241 = vmatprep.subr.bf16.mxu0 0
    %3242 = vmatpush1.bf16.msra.mxu0 0
    %3243 = vmatprep.subr.bf16.mxu0 0
    %3244 = vmatpush1.bf16.msra.mxu0 0
    %3245 = vmatprep.subr.bf16.mxu0 0
    %3246 = vmatpush1.bf16.msra.mxu0 0
    %3247 = vmatprep.subr.bf16.mxu0 0
    %3248 = vmatpush1.bf16.msra.mxu0 0
    %3249 = vmatprep.subr.bf16.mxu0 0
    %3250 = vmatpush1.bf16.msra.mxu0 0
    %3251 = vmatprep.subr.bf16.mxu0 0
    %3252 = vmatpush1.bf16.msra.mxu0 0
    %3253 = vmatprep.subr.bf16.mxu0 0
    %3254 = vmatpush1.bf16.msra.mxu0 0
    %3255 = vmatprep.subr.bf16.mxu0 0
    %3256 = vmatpush1.bf16.msra.mxu0 0
    %3257 = vmatprep.subr.bf16.mxu0 0
    %3258 = vmatpush1.bf16.msra.mxu0 0
    %3259 = vmatprep.subr.bf16.mxu0 0
    %3260 = vmatpush1.bf16.msra.mxu0 0
    %3261 = vmatprep.subr.bf16.mxu0 0
    %3262 = vmatpush1.bf16.msra.mxu0 0
    %3263 = vmatprep.mubr.bf16.mxu0 0
    %3264 = vmatmul.mubr.bf16.gmra.mrb[0].mxu0 %v3226
    %v3265 = vpop.f32.mrb[0].mxu0
    %v3266 = vadd.f32 0.0, %v3265
    %v3267 = vpop.f32.mrb[0].mxu0
    %v3268 = vpop.f32.mrb[0].mxu0
    %v3269 = vpop.f32.mrb[0].mxu0
    %3270 = vdwg.mxu0
    %v3271 = vsel %vm216, %v2886, -inf
    %3272 = vmax.xlane.f32.xlu0 %v3271
    %v3273 = vpop.xlane.xlu0 %3272
    %v3274 = vsel %vm216, %v2936, -inf
    %3275 = vmax.xlane.f32.xlu0 %v3274
    %v3276 = vpop.xlane.xlu0 %3275
    %v3277 = vsel %vm216, %v2985, -inf
    %3278 = vmax.xlane.f32.xlu0 %v3277
    %v3279 = vpop.xlane.xlu0 %3278
    %v3280 = vsel %vm216, %v3034, -inf
    %3281 = vmax.xlane.f32.xlu0 %v3280
    %v3282 = vpop.xlane.xlu0 %3281
    %v3283 = vsel %vm216, %v3118, -inf
    %3284 = vmax.xlane.f32.xlu0 %v3283
    %v3285 = vpop.xlane.xlu0 %3284
    %v3286 = vsel %vm216, %v3168, -inf
    %3287 = vmax.xlane.f32.xlu0 %v3286
    %v3288 = vpop.xlane.xlu0 %3287
    %v3289 = vsel %vm216, %v3217, -inf
    %3290 = vmax.xlane.f32.xlu0 %v3289
    %v3291 = vpop.xlane.xlu0 %3290
    %v3292 = vsel %vm216, %v3266, -inf
    %3293 = vmax.xlane.f32.xlu0 %v3292
    %v3294 = vpop.xlane.xlu0 %3293
    %v3295 = vsub.f32 %v2886, %v3273
    %v3296 = vsub.f32 %v2936, %v3276
    %v3297 = vsub.f32 %v2985, %v3279
    %v3298 = vsub.f32 %v3034, %v3282
    %v3299 = vsub.f32 %v3118, %v3285
    %v3300 = vsub.f32 %v3168, %v3288
    %v3301 = vsub.f32 %v3217, %v3291
    %v3302 = vsub.f32 %v3266, %v3294
    %v3303 = vmul.f32 %v3295, 1.442695
    %v3304 = vpow.pop %v3303
    %v3305 = vmul.f32 %v3296, 1.442695
    %v3306 = vpow.pop %v3305
    %v3307 = vmul.f32 %v3297, 1.442695
    %v3308 = vpow.pop %v3307
    %v3309 = vmul.f32 %v3298, 1.442695
    %v3310 = vpow.pop %v3309
    %v3311 = vmul.f32 %v3299, 1.442695
    %v3312 = vpow.pop %v3311
    %v3313 = vmul.f32 %v3300, 1.442695
    %v3314 = vpow.pop %v3313
    %v3315 = vmul.f32 %v3301, 1.442695
    %v3316 = vpow.pop %v3315
    %v3317 = vmul.f32 %v3302, 1.442695
    %v3318 = vpow.pop %v3317
    %v3319 = vsel %vm216, %v3304, 0.0
    %3320 = vadd.xlane.f32.xlu0 %v3319
    %v3321 = vpop.xlane.xlu0 %3320
    %v3322 = vsel %vm216, %v3306, 0.0
    %3323 = vadd.xlane.f32.xlu0 %v3322
    %v3324 = vpop.xlane.xlu0 %3323
    %v3325 = vsel %vm216, %v3308, 0.0
    %3326 = vadd.xlane.f32.xlu0 %v3325
    %v3327 = vpop.xlane.xlu0 %3326
    %v3328 = vsel %vm216, %v3310, 0.0
    %3329 = vadd.xlane.f32.xlu0 %v3328
    %v3330 = vpop.xlane.xlu0 %3329
    %v3331 = vsel %vm216, %v3312, 0.0
    %3332 = vadd.xlane.f32.xlu0 %v3331
    %v3333 = vpop.xlane.xlu0 %3332
    %v3334 = vsel %vm216, %v3314, 0.0
    %3335 = vadd.xlane.f32.xlu0 %v3334
    %v3336 = vpop.xlane.xlu0 %3335
    %v3337 = vsel %vm216, %v3316, 0.0
    %3338 = vadd.xlane.f32.xlu0 %v3337
    %v3339 = vpop.xlane.xlu0 %3338
    %v3340 = vsel %vm216, %v3318, 0.0
    %3341 = vadd.xlane.f32.xlu0 %v3340
    %v3342 = vpop.xlane.xlu0 %3341
    %v3343 = vrcp.pop %v3321
    %v3344 = vrcp.pop %v3324
    %v3345 = vrcp.pop %v3327
    %v3346 = vrcp.pop %v3330
    %v3347 = vrcp.pop %v3333
    %v3348 = vrcp.pop %v3336
    %v3349 = vrcp.pop %v3339
    %v3350 = vrcp.pop %v3342
    %v3351 = vmul.f32 %v3304, %v3343
    %v3352 = vmul.f32 %v3306, %v3344
    %v3353 = vmul.f32 %v3308, %v3345
    %v3354 = vmul.f32 %v3310, %v3346
    %v3355 = vmul.f32 %v3312, %v3347
    %v3356 = vmul.f32 %v3314, %v3348
    %v3357 = vmul.f32 %v3316, %v3349
    %v3358 = vmul.f32 %v3318, %v3350
    %v3359 = vpack.c.bf16 %v3351, %v3351
    %3360 = vrot.lane.b32.xlu0 %v2843, 64
    %v3361 = vpop.permute.xlu0 %3360
    %v3363 = vsel %vm216, %v3359, 0
    %v3366 = vsel %vm220, %v3361, 0
    %3368 = vmatprep.subr.bf16.mxu0 0
    %3369 = vmatpush1.bf16.msra.mxu0 %v3366
    %3370 = vmatprep.subr.bf16.mxu0 0
    %3371 = vmatpush1.bf16.msra.mxu0 0
    %3372 = vmatprep.subr.bf16.mxu0 0
    %3373 = vmatpush1.bf16.msra.mxu0 0
    %3374 = vmatprep.subr.bf16.mxu0 0
    %3375 = vmatpush1.bf16.msra.mxu0 0
    %3376 = vmatprep.subr.bf16.mxu0 0
    %3377 = vmatpush1.bf16.msra.mxu0 0
    %3378 = vmatprep.subr.bf16.mxu0 0
    %3379 = vmatpush1.bf16.msra.mxu0 0
    %3380 = vmatprep.subr.bf16.mxu0 0
    %3381 = vmatpush1.bf16.msra.mxu0 0
    %3382 = vmatprep.subr.bf16.mxu0 0
    %3383 = vmatpush1.bf16.msra.mxu0 0
    %3384 = vmatprep.subr.bf16.mxu0 0
    %3385 = vmatpush1.bf16.msra.mxu0 0
    %3386 = vmatprep.subr.bf16.mxu0 0
    %3387 = vmatpush1.bf16.msra.mxu0 0
    %3388 = vmatprep.subr.bf16.mxu0 0
    %3389 = vmatpush1.bf16.msra.mxu0 0
    %3390 = vmatprep.subr.bf16.mxu0 0
    %3391 = vmatpush1.bf16.msra.mxu0 0
    %3392 = vmatprep.subr.bf16.mxu0 0
    %3393 = vmatpush1.bf16.msra.mxu0 0
    %3394 = vmatprep.subr.bf16.mxu0 0
    %3395 = vmatpush1.bf16.msra.mxu0 0
    %3396 = vmatprep.subr.bf16.mxu0 0
    %3397 = vmatpush1.bf16.msra.mxu0 0
    %3398 = vmatprep.subr.bf16.mxu0 0
    %3399 = vmatpush1.bf16.msra.mxu0 0
    %3400 = vmatprep.mubr.bf16.mxu0 0
    %3401 = vmatmul.mubr.bf16.gmra.mrb[0].mxu0 %v3363
    %v3402 = vpop.f32.mrb[0].mxu0
    %v3403 = vadd.f32 0.0, %v3402
    %v3404 = vpop.f32.mrb[0].mxu0
    %v3405 = vpop.f32.mrb[0].mxu0
    %v3406 = vpop.f32.mrb[0].mxu0
    %3407 = vdwg.mxu0
    %v3408 = vpack.c.bf16 %v3352, %v3352
    %3409 = vrot.lane.b32.xlu0 %v2843, 56
    %v3410 = vpop.permute.xlu0 %3409
    %v3412 = vsel %vm216, %v3408, 0
    %v3415 = vsel %vm220, %v3410, 0
    %3417 = vmatprep.subr.bf16.mxu0 0
    %3418 = vmatpush1.bf16.msra.mxu0 %v3415
    %3419 = vmatprep.subr.bf16.mxu0 0
    %3420 = vmatpush1.bf16.msra.mxu0 0
    %3421 = vmatprep.subr.bf16.mxu0 0
    %3422 = vmatpush1.bf16.msra.mxu0 0
    %3423 = vmatprep.subr.bf16.mxu0 0
    %3424 = vmatpush1.bf16.msra.mxu0 0
    %3425 = vmatprep.subr.bf16.mxu0 0
    %3426 = vmatpush1.bf16.msra.mxu0 0
    %3427 = vmatprep.subr.bf16.mxu0 0
    %3428 = vmatpush1.bf16.msra.mxu0 0
    %3429 = vmatprep.subr.bf16.mxu0 0
    %3430 = vmatpush1.bf16.msra.mxu0 0
    %3431 = vmatprep.subr.bf16.mxu0 0
    %3432 = vmatpush1.bf16.msra.mxu0 0
    %3433 = vmatprep.subr.bf16.mxu0 0
    %3434 = vmatpush1.bf16.msra.mxu0 0
    %3435 = vmatprep.subr.bf16.mxu0 0
    %3436 = vmatpush1.bf16.msra.mxu0 0
    %3437 = vmatprep.subr.bf16.mxu0 0
    %3438 = vmatpush1.bf16.msra.mxu0 0
    %3439 = vmatprep.subr.bf16.mxu0 0
    %3440 = vmatpush1.bf16.msra.mxu0 0
    %3441 = vmatprep.subr.bf16.mxu0 0
    %3442 = vmatpush1.bf16.msra.mxu0 0
    %3443 = vmatprep.subr.bf16.mxu0 0
    %3444 = vmatpush1.bf16.msra.mxu0 0
    %3445 = vmatprep.subr.bf16.mxu0 0
    %3446 = vmatpush1.bf16.msra.mxu0 0
    %3447 = vmatprep.subr.bf16.mxu0 0
    %3448 = vmatpush1.bf16.msra.mxu0 0
    %3449 = vmatprep.mubr.bf16.mxu0 0
    %3450 = vmatmul.mubr.bf16.gmra.mrb[0].mxu0 %v3412
    %v3451 = vpop.f32.mrb[0].mxu0
    %v3452 = vadd.f32 0.0, %v3451
    %v3453 = vpop.f32.mrb[0].mxu0
    %v3454 = vpop.f32.mrb[0].mxu0
    %v3455 = vpop.f32.mrb[0].mxu0
    %3456 = vdwg.mxu0
    %v3457 = vpack.c.bf16 %v3353, %v3353
    %3458 = vrot.lane.b32.xlu0 %v2843, 48
    %v3459 = vpop.permute.xlu0 %3458
    %v3461 = vsel %vm216, %v3457, 0
    %v3464 = vsel %vm220, %v3459, 0
    %3466 = vmatprep.subr.bf16.mxu0 0
    %3467 = vmatpush1.bf16.msra.mxu0 %v3464
    %3468 = vmatprep.subr.bf16.mxu0 0
    %3469 = vmatpush1.bf16.msra.mxu0 0
    %3470 = vmatprep.subr.bf16.mxu0 0
    %3471 = vmatpush1.bf16.msra.mxu0 0
    %3472 = vmatprep.subr.bf16.mxu0 0
    %3473 = vmatpush1.bf16.msra.mxu0 0
    %3474 = vmatprep.subr.bf16.mxu0 0
    %3475 = vmatpush1.bf16.msra.mxu0 0
    %3476 = vmatprep.subr.bf16.mxu0 0
    %3477 = vmatpush1.bf16.msra.mxu0 0
    %3478 = vmatprep.subr.bf16.mxu0 0
    %3479 = vmatpush1.bf16.msra.mxu0 0
    %3480 = vmatprep.subr.bf16.mxu0 0
    %3481 = vmatpush1.bf16.msra.mxu0 0
    %3482 = vmatprep.subr.bf16.mxu0 0
    %3483 = vmatpush1.bf16.msra.mxu0 0
    %3484 = vmatprep.subr.bf16.mxu0 0
    %3485 = vmatpush1.bf16.msra.mxu0 0
    %3486 = vmatprep.subr.bf16.mxu0 0
    %3487 = vmatpush1.bf16.msra.mxu0 0
    %3488 = vmatprep.subr.bf16.mxu0 0
    %3489 = vmatpush1.bf16.msra.mxu0 0
    %3490 = vmatprep.subr.bf16.mxu0 0
    %3491 = vmatpush1.bf16.msra.mxu0 0
    %3492 = vmatprep.subr.bf16.mxu0 0
    %3493 = vmatpush1.bf16.msra.mxu0 0
    %3494 = vmatprep.subr.bf16.mxu0 0
    %3495 = vmatpush1.bf16.msra.mxu0 0
    %3496 = vmatprep.subr.bf16.mxu0 0
    %3497 = vmatpush1.bf16.msra.mxu0 0
    %3498 = vmatprep.mubr.bf16.mxu0 0
    %3499 = vmatmul.mubr.bf16.gmra.mrb[0].mxu0 %v3461
    %v3500 = vpop.f32.mrb[0].mxu0
    %v3501 = vadd.f32 0.0, %v3500
    %v3502 = vpop.f32.mrb[0].mxu0
    %v3503 = vpop.f32.mrb[0].mxu0
    %v3504 = vpop.f32.mrb[0].mxu0
    %3505 = vdwg.mxu0
    %v3506 = vpack.c.bf16 %v3354, %v3354
    %3507 = vrot.lane.b32.xlu0 %v2843, 40
    %v3508 = vpop.permute.xlu0 %3507
    %v3510 = vsel %vm216, %v3506, 0
    %v3513 = vsel %vm220, %v3508, 0
    %3515 = vmatprep.subr.bf16.mxu0 0
    %3516 = vmatpush1.bf16.msra.mxu0 %v3513
    %3517 = vmatprep.subr.bf16.mxu0 0
    %3518 = vmatpush1.bf16.msra.mxu0 0
    %3519 = vmatprep.subr.bf16.mxu0 0
    %3520 = vmatpush1.bf16.msra.mxu0 0
    %3521 = vmatprep.subr.bf16.mxu0 0
    %3522 = vmatpush1.bf16.msra.mxu0 0
    %3523 = vmatprep.subr.bf16.mxu0 0
    %3524 = vmatpush1.bf16.msra.mxu0 0
    %3525 = vmatprep.subr.bf16.mxu0 0
    %3526 = vmatpush1.bf16.msra.mxu0 0
    %3527 = vmatprep.subr.bf16.mxu0 0
    %3528 = vmatpush1.bf16.msra.mxu0 0
    %3529 = vmatprep.subr.bf16.mxu0 0
    %3530 = vmatpush1.bf16.msra.mxu0 0
    %3531 = vmatprep.subr.bf16.mxu0 0
    %3532 = vmatpush1.bf16.msra.mxu0 0
    %3533 = vmatprep.subr.bf16.mxu0 0
    %3534 = vmatpush1.bf16.msra.mxu0 0
    %3535 = vmatprep.subr.bf16.mxu0 0
    %3536 = vmatpush1.bf16.msra.mxu0 0
    %3537 = vmatprep.subr.bf16.mxu0 0
    %3538 = vmatpush1.bf16.msra.mxu0 0
    %3539 = vmatprep.subr.bf16.mxu0 0
    %3540 = vmatpush1.bf16.msra.mxu0 0
    %3541 = vmatprep.subr.bf16.mxu0 0
    %3542 = vmatpush1.bf16.msra.mxu0 0
    %3543 = vmatprep.subr.bf16.mxu0 0
    %3544 = vmatpush1.bf16.msra.mxu0 0
    %3545 = vmatprep.subr.bf16.mxu0 0
    %3546 = vmatpush1.bf16.msra.mxu0 0
    %3547 = vmatprep.mubr.bf16.mxu0 0
    %3548 = vmatmul.mubr.bf16.gmra.mrb[0].mxu0 %v3510
    %v3549 = vpop.f32.mrb[0].mxu0
    %v3550 = vadd.f32 0.0, %v3549
    %v3551 = vpop.f32.mrb[0].mxu0
    %v3552 = vpop.f32.mrb[0].mxu0
    %v3553 = vpop.f32.mrb[0].mxu0
    %3554 = vdwg.mxu0
    %3556 = vrot.lane.b32.xlu0 %v3452, 8
    %v3557 = vpop.permute.xlu0 %3556
    %3560 = vrot.lane.b32.xlu0 %v3501, 16
    %v3561 = vpop.permute.xlu0 %3560
    %3564 = vrot.lane.b32.xlu0 %v3550, 24
    %v3565 = vpop.permute.xlu0 %3564
    %v3567 = vsel %vm216, %v3403, %v3557
    %v3568 = vsel %vm941, %v3567, %v3561
    %v3569 = vsel %vm943, %v3568, %v3565
    %v3570 = vpack.c.bf16 %v3355, %v3355
    %3571 = vrot.lane.b32.xlu0 %v3075, 64
    %v3572 = vpop.permute.xlu0 %3571
    %v3574 = vsel %vm216, %v3570, 0
    %v3577 = vsel %vm220, %v3572, 0
    %3579 = vmatprep.subr.bf16.mxu0 0
    %3580 = vmatpush1.bf16.msra.mxu0 %v3577
    %3581 = vmatprep.subr.bf16.mxu0 0
    %3582 = vmatpush1.bf16.msra.mxu0 0
    %3583 = vmatprep.subr.bf16.mxu0 0
    %3584 = vmatpush1.bf16.msra.mxu0 0
    %3585 = vmatprep.subr.bf16.mxu0 0
    %3586 = vmatpush1.bf16.msra.mxu0 0
    %3587 = vmatprep.subr.bf16.mxu0 0
    %3588 = vmatpush1.bf16.msra.mxu0 0
    %3589 = vmatprep.subr.bf16.mxu0 0
    %3590 = vmatpush1.bf16.msra.mxu0 0
    %3591 = vmatprep.subr.bf16.mxu0 0
    %3592 = vmatpush1.bf16.msra.mxu0 0
    %3593 = vmatprep.subr.bf16.mxu0 0
    %3594 = vmatpush1.bf16.msra.mxu0 0
    %3595 = vmatprep.subr.bf16.mxu0 0
    %3596 = vmatpush1.bf16.msra.mxu0 0
    %3597 = vmatprep.subr.bf16.mxu0 0
    %3598 = vmatpush1.bf16.msra.mxu0 0
    %3599 = vmatprep.subr.bf16.mxu0 0
    %3600 = vmatpush1.bf16.msra.mxu0 0
    %3601 = vmatprep.subr.bf16.mxu0 0
    %3602 = vmatpush1.bf16.msra.mxu0 0
    %3603 = vmatprep.subr.bf16.mxu0 0
    %3604 = vmatpush1.bf16.msra.mxu0 0
    %3605 = vmatprep.subr.bf16.mxu0 0
    %3606 = vmatpush1.bf16.msra.mxu0 0
    %3607 = vmatprep.subr.bf16.mxu0 0
    %3608 = vmatpush1.bf16.msra.mxu0 0
    %3609 = vmatprep.subr.bf16.mxu0 0
    %3610 = vmatpush1.bf16.msra.mxu0 0
    %3611 = vmatprep.mubr.bf16.mxu0 0
    %3612 = vmatmul.mubr.bf16.gmra.mrb[0].mxu0 %v3574
    %v3613 = vpop.f32.mrb[0].mxu0
    %v3614 = vadd.f32 0.0, %v3613
    %v3615 = vpop.f32.mrb[0].mxu0
    %v3616 = vpop.f32.mrb[0].mxu0
    %v3617 = vpop.f32.mrb[0].mxu0
    %3618 = vdwg.mxu0
    %v3619 = vpack.c.bf16 %v3356, %v3356
    %3620 = vrot.lane.b32.xlu0 %v3075, 56
    %v3621 = vpop.permute.xlu0 %3620
    %v3623 = vsel %vm216, %v3619, 0
    %v3626 = vsel %vm220, %v3621, 0
    %3628 = vmatprep.subr.bf16.mxu0 0
    %3629 = vmatpush1.bf16.msra.mxu0 %v3626
    %3630 = vmatprep.subr.bf16.mxu0 0
    %3631 = vmatpush1.bf16.msra.mxu0 0
    %3632 = vmatprep.subr.bf16.mxu0 0
    %3633 = vmatpush1.bf16.msra.mxu0 0
    %3634 = vmatprep.subr.bf16.mxu0 0
    %3635 = vmatpush1.bf16.msra.mxu0 0
    %3636 = vmatprep.subr.bf16.mxu0 0
    %3637 = vmatpush1.bf16.msra.mxu0 0
    %3638 = vmatprep.subr.bf16.mxu0 0
    %3639 = vmatpush1.bf16.msra.mxu0 0
    %3640 = vmatprep.subr.bf16.mxu0 0
    %3641 = vmatpush1.bf16.msra.mxu0 0
    %3642 = vmatprep.subr.bf16.mxu0 0
    %3643 = vmatpush1.bf16.msra.mxu0 0
    %3644 = vmatprep.subr.bf16.mxu0 0
    %3645 = vmatpush1.bf16.msra.mxu0 0
    %3646 = vmatprep.subr.bf16.mxu0 0
    %3647 = vmatpush1.bf16.msra.mxu0 0
    %3648 = vmatprep.subr.bf16.mxu0 0
    %3649 = vmatpush1.bf16.msra.mxu0 0
    %3650 = vmatprep.subr.bf16.mxu0 0
    %3651 = vmatpush1.bf16.msra.mxu0 0
    %3652 = vmatprep.subr.bf16.mxu0 0
    %3653 = vmatpush1.bf16.msra.mxu0 0
    %3654 = vmatprep.subr.bf16.mxu0 0
    %3655 = vmatpush1.bf16.msra.mxu0 0
    %3656 = vmatprep.subr.bf16.mxu0 0
    %3657 = vmatpush1.bf16.msra.mxu0 0
    %3658 = vmatprep.subr.bf16.mxu0 0
    %3659 = vmatpush1.bf16.msra.mxu0 0
    %3660 = vmatprep.mubr.bf16.mxu0 0
    %3661 = vmatmul.mubr.bf16.gmra.mrb[0].mxu0 %v3623
    %v3662 = vpop.f32.mrb[0].mxu0
    %v3663 = vadd.f32 0.0, %v3662
    %v3664 = vpop.f32.mrb[0].mxu0
    %v3665 = vpop.f32.mrb[0].mxu0
    %v3666 = vpop.f32.mrb[0].mxu0
    %3667 = vdwg.mxu0
    %v3668 = vpack.c.bf16 %v3357, %v3357
    %3669 = vrot.lane.b32.xlu0 %v3075, 48
    %v3670 = vpop.permute.xlu0 %3669
    %v3672 = vsel %vm216, %v3668, 0
    %v3675 = vsel %vm220, %v3670, 0
    %3677 = vmatprep.subr.bf16.mxu0 0
    %3678 = vmatpush1.bf16.msra.mxu0 %v3675
    %3679 = vmatprep.subr.bf16.mxu0 0
    %3680 = vmatpush1.bf16.msra.mxu0 0
    %3681 = vmatprep.subr.bf16.mxu0 0
    %3682 = vmatpush1.bf16.msra.mxu0 0
    %3683 = vmatprep.subr.bf16.mxu0 0
    %3684 = vmatpush1.bf16.msra.mxu0 0
    %3685 = vmatprep.subr.bf16.mxu0 0
    %3686 = vmatpush1.bf16.msra.mxu0 0
    %3687 = vmatprep.subr.bf16.mxu0 0
    %3688 = vmatpush1.bf16.msra.mxu0 0
    %3689 = vmatprep.subr.bf16.mxu0 0
    %3690 = vmatpush1.bf16.msra.mxu0 0
    %3691 = vmatprep.subr.bf16.mxu0 0
    %3692 = vmatpush1.bf16.msra.mxu0 0
    %3693 = vmatprep.subr.bf16.mxu0 0
    %3694 = vmatpush1.bf16.msra.mxu0 0
    %3695 = vmatprep.subr.bf16.mxu0 0
    %3696 = vmatpush1.bf16.msra.mxu0 0
    %3697 = vmatprep.subr.bf16.mxu0 0
    %3698 = vmatpush1.bf16.msra.mxu0 0
    %3699 = vmatprep.subr.bf16.mxu0 0
    %3700 = vmatpush1.bf16.msra.mxu0 0
    %3701 = vmatprep.subr.bf16.mxu0 0
    %3702 = vmatpush1.bf16.msra.mxu0 0
    %3703 = vmatprep.subr.bf16.mxu0 0
    %3704 = vmatpush1.bf16.msra.mxu0 0
    %3705 = vmatprep.subr.bf16.mxu0 0
    %3706 = vmatpush1.bf16.msra.mxu0 0
    %3707 = vmatprep.subr.bf16.mxu0 0
    %3708 = vmatpush1.bf16.msra.mxu0 0
    %3709 = vmatprep.mubr.bf16.mxu0 0
    %3710 = vmatmul.mubr.bf16.gmra.mrb[0].mxu0 %v3672
    %v3711 = vpop.f32.mrb[0].mxu0
    %v3712 = vadd.f32 0.0, %v3711
    %v3713 = vpop.f32.mrb[0].mxu0
    %v3714 = vpop.f32.mrb[0].mxu0
    %v3715 = vpop.f32.mrb[0].mxu0
    %3716 = vdwg.mxu0
    %v3717 = vpack.c.bf16 %v3358, %v3358
    %3718 = vrot.lane.b32.xlu0 %v3075, 40
    %v3719 = vpop.permute.xlu0 %3718
    %v3721 = vsel %vm216, %v3717, 0
    %v3724 = vsel %vm220, %v3719, 0
    %3726 = vmatprep.subr.bf16.mxu0 0
    %3727 = vmatpush1.bf16.msra.mxu0 %v3724
    %3728 = vmatprep.subr.bf16.mxu0 0
    %3729 = vmatpush1.bf16.msra.mxu0 0
    %3730 = vmatprep.subr.bf16.mxu0 0
    %3731 = vmatpush1.bf16.msra.mxu0 0
    %3732 = vmatprep.subr.bf16.mxu0 0
    %3733 = vmatpush1.bf16.msra.mxu0 0
    %3734 = vmatprep.subr.bf16.mxu0 0
    %3735 = vmatpush1.bf16.msra.mxu0 0
    %3736 = vmatprep.subr.bf16.mxu0 0
    %3737 = vmatpush1.bf16.msra.mxu0 0
    %3738 = vmatprep.subr.bf16.mxu0 0
    %3739 = vmatpush1.bf16.msra.mxu0 0
    %3740 = vmatprep.subr.bf16.mxu0 0
    %3741 = vmatpush1.bf16.msra.mxu0 0
    %3742 = vmatprep.subr.bf16.mxu0 0
    %3743 = vmatpush1.bf16.msra.mxu0 0
    %3744 = vmatprep.subr.bf16.mxu0 0
    %3745 = vmatpush1.bf16.msra.mxu0 0
    %3746 = vmatprep.subr.bf16.mxu0 0
    %3747 = vmatpush1.bf16.msra.mxu0 0
    %3748 = vmatprep.subr.bf16.mxu0 0
    %3749 = vmatpush1.bf16.msra.mxu0 0
    %3750 = vmatprep.subr.bf16.mxu0 0
    %3751 = vmatpush1.bf16.msra.mxu0 0
    %3752 = vmatprep.subr.bf16.mxu0 0
    %3753 = vmatpush1.bf16.msra.mxu0 0
    %3754 = vmatprep.subr.bf16.mxu0 0
    %3755 = vmatpush1.bf16.msra.mxu0 0
    %3756 = vmatprep.subr.bf16.mxu0 0
    %3757 = vmatpush1.bf16.msra.mxu0 0
    %3758 = vmatprep.mubr.bf16.mxu0 0
    %3759 = vmatmul.mubr.bf16.gmra.mrb[0].mxu0 %v3721
    %v3760 = vpop.f32.mrb[0].mxu0
    %v3761 = vadd.f32 0.0, %v3760
    %v3762 = vpop.f32.mrb[0].mxu0
    %v3763 = vpop.f32.mrb[0].mxu0
    %v3764 = vpop.f32.mrb[0].mxu0
    %3765 = vdwg.mxu0
    %3767 = vrot.lane.b32.xlu0 %v3663, 8
    %v3768 = vpop.permute.xlu0 %3767
    %3771 = vrot.lane.b32.xlu0 %v3712, 16
    %v3772 = vpop.permute.xlu0 %3771
    %3775 = vrot.lane.b32.xlu0 %v3761, 24
    %v3776 = vpop.permute.xlu0 %3775
    %v3778 = vsel %vm216, %v3614, %v3768
    %v3779 = vsel %vm941, %v3778, %v3772
    %v3780 = vsel %vm943, %v3779, %v3776
    %s3781 = scalar_lea.vmem %s5, 32
    %v3782 = vld [vmem:[%s3781] sm:$0xf]
    %v3783 = vld [vmem:[%s3781 + $0x4] sm:$0xf]
    %v3784 = vld [vmem:[%s3781 + $0x8] sm:$0xf]
    %v3785 = vld [vmem:[%s3781 + $0xc] sm:$0xf]
    %v3786 = vpack.c.bf16 %v3780, %v3569
    %s3787 = scalar_lea.vmem %s6, 2
    %v3788 = vld [vmem:[%s3787] sm:$0x1]
    %v3790 = vlaneseq
    %v3791 = vshrl.u32 %v3790, 7
    %v3792 = vsub.s32 0, %v3791
    %v3793 = vrot.slane %v3788, %v3792
    %v3799 = vunpack.c.l.b16 %v3782
    %v3800 = vunpack.c.l.b16 %v3783
    %v3801 = vunpack.c.l.b16 %v3784
    %v3802 = vunpack.c.l.b16 %v3785
    %v3803 = vpack.c.b16 %v3800, %v3799
    %v3804 = vpack.c.b16 %v3802, %v3801
    %v3808 = vsel %vm66, %v3786, 0
    %3810 = vmatprep.subr.bf16.mxu0 0
    %3811 = vmatpush1.bf16.msra.mxu0 %v3803
    %3812 = vmatprep.subr.bf16.mxu0 0
    %3813 = vmatpush1.bf16.msra.mxu0 %v3804
    %3814 = vmatprep.subr.bf16.mxu0 0
    %3815 = vmatpush1.bf16.msra.mxu0 0
    %3816 = vmatprep.subr.bf16.mxu0 0
    %3817 = vmatpush1.bf16.msra.mxu0 0
    %3818 = vmatprep.subr.bf16.mxu0 0
    %3819 = vmatpush1.bf16.msra.mxu0 0
    %3820 = vmatprep.subr.bf16.mxu0 0
    %3821 = vmatpush1.bf16.msra.mxu0 0
    %3822 = vmatprep.subr.bf16.mxu0 0
    %3823 = vmatpush1.bf16.msra.mxu0 0
    %3824 = vmatprep.subr.bf16.mxu0 0
    %3825 = vmatpush1.bf16.msra.mxu0 0
    %3826 = vmatprep.subr.bf16.mxu0 0
    %3827 = vmatpush1.bf16.msra.mxu0 0
    %3828 = vmatprep.subr.bf16.mxu0 0
    %3829 = vmatpush1.bf16.msra.mxu0 0
    %3830 = vmatprep.subr.bf16.mxu0 0
    %3831 = vmatpush1.bf16.msra.mxu0 0
    %3832 = vmatprep.subr.bf16.mxu0 0
    %3833 = vmatpush1.bf16.msra.mxu0 0
    %3834 = vmatprep.subr.bf16.mxu0 0
    %3835 = vmatpush1.bf16.msra.mxu0 0
    %3836 = vmatprep.subr.bf16.mxu0 0
    %3837 = vmatpush1.bf16.msra.mxu0 0
    %3838 = vmatprep.subr.bf16.mxu0 0
    %3839 = vmatpush1.bf16.msra.mxu0 0
    %3840 = vmatprep.subr.bf16.mxu0 0
    %3841 = vmatpush1.bf16.msra.mxu0 0
    %3842 = vmatprep.mubr.bf16.mxu0 0
    %3843 = vmatmul.mubr.bf16.gmra.mrb[0].mxu0 %v3808
    %v3844 = vpop.f32.mrb[0].mxu0
    %v3845 = vadd.f32 %v3793, %v3844
    %v3846 = vpop.f32.mrb[0].mxu0
    %v3847 = vpop.f32.mrb[0].mxu0
    %v3848 = vadd.f32 %v3793, %v3847
    %v3849 = vpop.f32.mrb[0].mxu0
    %3850 = vdwg.mxu0
    %v3851 = vadd.f32 %v2689, %v3845
    %v3852 = vadd.f32 %v2690, %v3848
    %s3853 = scalar_lea.vmem %s7, 5
    %v3854 = vld [vmem:[%s3853] sm:$0x1]
    %s3855 = scalar_lea.vmem %s8, 5
    %v3856 = vld [vmem:[%s3855] sm:$0x1]
    %v3857 = vsel %vm66, %v3851, 0.0
    %3858 = vadd.xlane.f32.xlu0 %v3857
    %v3859 = vpop.xlane.xlu0 %3858
    %v3860 = vsel %vm66, %v3852, 0.0
    %3861 = vadd.xlane.f32.xlu0 %v3860
    %v3862 = vpop.xlane.xlu0 %3861
    %v3863 = vmul.f32 %v3859, %v73
    %v3864 = vmul.f32 %v3862, %v73
    %v3865 = vsub.f32 %v3851, %v3863
    %v3866 = vsub.f32 %v3852, %v3864
    %v3867 = vmul.f32 %v3865, %v3865
    %v3868 = vmul.f32 %v3866, %v3866
    %v3869 = vsel %vm66, %v3867, 0.0
    %3870 = vadd.xlane.f32.xlu0 %v3869
    %v3871 = vpop.xlane.xlu0 %3870
    %v3872 = vsel %vm66, %v3868, 0.0
    %3873 = vadd.xlane.f32.xlu0 %v3872
    %v3874 = vpop.xlane.xlu0 %3873
    %v3875 = vmul.f32 %v3871, %v73
    %v3876 = vmul.f32 %v3874, %v73
    %v3877 = vadd.f32 %v3875, 1e-05
    %v3878 = vadd.f32 %v3876, 1e-05
    %v3879 = vrsqrt.pop %v3877
    %v3880 = vrsqrt.pop %v3878
    %v3881 = vmul.f32 %v3865, %v3879
    %v3882 = vmul.f32 %v3866, %v3880
    %v3884 = vlaneseq
    %v3885 = vshrl.u32 %v3884, 7
    %v3886 = vsub.s32 0, %v3885
    %v3887 = vrot.slane %v3854, %v3886
    %v3889 = vmul.f32 %v3881, %v3887
    %v3890 = vmul.f32 %v3882, %v3887
    %v3892 = vlaneseq
    %v3893 = vshrl.u32 %v3892, 7
    %v3894 = vsub.s32 0, %v3893
    %v3895 = vrot.slane %v3856, %v3894
    %v3897 = vadd.f32 %v3889, %v3895
    %v3898 = vadd.f32 %v3890, %v3895
    %s3899 = scalar_lea.vmem %s9, 16
    %v3900 = vld [vmem:[%s3899] sm:$0xf]
    %v3901 = vld [vmem:[%s3899 + $0x4] sm:$0xf]
    %v3902 = vld [vmem:[%s3899 + $0x8] sm:$0xf]
    %v3903 = vld [vmem:[%s3899 + $0xc] sm:$0xf]
    %v3904 = vpack.c.bf16 %v3898, %v3897
    %s3905 = scalar_lea.vmem %s10, 1
    %v3906 = vld [vmem:[%s3905] sm:$0x1]
    %v3908 = vlaneseq
    %v3909 = vshrl.u32 %v3908, 7
    %v3910 = vsub.s32 0, %v3909
    %v3911 = vrot.slane %v3906, %v3910
    %v3917 = vunpack.c.l.b16 %v3900
    %v3918 = vunpack.c.l.b16 %v3901
    %v3919 = vunpack.c.l.b16 %v3902
    %v3920 = vunpack.c.l.b16 %v3903
    %v3921 = vpack.c.b16 %v3918, %v3917
    %v3922 = vpack.c.b16 %v3920, %v3919
    %v3926 = vsel %vm66, %v3904, 0
    %3928 = vmatprep.subr.bf16.mxu0 0
    %3929 = vmatpush1.bf16.msra.mxu0 %v3921
    %3930 = vmatprep.subr.bf16.mxu0 0
    %3931 = vmatpush1.bf16.msra.mxu0 %v3922
    %3932 = vmatprep.subr.bf16.mxu0 0
    %3933 = vmatpush1.bf16.msra.mxu0 0
    %3934 = vmatprep.subr.bf16.mxu0 0
    %3935 = vmatpush1.bf16.msra.mxu0 0
    %3936 = vmatprep.subr.bf16.mxu0 0
    %3937 = vmatpush1.bf16.msra.mxu0 0
    %3938 = vmatprep.subr.bf16.mxu0 0
    %3939 = vmatpush1.bf16.msra.mxu0 0
    %3940 = vmatprep.subr.bf16.mxu0 0
    %3941 = vmatpush1.bf16.msra.mxu0 0
    %3942 = vmatprep.subr.bf16.mxu0 0
    %3943 = vmatpush1.bf16.msra.mxu0 0
    %3944 = vmatprep.subr.bf16.mxu0 0
    %3945 = vmatpush1.bf16.msra.mxu0 0
    %3946 = vmatprep.subr.bf16.mxu0 0
    %3947 = vmatpush1.bf16.msra.mxu0 0
    %3948 = vmatprep.subr.bf16.mxu0 0
    %3949 = vmatpush1.bf16.msra.mxu0 0
    %3950 = vmatprep.subr.bf16.mxu0 0
    %3951 = vmatpush1.bf16.msra.mxu0 0
    %3952 = vmatprep.subr.bf16.mxu0 0
    %3953 = vmatpush1.bf16.msra.mxu0 0
    %3954 = vmatprep.subr.bf16.mxu0 0
    %3955 = vmatpush1.bf16.msra.mxu0 0
    %3956 = vmatprep.subr.bf16.mxu0 0
    %3957 = vmatpush1.bf16.msra.mxu0 0
    %3958 = vmatprep.subr.bf16.mxu0 0
    %3959 = vmatpush1.bf16.msra.mxu0 0
    %3960 = vmatprep.mubr.bf16.mxu0 0
    %3961 = vmatmul.mubr.bf16.gmra.mrb[0].mxu0 %v3926
    %v3962 = vpop.f32.mrb[0].mxu0
    %v3963 = vadd.f32 %v3911, %v3962
    %v3964 = vpop.f32.mrb[0].mxu0
    %v3965 = vpop.f32.mrb[0].mxu0
    %v3966 = vadd.f32 %v3911, %v3965
    %v3967 = vpop.f32.mrb[0].mxu0
    %3968 = vdwg.mxu0
    %v3969 = vmul.f32 %v3963, 0.5
    %v3970 = vmul.f32 %v3966, 0.5
    %v3971 = vmul.f32 %v3963, 0.70710677
    %v3972 = vmul.f32 %v3966, 0.70710677
    %v3973 = verf.f32.pop %v3971
    %v3974 = verf.f32.pop %v3972
    %v3975 = vadd.f32 %v3973, 1.0
    %v3976 = vadd.f32 %v3974, 1.0
    %v3977 = vmul.f32 %v3969, %v3975
    %v3978 = vmul.f32 %v3970, %v3976
    %s3979 = scalar_lea.vmem %s11, 64
    %v3980 = vld [vmem:[%s3979] sm:$0xf]
    %v3981 = vld [vmem:[%s3979 + $0x4] sm:$0xf]
    %v3982 = vld [vmem:[%s3979 + $0x8] sm:$0xf]
    %v3983 = vld [vmem:[%s3979 + $0xc] sm:$0xf]
    %v3984 = vld [vmem:[%s3979 + $0x10] sm:$0xf]
    %v3985 = vld [vmem:[%s3979 + $0x14] sm:$0xf]
    %v3986 = vld [vmem:[%s3979 + $0x18] sm:$0xf]
    %v3987 = vld [vmem:[%s3979 + $0x1c] sm:$0xf]
    %v3988 = vld [vmem:[%s3979 + $0x20] sm:$0xf]
    %v3989 = vld [vmem:[%s3979 + $0x24] sm:$0xf]
    %v3990 = vld [vmem:[%s3979 + $0x28] sm:$0xf]
    %v3991 = vld [vmem:[%s3979 + $0x2c] sm:$0xf]
    %v3992 = vld [vmem:[%s3979 + $0x30] sm:$0xf]
    %v3993 = vld [vmem:[%s3979 + $0x34] sm:$0xf]
    %v3994 = vld [vmem:[%s3979 + $0x38] sm:$0xf]
    %v3995 = vld [vmem:[%s3979 + $0x3c] sm:$0xf]
    %v3996 = vpack.c.bf16 %v3978, %v3977
    %v4013 = vunpack.c.l.b16 %v3980
    %v4014 = vunpack.c.l.b16 %v3981
    %v4015 = vunpack.c.l.b16 %v3982
    %v4016 = vunpack.c.l.b16 %v3983
    %v4017 = vunpack.c.l.b16 %v3984
    %v4018 = vunpack.c.l.b16 %v3985
    %v4019 = vunpack.c.l.b16 %v3986
    %v4020 = vunpack.c.l.b16 %v3987
    %v4021 = vunpack.c.l.b16 %v3988
    %v4022 = vunpack.c.l.b16 %v3989
    %v4023 = vunpack.c.l.b16 %v3990
    %v4024 = vunpack.c.l.b16 %v3991
    %v4025 = vunpack.c.l.b16 %v3992
    %v4026 = vunpack.c.l.b16 %v3993
    %v4027 = vunpack.c.l.b16 %v3994
    %v4028 = vunpack.c.l.b16 %v3995
    %v4029 = vpack.c.b16 %v4014, %v4013
    %v4030 = vpack.c.b16 %v4016, %v4015
    %v4031 = vpack.c.b16 %v4018, %v4017
    %v4032 = vpack.c.b16 %v4020, %v4019
    %v4033 = vpack.c.b16 %v4022, %v4021
    %v4034 = vpack.c.b16 %v4024, %v4023
    %v4035 = vpack.c.b16 %v4026, %v4025
    %v4036 = vpack.c.b16 %v4028, %v4027
    %4045 = vmatprep.subr.bf16.mxu0 0
    %4046 = vmatpush1.bf16.msra.mxu0 %v4029
    %4047 = vmatprep.subr.bf16.mxu0 0
    %4048 = vmatpush1.bf16.msra.mxu0 %v4030
    %4049 = vmatprep.subr.bf16.mxu0 0
    %4050 = vmatpush1.bf16.msra.mxu0 %v4031
    %4051 = vmatprep.subr.bf16.mxu0 0
    %4052 = vmatpush1.bf16.msra.mxu0 %v4032
    %4053 = vmatprep.subr.bf16.mxu0 0
    %4054 = vmatpush1.bf16.msra.mxu0 %v4033
    %4055 = vmatprep.subr.bf16.mxu0 0
    %4056 = vmatpush1.bf16.msra.mxu0 %v4034
    %4057 = vmatprep.subr.bf16.mxu0 0
    %4058 = vmatpush1.bf16.msra.mxu0 %v4035
    %4059 = vmatprep.subr.bf16.mxu0 0
    %4060 = vmatpush1.bf16.msra.mxu0 %v4036
    %4061 = vmatprep.subr.bf16.mxu0 0
    %4062 = vmatpush1.bf16.msra.mxu0 0
    %4063 = vmatprep.subr.bf16.mxu0 0
    %4064 = vmatpush1.bf16.msra.mxu0 0
    %4065 = vmatprep.subr.bf16.mxu0 0
    %4066 = vmatpush1.bf16.msra.mxu0 0
    %4067 = vmatprep.subr.bf16.mxu0 0
    %4068 = vmatpush1.bf16.msra.mxu0 0
    %4069 = vmatprep.subr.bf16.mxu0 0
    %4070 = vmatpush1.bf16.msra.mxu0 0
    %4071 = vmatprep.subr.bf16.mxu0 0
    %4072 = vmatpush1.bf16.msra.mxu0 0
    %4073 = vmatprep.subr.bf16.mxu0 0
    %4074 = vmatpush1.bf16.msra.mxu0 0
    %4075 = vmatprep.subr.bf16.mxu0 0
    %4076 = vmatpush1.bf16.msra.mxu0 0
    %4077 = vmatprep.mubr.bf16.mxu0 0
    %4078 = vmatmul.mubr.bf16.gmra.mrb[0].mxu0 %v3996
    %v4079 = vpop.f32.mrb[0].mxu0
    %v4080 = vadd.f32 0.0, %v4079
    %v4081 = vpop.f32.mrb[0].mxu0
    %v4082 = vpop.f32.mrb[0].mxu0
    %v4083 = vadd.f32 0.0, %v4082
    %v4084 = vpop.f32.mrb[0].mxu0
    %4085 = vdwg.mxu0
    %v4086 = vadd.f32 %v3851, %v4080
    %v4087 = vadd.f32 %v3852, %v4083
    %s4088 = scalar_lea.vmem %s12, 1
    %v4089 = vld [vmem:[%s4088] sm:$0x1]
    %v4091 = vlaneseq
    %v4092 = vshrl.u32 %v4091, 7
    %v4093 = vsub.s32 0, %v4092
    %v4094 = vrot.slane %v4089, %v4093
    %v4096 = vadd.f32 %v4086, %v4094
    %v4097 = vadd.f32 %v4087, %v4094
    %v4098 = vld [vmem:[%s15] sm:$0x1]
    %v4099 = vld [vmem:[%s16] sm:$0x1]
    %v4100 = vsel %vm66, %v4096, 0.0
    %4101 = vadd.xlane.f32.xlu0 %v4100
    %v4102 = vpop.xlane.xlu0 %4101
    %v4103 = vsel %vm66, %v4097, 0.0
    %4104 = vadd.xlane.f32.xlu0 %v4103
    %v4105 = vpop.xlane.xlu0 %4104
    %v4106 = vmul.f32 %v4102, %v73
    %v4107 = vmul.f32 %v4105, %v73
    %v4108 = vsub.f32 %v4096, %v4106
    %v4109 = vsub.f32 %v4097, %v4107
    %v4110 = vmul.f32 %v4108, %v4108
    %v4111 = vmul.f32 %v4109, %v4109
    %v4112 = vsel %vm66, %v4110, 0.0
    %4113 = vadd.xlane.f32.xlu0 %v4112
    %v4114 = vpop.xlane.xlu0 %4113
    %v4115 = vsel %vm66, %v4111, 0.0
    %4116 = vadd.xlane.f32.xlu0 %v4115
    %v4117 = vpop.xlane.xlu0 %4116
    %v4118 = vmul.f32 %v4114, %v73
    %v4119 = vmul.f32 %v4117, %v73
    %v4120 = vadd.f32 %v4118, 1e-05
    %v4121 = vadd.f32 %v4119, 1e-05
    %v4122 = vrsqrt.pop %v4120
    %v4123 = vrsqrt.pop %v4121
    %v4124 = vmul.f32 %v4108, %v4122
    %v4125 = vmul.f32 %v4109, %v4123
    %v4127 = vlaneseq
    %v4128 = vshrl.u32 %v4127, 7
    %v4129 = vsub.s32 0, %v4128
    %v4130 = vrot.slane %v4098, %v4129
    %v4132 = vmul.f32 %v4124, %v4130
    %v4133 = vmul.f32 %v4125, %v4130
    %v4135 = vlaneseq
    %v4136 = vshrl.u32 %v4135, 7
    %v4137 = vsub.s32 0, %v4136
    %v4138 = vrot.slane %v4099, %v4137
    %v4140 = vadd.f32 %v4132, %v4138
    %v4141 = vadd.f32 %v4133, %v4138
    %v4142 = vld [vmem:[%s13] sm:$0xf]
    %v4143 = vld [vmem:[%s13 + $0x4] sm:$0xf]
    %v4144 = vld [vmem:[%s13 + $0x8] sm:$0xf]
    %v4145 = vld [vmem:[%s13 + $0xc] sm:$0xf]
    %v4146 = vpack.c.bf16 %v4141, %v4140
    %v4147 = vld [vmem:[%s14] sm:$0x1]
    %v4149 = vlaneseq
    %v4150 = vshrl.u32 %v4149, 7
    %v4151 = vsub.s32 0, %v4150
    %v4152 = vrot.slane %v4147, %v4151
    %v4158 = vunpack.c.l.b16 %v4142
    %v4159 = vunpack.c.l.b16 %v4143
    %v4160 = vunpack.c.l.b16 %v4144
    %v4161 = vunpack.c.l.b16 %v4145
    %v4162 = vpack.c.b16 %v4159, %v4158
    %v4163 = vpack.c.b16 %v4161, %v4160
    %v4167 = vsel %vm66, %v4146, 0
    %4169 = vmatprep.subr.bf16.mxu0 0
    %4170 = vmatpush1.bf16.msra.mxu0 %v4162
    %4171 = vmatprep.subr.bf16.mxu0 0
    %4172 = vmatpush1.bf16.msra.mxu0 %v4163
    %4173 = vmatprep.subr.bf16.mxu0 0
    %4174 = vmatpush1.bf16.msra.mxu0 0
    %4175 = vmatprep.subr.bf16.mxu0 0
    %4176 = vmatpush1.bf16.msra.mxu0 0
    %4177 = vmatprep.subr.bf16.mxu0 0
    %4178 = vmatpush1.bf16.msra.mxu0 0
    %4179 = vmatprep.subr.bf16.mxu0 0
    %4180 = vmatpush1.bf16.msra.mxu0 0
    %4181 = vmatprep.subr.bf16.mxu0 0
    %4182 = vmatpush1.bf16.msra.mxu0 0
    %4183 = vmatprep.subr.bf16.mxu0 0
    %4184 = vmatpush1.bf16.msra.mxu0 0
    %4185 = vmatprep.subr.bf16.mxu0 0
    %4186 = vmatpush1.bf16.msra.mxu0 0
    %4187 = vmatprep.subr.bf16.mxu0 0
    %4188 = vmatpush1.bf16.msra.mxu0 0
    %4189 = vmatprep.subr.bf16.mxu0 0
    %4190 = vmatpush1.bf16.msra.mxu0 0
    %4191 = vmatprep.subr.bf16.mxu0 0
    %4192 = vmatpush1.bf16.msra.mxu0 0
    %4193 = vmatprep.subr.bf16.mxu0 0
    %4194 = vmatpush1.bf16.msra.mxu0 0
    %4195 = vmatprep.subr.bf16.mxu0 0
    %4196 = vmatpush1.bf16.msra.mxu0 0
    %4197 = vmatprep.subr.bf16.mxu0 0
    %4198 = vmatpush1.bf16.msra.mxu0 0
    %4199 = vmatprep.subr.bf16.mxu0 0
    %4200 = vmatpush1.bf16.msra.mxu0 0
    %4201 = vmatprep.mubr.bf16.mxu0 0
    %4202 = vmatmul.mubr.bf16.gmra.mrb[0].mxu0 %v4167
    %v4203 = vpop.f32.mrb[0].mxu0
    %v4204 = vadd.f32 %v4152, %v4203
    %v4205 = vpop.f32.mrb[0].mxu0
    %v4206 = vpop.f32.mrb[0].mxu0
    %v4207 = vadd.f32 %v4152, %v4206
    %v4208 = vpop.f32.mrb[0].mxu0
    %4209 = vdwg.mxu0
    %v4210 = vmul.f32 %v4204, 0.5
    %v4211 = vmul.f32 %v4207, 0.5
    %v4212 = vmul.f32 %v4204, 0.70710677
    %v4213 = vmul.f32 %v4207, 0.70710677
    %v4214 = verf.f32.pop %v4212
    %v4215 = verf.f32.pop %v4213
    %v4216 = vadd.f32 %v4214, 1.0
    %v4217 = vadd.f32 %v4215, 1.0
    %v4218 = vmul.f32 %v4210, %v4216
    %v4219 = vmul.f32 %v4211, %v4217
    %s4220 = scalar_lea.vmem %s13, 16
    %v4221 = vld [vmem:[%s4220] sm:$0xf]
    %v4222 = vld [vmem:[%s4220 + $0x4] sm:$0xf]
    %v4223 = vld [vmem:[%s4220 + $0x8] sm:$0xf]
    %v4224 = vld [vmem:[%s4220 + $0xc] sm:$0xf]
    %v4225 = vpack.c.bf16 %v4219, %v4218
    %s4226 = scalar_lea.vmem %s14, 1
    %v4227 = vld [vmem:[%s4226] sm:$0x1]
    %v4229 = vlaneseq
    %v4230 = vshrl.u32 %v4229, 7
    %v4231 = vsub.s32 0, %v4230
    %v4232 = vrot.slane %v4227, %v4231
    %v4238 = vunpack.c.l.b16 %v4221
    %v4239 = vunpack.c.l.b16 %v4222
    %v4240 = vunpack.c.l.b16 %v4223
    %v4241 = vunpack.c.l.b16 %v4224
    %v4242 = vpack.c.b16 %v4239, %v4238
    %v4243 = vpack.c.b16 %v4241, %v4240
    %v4247 = vsel %vm66, %v4225, 0
    %4249 = vmatprep.subr.bf16.mxu0 0
    %4250 = vmatpush1.bf16.msra.mxu0 %v4242
    %4251 = vmatprep.subr.bf16.mxu0 0
    %4252 = vmatpush1.bf16.msra.mxu0 %v4243
    %4253 = vmatprep.subr.bf16.mxu0 0
    %4254 = vmatpush1.bf16.msra.mxu0 0
    %4255 = vmatprep.subr.bf16.mxu0 0
    %4256 = vmatpush1.bf16.msra.mxu0 0
    %4257 = vmatprep.subr.bf16.mxu0 0
    %4258 = vmatpush1.bf16.msra.mxu0 0
    %4259 = vmatprep.subr.bf16.mxu0 0
    %4260 = vmatpush1.bf16.msra.mxu0 0
    %4261 = vmatprep.subr.bf16.mxu0 0
    %4262 = vmatpush1.bf16.msra.mxu0 0
    %4263 = vmatprep.subr.bf16.mxu0 0
    %4264 = vmatpush1.bf16.msra.mxu0 0
    %4265 = vmatprep.subr.bf16.mxu0 0
    %4266 = vmatpush1.bf16.msra.mxu0 0
    %4267 = vmatprep.subr.bf16.mxu0 0
    %4268 = vmatpush1.bf16.msra.mxu0 0
    %4269 = vmatprep.subr.bf16.mxu0 0
    %4270 = vmatpush1.bf16.msra.mxu0 0
    %4271 = vmatprep.subr.bf16.mxu0 0
    %4272 = vmatpush1.bf16.msra.mxu0 0
    %4273 = vmatprep.subr.bf16.mxu0 0
    %4274 = vmatpush1.bf16.msra.mxu0 0
    %4275 = vmatprep.subr.bf16.mxu0 0
    %4276 = vmatpush1.bf16.msra.mxu0 0
    %4277 = vmatprep.subr.bf16.mxu0 0
    %4278 = vmatpush1.bf16.msra.mxu0 0
    %4279 = vmatprep.subr.bf16.mxu0 0
    %4280 = vmatpush1.bf16.msra.mxu0 0
    %4281 = vmatprep.mubr.bf16.mxu0 0
    %4282 = vmatmul.mubr.bf16.gmra.mrb[0].mxu0 %v4247
    %v4283 = vpop.f32.mrb[0].mxu0
    %v4284 = vadd.f32 %v4232, %v4283
    %v4285 = vpop.f32.mrb[0].mxu0
    %v4286 = vpop.f32.mrb[0].mxu0
    %v4287 = vadd.f32 %v4232, %v4286
    %v4288 = vpop.f32.mrb[0].mxu0
    %4289 = vdwg.mxu0
    %s4290 = scalar_lea.vmem %s15, 1
    %v4291 = vld [vmem:[%s4290] sm:$0x1]
    %s4292 = scalar_lea.vmem %s16, 1
    %v4293 = vld [vmem:[%s4292] sm:$0x1]
    %v4294 = vsel %vm66, %v4284, 0.0
    %4295 = vadd.xlane.f32.xlu0 %v4294
    %v4296 = vpop.xlane.xlu0 %4295
    %v4297 = vsel %vm66, %v4287, 0.0
    %4298 = vadd.xlane.f32.xlu0 %v4297
    %v4299 = vpop.xlane.xlu0 %4298
    %v4300 = vmul.f32 %v4296, %v73
    %v4301 = vmul.f32 %v4299, %v73
    %v4302 = vsub.f32 %v4284, %v4300
    %v4303 = vsub.f32 %v4287, %v4301
    %v4304 = vmul.f32 %v4302, %v4302
    %v4305 = vmul.f32 %v4303, %v4303
    %v4306 = vsel %vm66, %v4304, 0.0
    %4307 = vadd.xlane.f32.xlu0 %v4306
    %v4308 = vpop.xlane.xlu0 %4307
    %v4309 = vsel %vm66, %v4305, 0.0
    %4310 = vadd.xlane.f32.xlu0 %v4309
    %v4311 = vpop.xlane.xlu0 %4310
    %v4312 = vmul.f32 %v4308, %v73
    %v4313 = vmul.f32 %v4311, %v73
    %v4314 = vadd.f32 %v4312, 1e-05
    %v4315 = vadd.f32 %v4313, 1e-05
    %v4316 = vrsqrt.pop %v4314
    %v4317 = vrsqrt.pop %v4315
    %v4318 = vmul.f32 %v4302, %v4316
    %v4319 = vmul.f32 %v4303, %v4317
    %v4321 = vlaneseq
    %v4322 = vshrl.u32 %v4321, 7
    %v4323 = vsub.s32 0, %v4322
    %v4324 = vrot.slane %v4291, %v4323
    %v4326 = vmul.f32 %v4318, %v4324
    %v4327 = vmul.f32 %v4319, %v4324
    %v4329 = vlaneseq
    %v4330 = vshrl.u32 %v4329, 7
    %v4331 = vsub.s32 0, %v4330
    %v4332 = vrot.slane %v4293, %v4331
    %v4334 = vadd.f32 %v4326, %v4332
    %v4335 = vadd.f32 %v4327, %v4332
    %4336 = vst.msk [vmem:[#allocation2] sm:$0xff] %vm66, %v4334
    %4337 = vst.msk [vmem:[#allocation2 + $0x8] sm:$0xff] %vm66, %v4335
    // Predicated region
    $region70: #{qformer_forward.1} parent=1 // pred_check
      _
    $region71: #{qformer_forward.1} parent=1 // pred_check_branch
      %4339 = sbr.rel (0) target = $region73
    $region72: #{qformer_forward.1} parent=1 // pred_region
      %s4341 = ssub.s32 256, 256
      %4342 = vsyncadd [#allocation3], %s4341
      %s4343 = sshll.u32 [#allocation2], 4
      %s4344 = int_to_ptr.vmem [resolvable:$true] %s4343
      %4349 = dma.vmem_to_hbm [thread:$0]  %s4344, 256, %s17, [#allocation3], 128, 128, 8
    $region73: #{qformer_forward.1} parent=1 // pred_fallthru
      _
    // Predicated region
    $region74: #{qformer_forward.1} parent=1 // pred_check
      _
    $region75: #{qformer_forward.1} parent=1 // pred_check_branch
      %4351 = sbr.rel (0) target = $region77
    $region76: #{qformer_forward.1} parent=1 // pred_region
      %4352 = dma.done [#allocation3], 256
    $region77: #{qformer_forward.1} parent=1 // pred_fallthru
      _
    %4353 = vsyncpa [#allocation3], 1

</llo_original>
